<compile_context>
chip_gen: v7x
topology: tpu7x:2x2x1
jax: 0.10.0
libtpu: 0.0.40
codegen_flags: <defaults>
</compile_context>

<pallas_src>
import functools
import math

import jax
import jax.numpy as jnp
from jax import lax
from jax.experimental import pallas as pl
from jax.experimental.pallas import tpu as pltpu

_NT = (((1,), (1,)), ((), ()))   # a @ b.T  (contract last dims of both operands)
_NN = (((1,), (0,)), ((), ()))   # a @ b


def _round_up(x, m):
    return (x + m - 1) // m * m


def _dtransformer_layer_kernel(gam_ref, qb_ref, kb_ref, vb_ref, qres_ref,
                               wq_ref, bq_ref, wv_ref, bv_ref, wo_ref,
                               bo_ref, lnw_ref, lnb_ref,
                               maskb_ref, mask01_ref, pos_ref, rev_ref,
                               out_ref, sc_ref, acc_ref,
                               *, n_heads, dk, e_real, maxout):
    h = pl.program_id(1)
    inv_sqrt_dk = jnp.float32(1.0 / math.sqrt(dk))

    @pl.when(h == 0)
    def _():
        acc_ref[...] = jnp.zeros_like(acc_ref)

    # ---- per-head q/k/v projections: full-E_p contraction depth on the MXU,
    # ---- bf16 inputs, f32 accumulation.  kq_same=True -> k uses q's weights.
    xq = qb_ref[0]
    xk = kb_ref[0]
    xv = vb_ref[0]
    wq_h = wq_ref[0]
    qh = lax.dot_general(xq, wq_h, _NT, preferred_element_type=jnp.float32)
    kh = lax.dot_general(xk, wq_h, _NT, preferred_element_type=jnp.float32)
    vh = lax.dot_general(xv, wv_ref[0], _NT, preferred_element_type=jnp.float32)
    # Fold the 1/sqrt(dk) score scale into q before the QK^T dot.
    qhb = ((qh + bq_ref[0]) * inv_sqrt_dk).astype(jnp.bfloat16)
    khb = (kh + bq_ref[0]).astype(jnp.bfloat16)
    vhb = (vh + bv_ref[0]).astype(jnp.bfloat16)

    s = lax.dot_general(qhb, khb, _NT, preferred_element_type=jnp.float32)  # (S_p, S_p)

    mask_bias = maskb_ref[...]

    # ---- distance-decay ("gamma") term: a no-grad heuristic in the reference,
    # ---- so the approx EUP reciprocal and a bf16 matmul with the hoisted
    # ---- strict-lower-triangular matrix (== disttotal - distcum) are fine.
    sm = s + mask_bias
    e1 = jnp.exp(sm - jnp.max(sm, axis=-1, keepdims=True))
    inv_d1 = pl.reciprocal(jnp.sum(e1, axis=-1, keepdims=True), approx=True)
    rev_un = lax.dot_general(e1.astype(jnp.bfloat16), rev_ref[...], _NN,
                             preferred_element_type=jnp.float32)
    dist = jnp.sqrt(jnp.maximum(rev_un * inv_d1 * pos_ref[...], 0.0))
    gamma_h = -jnp.abs(gam_ref[h])                    # per-head scalar from SMEM
    total_eff = jnp.clip(jnp.exp(dist * gamma_h), 1e-5, 1e5)

    # ---- final attention weights (a kernel output consumed downstream, so the
    # ---- row-sum / maxout reciprocals stay exact: they act on (S_p,1) only).
    s2 = s * total_eff + mask_bias
    e2 = jnp.exp(s2 - jnp.max(s2, axis=-1, keepdims=True))
    p = e2 * (1.0 / jnp.sum(e2, axis=-1, keepdims=True))
    p = p * mask01_ref[...]              # zero masked cols (handles fully-masked rows)
    if maxout:
        scale = jnp.minimum(1.0 / (jnp.max(p, axis=-1, keepdims=True) + 1e-8), 5.0)
        p = p * scale
    sc_ref[0, 0] = p.astype(sc_ref.dtype)

    head_out = lax.dot_general(p.astype(jnp.bfloat16), vhb, _NN,
                               preferred_element_type=jnp.float32)          # (S_p, dk_p)
    # Per-head slice of the output projection, accumulated across the h axis:
    #   attn = sum_h head_out_h @ wo[:, h*dk:(h+1)*dk].T
    acc_ref[...] += lax.dot_general(head_out.astype(jnp.bfloat16), wo_ref[0], _NN,
                                    preferred_element_type=jnp.float32)     # (S_p, E_p)

    # ---- residual + LayerNorm once per batch element (cheap VPU-only epilogue)
    @pl.when(h == n_heads - 1)
    def _():
        x = qres_ref[0] + acc_ref[...] + bo_ref[...]   # dropout == identity (eval mode)
        e_lanes = x.shape[-1]
        inv_e = jnp.float32(1.0 / e_real)
        # Padded feature columns of x are exactly zero, so the mean over the
        # real E features is a plain lane sum scaled by 1/E.
        mean = jnp.sum(x, axis=-1, keepdims=True) * inv_e
        lane = lax.broadcasted_iota(jnp.int32, (1, e_lanes), 1)
        xc = jnp.where(lane < e_real, x - mean, 0.0)   # two-pass variance, padded lanes zeroed
        var = jnp.sum(xc * xc, axis=-1, keepdims=True) * inv_e
        out_ref[0] = xc * lax.rsqrt(var + 1e-5) * lnw_ref[...] + lnb_ref[...]


def dtransformer_layer_pallas(query, key, values, params, peek_cur=False):
    wq, bq, wv, bv, wo, bo, gammas, ln_w, ln_b = params
    B, S, E = query.shape
    H = int(gammas.shape[0])
    assert E % H == 0
    dk = E // H

    S_p = _round_up(S, 128)      # lane-dense score / activation tiles
    E_p = _round_up(E, 128)
    dk_p = _round_up(dk, 128)    # per-head projection width (lane-padded)
    diag = 0 if peek_cur else -1

    f32, bf16 = jnp.float32, jnp.bfloat16

    def pad_act(x, dtype):
        return jnp.pad(x, ((0, 0), (0, S_p - S), (0, E_p - E))).astype(dtype)

    # bf16 activations feed the MXU directly (no per-head casts in the kernel);
    # one f32 copy of `query` is kept for the residual path.
    q_bf, k_bf, v_bf = pad_act(query, bf16), pad_act(key, bf16), pad_act(values, bf16)
    q_res = pad_act(query, f32)

    def head_w(w):               # (E, E) -> (H, dk_p, E_p): rows grouped per head
        w3 = w.reshape(H, dk, E)
        return jnp.pad(w3, ((0, 0), (0, dk_p - dk), (0, E_p - E))).astype(bf16)

    def head_b(b):               # (E,) -> (H, 1, dk_p)
        b3 = b.reshape(H, 1, dk)
        return jnp.pad(b3, ((0, 0), (0, 0), (0, dk_p - dk))).astype(f32)

    wq_h, wv_h = head_w(wq), head_w(wv)
    wo_h = head_w(wo.T)          # rows h*dk:(h+1)*dk of wo.T == wo[:, h*dk:(h+1)*dk].T
    bq_h, bv_h = head_b(bq), head_b(bv)

    def row_vec(v):
        return jnp.pad(v, (0, E_p - E)).reshape(1, E_p).astype(f32)

    bo_p, lnw_p, lnb_p = row_vec(bo), row_vec(ln_w), row_vec(ln_b)

    # Hoisted (S_p, S_p) attention constants: built once in XLA, fetched once
    # (constant index_map), never recomputed per (b, h) step.
    row = jnp.arange(S_p, dtype=jnp.int32)[:, None]
    col = jnp.arange(S_p, dtype=jnp.int32)[None, :]
    mask = col <= (row + diag)                       # tril(diag); also masks padded key cols
    mask_bias = jnp.where(mask, 0.0, -1e32).astype(f32)
    mask01 = mask.astype(f32)
    pos_eff = jnp.abs(col - row).astype(f32)
    rev_mat = (row > col).astype(bf16)               # sm @ rev_mat == disttotal - distcum

    kernel = functools.partial(_dtransformer_layer_kernel,
                               n_heads=H, dk=dk, e_real=E, maxout=not peek_cur)

    act_spec = pl.BlockSpec((1, S_p, E_p), lambda b, h: (b, 0, 0))
    w_spec = pl.BlockSpec((1, dk_p, E_p), lambda b, h: (h, 0, 0))
    hb_spec = pl.BlockSpec((1, 1, dk_p), lambda b, h: (h, 0, 0))
    vec_spec = pl.BlockSpec((1, E_p), lambda b, h: (0, 0))
    ss_spec = pl.BlockSpec((S_p, S_p), lambda b, h: (0, 0))
    smem_spec = pl.BlockSpec(memory_space=pltpu.MemorySpace.SMEM)

    # VMEM budget: double-buffered pipelined blocks + constant-index blocks
    # (fetched once, still 2 buffers since pipeline_mode=pl.Buffered(1) is not
    # relied upon) + persistent accumulator scratch + live f32 softmax-chain
    # temporaries.  The cap comes from the actual chip so the request fits
    # v7x's 64 MiB/TC as well as v5e/v6e's 128 MiB.
    blk_bytes = (3 * S_p * E_p * 2       # q/k/v bf16 activation blocks
                 + 2 * S_p * E_p * 4     # f32 residual-q + output blocks
                 + S_p * S_p * 2         # bf16 scores block
                 + 3 * dk_p * E_p * 2    # per-head bf16 weight slices
                 + 2 * dk_p * 4)         # per-head f32 bias slices
    const_bytes = 3 * S_p * S_p * 4 + S_p * S_p * 2 + 3 * E_p * 4
    need = (2 * (blk_bytes + const_bytes)
            + S_p * E_p * 4              # attn accumulator scratch
            + 8 * S_p * S_p * 4)         # live f32 temporaries in the softmax chain
    try:
        vmem_cap = int(getattr(pltpu.get_tpu_info(), "vmem_capacity_bytes", 128 << 20))
    except Exception:
        vmem_cap = 64 << 20
    vmem_limit = int(min(max(need, 32 << 20), vmem_cap - (8 << 20)))
    # NOTE: for very long sequences on v7x (S_p >= ~768) a query-row grid axis
    # would be added here to keep the resident set under 64 MiB.

    out, scores = pl.pallas_call(
        kernel,
        grid=(B, H),
        in_specs=[smem_spec,
                  act_spec, act_spec, act_spec, act_spec,
                  w_spec, hb_spec, w_spec, hb_spec, w_spec,
                  vec_spec, vec_spec, vec_spec,
                  ss_spec, ss_spec, ss_spec, ss_spec],
        out_specs=[pl.BlockSpec((1, S_p, E_p), lambda b, h: (b, 0, 0)),
                   pl.BlockSpec((1, 1, S_p, S_p), lambda b, h: (b, h, 0, 0))],
        out_shape=(jax.ShapeDtypeStruct((B, S_p, E_p), jnp.float32),
                   jax.ShapeDtypeStruct((B, H, S_p, S_p), jnp.bfloat16)),
        scratch_shapes=[pltpu.VMEM((S_p, E_p), jnp.float32)],
        compiler_params=pltpu.CompilerParams(
            dimension_semantics=("parallel", "arbitrary"),
            vmem_limit_bytes=vmem_limit),
    )(gammas, q_bf, k_bf, v_bf, q_res,
      wq_h, bq_h, wv_h, bv_h, wo_h,
      bo_p, lnw_p, lnb_p,
      mask_bias, mask01, pos_eff, rev_mat)

    return out[:, :S, :E], scores[:, :, :S, :S]


def dtransformer_layer_reference(query, key, values, params, peek_cur=False):
    """Pure-JAX replica of the PyTorch forward (eval mode).

    All matmuls mirror the kernel's single-pass-bf16-MXU / f32-accumulate
    policy (the same quantities are rounded to bf16 in both paths), so the
    comparison isolates structural errors rather than MXU rounding.  The
    no-grad decay statistics keep the torch cumsum structure, with one bf16
    round of the softmax'd scores to mirror the kernel's bf16 matmul input.
    """
    wq, bq, wv, bv, wo, bo, gammas, ln_w, ln_b = params
    B, S, E = query.shape
    H = gammas.shape[0]
    dk = E // H
    bf = jnp.bfloat16

    def lin(x, w, b):
        return jnp.einsum('...i,oi->...o', x.astype(bf), w.astype(bf),
                          preferred_element_type=jnp.float32) + b

    def split(x):
        return x.reshape(B, S, H, dk).transpose(0, 2, 1, 3)

    q = split(lin(query, wq, bq)) * (1.0 / math.sqrt(dk))   # scale q before the bf16 round,
    k = split(lin(key, wq, bq))                             # exactly like the kernel
    v = split(lin(values, wv, bv))

    scores = jnp.einsum('bhqd,bhkd->bhqk', q.astype(bf), k.astype(bf),
                        preferred_element_type=jnp.float32)

    row = jnp.arange(S)[:, None]
    col = jnp.arange(S)[None, :]
    diag = 0 if peek_cur else -1
    mask = (col <= row + diag)[None, None]
    neg = jnp.float32(-1e32)

    def softmax(x):
        m = jnp.max(x, axis=-1, keepdims=True)
        e = jnp.exp(x - m)
        return e / jnp.sum(e, axis=-1, keepdims=True)

    s_sm = softmax(jnp.where(mask, scores, neg))
    s_sm = s_sm.astype(bf).astype(jnp.float32)   # mirror the kernel's bf16 MXU input
    distcum = jnp.cumsum(s_sm, axis=-1)
    disttotal = jnp.sum(s_sm, axis=-1, keepdims=True)
    pos = jnp.abs(col - row).astype(jnp.float32)[None, None]
    dist = jnp.sqrt(jnp.maximum((disttotal - distcum) * pos, 0.0))
    gamma = -jnp.abs(gammas).reshape(1, H, 1, 1)
    total_eff = jnp.clip(jnp.exp(dist * gamma), 1e-5, 1e5)
    scores = scores * total_eff

    scores = softmax(jnp.where(mask, scores, neg))
    scores = jnp.where(mask, scores, 0.0)
    if not peek_cur:  # maxout
        scale = jnp.minimum(1.0 / (jnp.max(scores, axis=-1, keepdims=True) + 1e-8), 5.0)
        scores = scores * scale

    out = jnp.einsum('bhqk,bhkd->bhqd', scores.astype(bf), v.astype(bf),
                     preferred_element_type=jnp.float32)
    concat = out.transpose(0, 2, 1, 3).reshape(B, S, E)
    attn = lin(concat, wo, bo)

    x = query + attn
    mean = jnp.mean(x, axis=-1, keepdims=True)
    var = jnp.mean((x - mean) ** 2, axis=-1, keepdims=True)
    xn = (x - mean) / jnp.sqrt(var + 1e-5)
    return xn * ln_w + ln_b, scores


def init_params(key, E, H):
    ks = jax.random.split(key, 8)

    def xavier(k, shape):
        fan_out, fan_in = shape
        bound = math.sqrt(6.0 / (fan_in + fan_out))
        return jax.random.uniform(k, shape, jnp.float32, -bound, bound)

    wq = xavier(ks[0], (E, E))
    bq = jax.random.uniform(ks[1], (E,), jnp.float32, -0.1, 0.1)
    wv = xavier(ks[2], (E, E))
    bv = jax.random.uniform(ks[3], (E,), jnp.float32, -0.1, 0.1)
    wo = xavier(ks[4], (E, E))
    bo = jax.random.uniform(ks[5], (E,), jnp.float32, -0.1, 0.1)
    # torch: gammas = zeros(H,1,1) then xavier_uniform_  (fan_in=1, fan_out=H)
    g_bound = math.sqrt(6.0 / (1 + H))
    gammas = jax.random.uniform(ks[6], (H,), jnp.float32, -g_bound, g_bound)
    ln_w = jnp.ones((E,), jnp.float32)   # nn.LayerNorm defaults
    ln_b = jnp.zeros((E,), jnp.float32)
    return (wq, bq, wv, bv, wo, bo, gammas, ln_w, ln_b)


if __name__ == "__main__":
    B, S, E, H = 2, 8, 32, 4
    root = jax.random.PRNGKey(0)
    kq, kk, kv, kp = jax.random.split(root, 4)

    query = jax.random.normal(kq, (B, S, E), jnp.float32)
    key_in = jax.random.normal(kk, (B, S, E), jnp.float32)
    values = jax.random.normal(kv, (B, S, E), jnp.float32)
    params = init_params(kp, E, H)
    # `lens` is unused by the reference forward; omitted.

    for peek_cur in (False, True):
        out, scores = dtransformer_layer_pallas(query, key_in, values, params,
                                                peek_cur=peek_cur)
        out = jax.block_until_ready(out)
        scores = jax.block_until_ready(scores)

        ref_out, ref_scores = dtransformer_layer_reference(query, key_in, values, params,
                                                           peek_cur=peek_cur)
        err_o = float(jnp.max(jnp.abs(out - ref_out)))
        err_s = float(jnp.max(jnp.abs(scores.astype(jnp.float32) - ref_scores)))
        assert out.shape == (B, S, E) and scores.shape == (B, H, S, S)
        # Tolerance budget: bf16 MXU rounding differences in the no-grad decay
        # statistics (kernel matmul vs reference cumsum), the EUP approx
        # reciprocal in the decay softmax, the bf16 scores output, and f32
        # accumulation-order differences of the padded MXU tiles.
        assert err_o < 2e-2 and err_s < 2e-2, (peek_cur, err_o, err_s)
    print("KERNEL_OK")
</pallas_src>

<mosaic_0001>
module attributes {stable_mosaic.version = 11 : i64} {
  func.func @_dtransformer_layer_kernel(%arg0: i32, %arg1: i32, %arg2: memref<4xf32, #tpu.memory_space<smem>>, %arg3: memref<1x128x128xbf16, #tpu.memory_space<vmem>>, %arg4: memref<1x128x128xbf16, #tpu.memory_space<vmem>>, %arg5: memref<1x128x128xbf16, #tpu.memory_space<vmem>>, %arg6: memref<1x128x128xf32, #tpu.memory_space<vmem>>, %arg7: memref<1x128x128xbf16, #tpu.memory_space<vmem>>, %arg8: memref<1x1x128xf32, #tpu.memory_space<vmem>>, %arg9: memref<1x128x128xbf16, #tpu.memory_space<vmem>>, %arg10: memref<1x1x128xf32, #tpu.memory_space<vmem>>, %arg11: memref<1x128x128xbf16, #tpu.memory_space<vmem>>, %arg12: memref<1x128xf32, #tpu.memory_space<vmem>>, %arg13: memref<1x128xf32, #tpu.memory_space<vmem>>, %arg14: memref<1x128xf32, #tpu.memory_space<vmem>>, %arg15: memref<128x128xf32, #tpu.memory_space<vmem>>, %arg16: memref<128x128xf32, #tpu.memory_space<vmem>>, %arg17: memref<128x128xf32, #tpu.memory_space<vmem>>, %arg18: memref<128x128xbf16, #tpu.memory_space<vmem>>, %arg19: memref<1x128x128xf32, #tpu.memory_space<vmem>>, %arg20: memref<1x1x128x128xbf16, #tpu.memory_space<vmem>>, %arg21: memref<128x128xf32, #tpu.memory_space<vmem>>) attributes {dimension_semantics = [#tpu.dimension_semantics<parallel>, #tpu.dimension_semantics<arbitrary>], iteration_bounds = array<i64: 2, 4>, scalar_prefetch = 0 : i64, scratch_operands = 1 : i64, tpu.core_type = #tpu.core_type<tc>, window_params = [{transform_indices = @transform_0, window_bounds = array<i64: 4>}, {transform_indices = @transform_1, window_bounds = array<i64: 1, 128, 128>}, {transform_indices = @transform_2, window_bounds = array<i64: 1, 128, 128>}, {transform_indices = @transform_3, window_bounds = array<i64: 1, 128, 128>}, {transform_indices = @transform_4, window_bounds = array<i64: 1, 128, 128>}, {transform_indices = @transform_5, window_bounds = array<i64: 1, 128, 128>}, {transform_indices = @transform_6, window_bounds = array<i64: 1, 1, 128>}, {transform_indices = @transform_7, window_bounds = array<i64: 1, 128, 128>}, {transform_indices = @transform_8, window_bounds = array<i64: 1, 1, 128>}, {transform_indices = @transform_9, window_bounds = array<i64: 1, 128, 128>}, {pipeline_mode = #tpu.pipeline_mode<synchronous>, transform_indices = @transform_10, window_bounds = array<i64: 1, 128>}, {pipeline_mode = #tpu.pipeline_mode<synchronous>, transform_indices = @transform_11, window_bounds = array<i64: 1, 128>}, {pipeline_mode = #tpu.pipeline_mode<synchronous>, transform_indices = @transform_12, window_bounds = array<i64: 1, 128>}, {pipeline_mode = #tpu.pipeline_mode<synchronous>, transform_indices = @transform_13, window_bounds = array<i64: 128, 128>}, {pipeline_mode = #tpu.pipeline_mode<synchronous>, transform_indices = @transform_14, window_bounds = array<i64: 128, 128>}, {pipeline_mode = #tpu.pipeline_mode<synchronous>, transform_indices = @transform_15, window_bounds = array<i64: 128, 128>}, {pipeline_mode = #tpu.pipeline_mode<synchronous>, transform_indices = @transform_16, window_bounds = array<i64: 128, 128>}, {transform_indices = @transform_17, window_bounds = array<i64: 1, 128, 128>}, {transform_indices = @transform_18, window_bounds = array<i64: 1, 1, 128, 128>}]} {
    %c0_i32 = arith.constant 0 : i32
    %0 = arith.cmpi eq, %arg1, %c0_i32 : i32
    %1 = arith.extui %0 : i1 to i32
    %c0_i32_0 = arith.constant 0 : i32
    %2 = arith.cmpi ne, %1, %c0_i32_0 : i32
    scf.if %2 {
      %cst_64 = arith.constant 0.000000e+00 : f32
      %106 = vector.broadcast %cst_64 : f32 to vector<128x128xf32>
      %c0_65 = arith.constant 0 : index
      %c0_66 = arith.constant 0 : index
      %107 = vector.load %arg21[%c0_65, %c0_66] : memref<128x128xf32, #tpu.memory_space<vmem>>, vector<128x128xf32>
      tpu.vector_store %arg21[%c0_65, %c0_66], %106 {strides = array<i32>} : memref<128x128xf32, #tpu.memory_space<vmem>>, vector<128x128xf32>,
    } else {
    }
    %c0 = arith.constant 0 : index
    %c0_1 = arith.constant 0 : index
    %c0_2 = arith.constant 0 : index
    %3 = vector.load %arg3[%c0, %c0_1, %c0_2] : memref<1x128x128xbf16, #tpu.memory_space<vmem>>, vector<1x128x128xbf16>
    %4 = vector.shape_cast %3 : vector<1x128x128xbf16> to vector<128x128xbf16>
    %c0_3 = arith.constant 0 : index
    %c0_4 = arith.constant 0 : index
    %c0_5 = arith.constant 0 : index
    %5 = vector.load %arg4[%c0_3, %c0_4, %c0_5] : memref<1x128x128xbf16, #tpu.memory_space<vmem>>, vector<1x128x128xbf16>
    %6 = vector.shape_cast %5 : vector<1x128x128xbf16> to vector<128x128xbf16>
    %c0_6 = arith.constant 0 : index
    %c0_7 = arith.constant 0 : index
    %c0_8 = arith.constant 0 : index
    %7 = vector.load %arg5[%c0_6, %c0_7, %c0_8] : memref<1x128x128xbf16, #tpu.memory_space<vmem>>, vector<1x128x128xbf16>
    %8 = vector.shape_cast %7 : vector<1x128x128xbf16> to vector<128x128xbf16>
    %c0_9 = arith.constant 0 : index
    %c0_10 = arith.constant 0 : index
    %c0_11 = arith.constant 0 : index
    %9 = vector.load %arg7[%c0_9, %c0_10, %c0_11] : memref<1x128x128xbf16, #tpu.memory_space<vmem>>, vector<1x128x128xbf16>
    %10 = vector.shape_cast %9 : vector<1x128x128xbf16> to vector<128x128xbf16>
    %cst = arith.constant dense<0.000000e+00> : vector<128x128xf32>
    %11 = tpu.matmul %4, %10, %cst {dimension_numbers = #tpu.dot_dimension_numbers<[1], [1], [0], [0], [0, 0, 1, 0], [], []>} : vector<128x128xbf16>, vector<128x128xbf16>, vector<128x128xf32> -> vector<128x128xf32>
    %cst_12 = arith.constant dense<0.000000e+00> : vector<128x128xf32>
    %12 = tpu.matmul %6, %10, %cst_12 {dimension_numbers = #tpu.dot_dimension_numbers<[1], [1], [0], [0], [0, 0, 1, 0], [], []>} : vector<128x128xbf16>, vector<128x128xbf16>, vector<128x128xf32> -> vector<128x128xf32>
    %c0_13 = arith.constant 0 : index
    %c0_14 = arith.constant 0 : index
    %c0_15 = arith.constant 0 : index
    %13 = vector.load %arg9[%c0_13, %c0_14, %c0_15] : memref<1x128x128xbf16, #tpu.memory_space<vmem>>, vector<1x128x128xbf16>
    %14 = vector.shape_cast %13 : vector<1x128x128xbf16> to vector<128x128xbf16>
    %cst_16 = arith.constant dense<0.000000e+00> : vector<128x128xf32>
    %15 = tpu.matmul %8, %14, %cst_16 {dimension_numbers = #tpu.dot_dimension_numbers<[1], [1], [0], [0], [0, 0, 1, 0], [], []>} : vector<128x128xbf16>, vector<128x128xbf16>, vector<128x128xf32> -> vector<128x128xf32>
    %c0_17 = arith.constant 0 : index
    %c0_18 = arith.constant 0 : index
    %c0_19 = arith.constant 0 : index
    %16 = vector.load %arg8[%c0_17, %c0_18, %c0_19] : memref<1x1x128xf32, #tpu.memory_space<vmem>>, vector<1x1x128xf32>
    %17 = vector.shape_cast %16 : vector<1x1x128xf32> to vector<1x128xf32>
    %18 = vector.broadcast %17 : vector<1x128xf32> to vector<128x128xf32>
    %19 = arith.addf %11, %18 : vector<128x128xf32>
    %cst_20 = arith.constant 0.353553385 : f32
    %20 = vector.broadcast %cst_20 : f32 to vector<128x128xf32>
    %21 = arith.mulf %19, %20 : vector<128x128xf32>
    %22 = arith.truncf %21 : vector<128x128xf32> to vector<128x128xbf16>
    %c0_21 = arith.constant 0 : index
    %c0_22 = arith.constant 0 : index
    %c0_23 = arith.constant 0 : index
    %23 = vector.load %arg8[%c0_21, %c0_22, %c0_23] : memref<1x1x128xf32, #tpu.memory_space<vmem>>, vector<1x1x128xf32>
    %24 = vector.shape_cast %23 : vector<1x1x128xf32> to vector<1x128xf32>
    %25 = vector.broadcast %24 : vector<1x128xf32> to vector<128x128xf32>
    %26 = arith.addf %12, %25 : vector<128x128xf32>
    %27 = arith.truncf %26 : vector<128x128xf32> to vector<128x128xbf16>
    %c0_24 = arith.constant 0 : index
    %c0_25 = arith.constant 0 : index
    %c0_26 = arith.constant 0 : index
    %28 = vector.load %arg10[%c0_24, %c0_25, %c0_26] : memref<1x1x128xf32, #tpu.memory_space<vmem>>, vector<1x1x128xf32>
    %29 = vector.shape_cast %28 : vector<1x1x128xf32> to vector<1x128xf32>
    %30 = vector.broadcast %29 : vector<1x128xf32> to vector<128x128xf32>
    %31 = arith.addf %15, %30 : vector<128x128xf32>
    %32 = arith.truncf %31 : vector<128x128xf32> to vector<128x128xbf16>
    %cst_27 = arith.constant dense<0.000000e+00> : vector<128x128xf32>
    %33 = tpu.matmul %22, %27, %cst_27 {dimension_numbers = #tpu.dot_dimension_numbers<[1], [1], [0], [0], [0, 0, 1, 0], [], []>} : vector<128x128xbf16>, vector<128x128xbf16>, vector<128x128xf32> -> vector<128x128xf32>
    %c0_28 = arith.constant 0 : index
    %c0_29 = arith.constant 0 : index
    %34 = vector.load %arg15[%c0_28, %c0_29] : memref<128x128xf32, #tpu.memory_space<vmem>>, vector<128x128xf32>
    %35 = arith.addf %33, %34 : vector<128x128xf32>
    %cst_30 = arith.constant dense<0xFF800000> : vector<128xf32>
    %36 = vector.multi_reduction <maximumf>, %35, %cst_30 [1] : vector<128x128xf32> to vector<128xf32>
    %37 = vector.shape_cast %36 : vector<128xf32> to vector<128x1xf32>
    %38 = vector.broadcast %37 : vector<128x1xf32> to vector<128x128xf32>
    %39 = arith.subf %35, %38 : vector<128x128xf32>
    %40 = math.exp %39 : vector<128x128xf32>
    %cst_31 = arith.constant dense<0.000000e+00> : vector<128xf32>
    %41 = vector.multi_reduction <add>, %40, %cst_31 [1] : vector<128x128xf32> to vector<128xf32>
    %42 = vector.shape_cast %41 : vector<128xf32> to vector<128x1xf32>
    %43 = tpu.reciprocal %42 {approx = true} : vector<128x1xf32> -> vector<128x1xf32>
    %44 = arith.truncf %40 : vector<128x128xf32> to vector<128x128xbf16>
    %c0_32 = arith.constant 0 : index
    %c0_33 = arith.constant 0 : index
    %45 = vector.load %arg18[%c0_32, %c0_33] : memref<128x128xbf16, #tpu.memory_space<vmem>>, vector<128x128xbf16>
    %cst_34 = arith.constant dense<0.000000e+00> : vector<128x128xf32>
    %46 = tpu.matmul %44, %45, %cst_34 {dimension_numbers = #tpu.dot_dimension_numbers<[1], [0], [0], [1], [0, 0, 1, 1], [], []>} : vector<128x128xbf16>, vector<128x128xbf16>, vector<128x128xf32> -> vector<128x128xf32>
    %47 = vector.broadcast %43 : vector<128x1xf32> to vector<128x128xf32>
    %48 = arith.mulf %46, %47 : vector<128x128xf32>
    %c0_35 = arith.constant 0 : index
    %c0_36 = arith.constant 0 : index
    %49 = vector.load %arg17[%c0_35, %c0_36] : memref<128x128xf32, #tpu.memory_space<vmem>>, vector<128x128xf32>
    %50 = arith.mulf %48, %49 : vector<128x128xf32>
    %cst_37 = arith.constant 0.000000e+00 : f32
    %51 = vector.broadcast %cst_37 : f32 to vector<128x128xf32>
    %52 = arith.maximumf %50, %51 : vector<128x128xf32>
    %53 = math.sqrt %52 : vector<128x128xf32>
    %54 = arith.index_cast %arg1 : i32 to index
    %55 = memref.load %arg2[%54] : memref<4xf32, #tpu.memory_space<smem>>
    %56 = math.absf %55 : f32
    %cst_38 = arith.constant 0.000000e+00 : f32
    %57 = arith.subf %cst_38, %56 : f32
    %58 = vector.broadcast %57 : f32 to vector<128x128xf32>
    %59 = arith.mulf %53, %58 : vector<128x128xf32>
    %60 = math.exp %59 : vector<128x128xf32>
    %cst_39 = arith.constant 9.99999974E-6 : f32
    %cst_40 = arith.constant 1.000000e+05 : f32
    %61 = vector.broadcast %cst_39 : f32 to vector<128x128xf32>
    %62 = arith.maximumf %61, %60 : vector<128x128xf32>
    %63 = vector.broadcast %cst_40 : f32 to vector<128x128xf32>
    %64 = arith.minimumf %63, %62 : vector<128x128xf32>
    %65 = arith.mulf %33, %64 : vector<128x128xf32>
    %66 = arith.addf %65, %34 : vector<128x128xf32>
    %cst_41 = arith.constant dense<0xFF800000> : vector<128xf32>
    %67 = vector.multi_reduction <maximumf>, %66, %cst_41 [1] : vector<128x128xf32> to vector<128xf32>
    %68 = vector.shape_cast %67 : vector<128xf32> to vector<128x1xf32>
    %69 = vector.broadcast %68 : vector<128x1xf32> to vector<128x128xf32>
    %70 = arith.subf %66, %69 : vector<128x128xf32>
    %71 = math.exp %70 : vector<128x128xf32>
    %cst_42 = arith.constant dense<0.000000e+00> : vector<128xf32>
    %72 = vector.multi_reduction <add>, %71, %cst_42 [1] : vector<128x128xf32> to vector<128xf32>
    %73 = vector.shape_cast %72 : vector<128xf32> to vector<128x1xf32>
    %cst_43 = arith.constant 1.000000e+00 : f32
    %74 = vector.broadcast %cst_43 : f32 to vector<128x1xf32>
    %75 = arith.divf %74, %73 : vector<128x1xf32>
    %76 = vector.broadcast %75 : vector<128x1xf32> to vector<128x128xf32>
    %77 = arith.mulf %71, %76 : vector<128x128xf32>
    %c0_44 = arith.constant 0 : index
    %c0_45 = arith.constant 0 : index
    %78 = vector.load %arg16[%c0_44, %c0_45] : memref<128x128xf32, #tpu.memory_space<vmem>>, vector<128x128xf32>
    %79 = arith.mulf %77, %78 : vector<128x128xf32>
    %cst_46 = arith.constant dense<0xFF800000> : vector<128xf32>
    %80 = vector.multi_reduction <maximumf>, %79, %cst_46 [1] : vector<128x128xf32> to vector<128xf32>
    %81 = vector.shape_cast %80 : vector<128xf32> to vector<128x1xf32>
    %cst_47 = arith.constant 9.99999993E-9 : f32
    %82 = vector.broadcast %cst_47 : f32 to vector<128x1xf32>
    %83 = arith.addf %81, %82 : vector<128x1xf32>
    %cst_48 = arith.constant 1.000000e+00 : f32
    %84 = vector.broadcast %cst_48 : f32 to vector<128x1xf32>
    %85 = arith.divf %84, %83 : vector<128x1xf32>
    %cst_49 = arith.constant 5.000000e+00 : f32
    %86 = vector.broadcast %cst_49 : f32 to vector<128x1xf32>
    %87 = arith.minimumf %85, %86 : vector<128x1xf32>
    %88 = vector.broadcast %87 : vector<128x1xf32> to vector<128x128xf32>
    %89 = arith.mulf %79, %88 : vector<128x128xf32>
    %90 = arith.truncf %89 : vector<128x128xf32> to vector<128x128xbf16>
    %c0_50 = arith.constant 0 : index
    %c0_51 = arith.constant 0 : index
    %c0_52 = arith.constant 0 : index
    %c0_53 = arith.constant 0 : index
    %91 = vector.load %arg20[%c0_50, %c0_51, %c0_52, %c0_53] : memref<1x1x128x128xbf16, #tpu.memory_space<vmem>>, vector<1x1x128x128xbf16>
    %92 = vector.shape_cast %91 : vector<1x1x128x128xbf16> to vector<128x128xbf16>
    %93 = vector.shape_cast %90 : vector<128x128xbf16> to vector<1x1x128x128xbf16>
    tpu.vector_store %arg20[%c0_50, %c0_51, %c0_52, %c0_53], %93 {strides = array<i32>} : memref<1x1x128x128xbf16, #tpu.memory_space<vmem>>, vector<1x1x128x128xbf16>,
    %94 = arith.truncf %89 : vector<128x128xf32> to vector<128x128xbf16>
    %cst_54 = arith.constant dense<0.000000e+00> : vector<128x128xf32>
    %95 = tpu.matmul %94, %32, %cst_54 {dimension_numbers = #tpu.dot_dimension_numbers<[1], [0], [0], [1], [0, 0, 1, 1], [], []>} : vector<128x128xbf16>, vector<128x128xbf16>, vector<128x128xf32> -> vector<128x128xf32>
    %c0_55 = arith.constant 0 : index
    %c0_56 = arith.constant 0 : index
    %96 = vector.load %arg21[%c0_55, %c0_56] : memref<128x128xf32, #tpu.memory_space<vmem>>, vector<128x128xf32>
    %97 = arith.truncf %95 : vector<128x128xf32> to vector<128x128xbf16>
    %c0_57 = arith.constant 0 : index
    %c0_58 = arith.constant 0 : index
    %c0_59 = arith.constant 0 : index
    %98 = vector.load %arg11[%c0_57, %c0_58, %c0_59] : memref<1x128x128xbf16, #tpu.memory_space<vmem>>, vector<1x128x128xbf16>
    %99 = vector.shape_cast %98 : vector<1x128x128xbf16> to vector<128x128xbf16>
    %cst_60 = arith.constant dense<0.000000e+00> : vector<128x128xf32>
    %100 = tpu.matmul %97, %99, %cst_60 {dimension_numbers = #tpu.dot_dimension_numbers<[1], [0], [0], [1], [0, 0, 1, 1], [], []>} : vector<128x128xbf16>, vector<128x128xbf16>, vector<128x128xf32> -> vector<128x128xf32>
    %101 = arith.addf %96, %100 : vector<128x128xf32>
    %c0_61 = arith.constant 0 : index
    %c0_62 = arith.constant 0 : index
    %102 = vector.load %arg21[%c0_61, %c0_62] : memref<128x128xf32, #tpu.memory_space<vmem>>, vector<128x128xf32>
    tpu.vector_store %arg21[%c0_61, %c0_62], %101 {strides = array<i32>} : memref<128x128xf32, #tpu.memory_space<vmem>>, vector<128x128xf32>,
    %c3_i32 = arith.constant 3 : i32
    %103 = arith.cmpi eq, %arg1, %c3_i32 : i32
    %104 = arith.extui %103 : i1 to i32
    %c0_i32_63 = arith.constant 0 : i32
    %105 = arith.cmpi ne, %104, %c0_i32_63 : i32
    scf.if %105 {
      %c0_64 = arith.constant 0 : index
      %c0_65 = arith.constant 0 : index
      %c0_66 = arith.constant 0 : index
      %106 = vector.load %arg6[%c0_64, %c0_65, %c0_66] : memref<1x128x128xf32, #tpu.memory_space<vmem>>, vector<1x128x128xf32>
      %107 = vector.shape_cast %106 : vector<1x128x128xf32> to vector<128x128xf32>
      %c0_67 = arith.constant 0 : index
      %c0_68 = arith.constant 0 : index
      %108 = vector.load %arg21[%c0_67, %c0_68] : memref<128x128xf32, #tpu.memory_space<vmem>>, vector<128x128xf32>
      %109 = arith.addf %107, %108 : vector<128x128xf32>
      %c0_69 = arith.constant 0 : index
      %c0_70 = arith.constant 0 : index
      %110 = vector.load %arg12[%c0_69, %c0_70] : memref<1x128xf32, #tpu.memory_space<vmem>>, vector<1x128xf32>
      %111 = vector.broadcast %110 : vector<1x128xf32> to vector<128x128xf32>
      %112 = arith.addf %109, %111 : vector<128x128xf32>
      %cst_71 = arith.constant dense<0.000000e+00> : vector<128xf32>
      %113 = vector.multi_reduction <add>, %112, %cst_71 [1] : vector<128x128xf32> to vector<128xf32>
      %114 = vector.shape_cast %113 : vector<128xf32> to vector<128x1xf32>
      %cst_72 = arith.constant 3.125000e-02 : f32
      %115 = vector.broadcast %cst_72 : f32 to vector<128x1xf32>
      %116 = arith.mulf %114, %115 : vector<128x1xf32>
      %117 = tpu.iota {dimensions = array<i32: 1>} : vector<1x128xi32>
      %c32_i32 = arith.constant 32 : i32
      %118 = vector.broadcast %c32_i32 : i32 to vector<1x128xi32>
      %119 = arith.cmpi slt, %117, %118 : vector<1x128xi32>
      %120 = vector.broadcast %116 : vector<128x1xf32> to vector<128x128xf32>
      %121 = arith.subf %112, %120 : vector<128x128xf32>
      %cst_73 = arith.constant 0.000000e+00 : f32
      %122 = vector.shape_cast %119 : vector<1x128xi1> to vector<1x128xi1>
      %123 = vector.broadcast %122 : vector<1x128xi1> to vector<128x128xi1>
      %124 = vector.broadcast %cst_73 : f32 to vector<128x128xf32>
      %125 = arith.select %123, %121, %124 : vector<128x128xi1>, vector<128x128xf32>
      %126 = arith.mulf %125, %125 : vector<128x128xf32>
      %cst_74 = arith.constant dense<0.000000e+00> : vector<128xf32>
      %127 = vector.multi_reduction <add>, %126, %cst_74 [1] : vector<128x128xf32> to vector<128xf32>
      %128 = vector.shape_cast %127 : vector<128xf32> to vector<128x1xf32>
      %cst_75 = arith.constant 3.125000e-02 : f32
      %129 = vector.broadcast %cst_75 : f32 to vector<128x1xf32>
      %130 = arith.mulf %128, %129 : vector<128x1xf32>
      %cst_76 = arith.constant 9.99999974E-6 : f32
      %131 = vector.broadcast %cst_76 : f32 to vector<128x1xf32>
      %132 = arith.addf %130, %131 : vector<128x1xf32>
      %133 = math.rsqrt %132 : vector<128x1xf32>
      %134 = vector.broadcast %133 : vector<128x1xf32> to vector<128x128xf32>
      %135 = arith.mulf %125, %134 : vector<128x128xf32>
      %c0_77 = arith.constant 0 : index
      %c0_78 = arith.constant 0 : index
      %136 = vector.load %arg13[%c0_77, %c0_78] : memref<1x128xf32, #tpu.memory_space<vmem>>, vector<1x128xf32>
      %137 = vector.broadcast %136 : vector<1x128xf32> to vector<128x128xf32>
      %138 = arith.mulf %135, %137 : vector<128x128xf32>
      %c0_79 = arith.constant 0 : index
      %c0_80 = arith.constant 0 : index
      %139 = vector.load %arg14[%c0_79, %c0_80] : memref<1x128xf32, #tpu.memory_space<vmem>>, vector<1x128xf32>
      %140 = vector.broadcast %139 : vector<1x128xf32> to vector<128x128xf32>
      %141 = arith.addf %138, %140 : vector<128x128xf32>
      %c0_81 = arith.constant 0 : index
      %c0_82 = arith.constant 0 : index
      %c0_83 = arith.constant 0 : index
      %142 = vector.load %arg19[%c0_81, %c0_82, %c0_83] : memref<1x128x128xf32, #tpu.memory_space<vmem>>, vector<1x128x128xf32>
      %143 = vector.shape_cast %142 : vector<1x128x128xf32> to vector<128x128xf32>
      %144 = vector.shape_cast %141 : vector<128x128xf32> to vector<1x128x128xf32>
      tpu.vector_store %arg19[%c0_81, %c0_82, %c0_83], %144 {strides = array<i32>} : memref<1x128x128xf32, #tpu.memory_space<vmem>>, vector<1x128x128xf32>,
    } else {
    }
    return
  }
  func.func @transform_0(%arg0: i32, %arg1: i32) -> i32 {
    %c0_i32 = arith.constant 0 : i32
    %c0_i32_0 = arith.constant 0 : i32
    return %c0_i32 : i32
  }
  func.func @transform_1(%arg0: i32, %arg1: i32) -> (i32, i32, i32) {
    %c0_i32 = arith.constant 0 : i32
    %c0_i32_0 = arith.constant 0 : i32
    %c0_i32_1 = arith.constant 0 : i32
    return %arg0, %c0_i32, %c0_i32_0 : i32, i32, i32
  }
  func.func @transform_2(%arg0: i32, %arg1: i32) -> (i32, i32, i32) {
    %c0_i32 = arith.constant 0 : i32
    %c0_i32_0 = arith.constant 0 : i32
    %c0_i32_1 = arith.constant 0 : i32
    return %arg0, %c0_i32, %c0_i32_0 : i32, i32, i32
  }
  func.func @transform_3(%arg0: i32, %arg1: i32) -> (i32, i32, i32) {
    %c0_i32 = arith.constant 0 : i32
    %c0_i32_0 = arith.constant 0 : i32
    %c0_i32_1 = arith.constant 0 : i32
    return %arg0, %c0_i32, %c0_i32_0 : i32, i32, i32
  }
  func.func @transform_4(%arg0: i32, %arg1: i32) -> (i32, i32, i32) {
    %c0_i32 = arith.constant 0 : i32
    %c0_i32_0 = arith.constant 0 : i32
    %c0_i32_1 = arith.constant 0 : i32
    return %arg0, %c0_i32, %c0_i32_0 : i32, i32, i32
  }
  func.func @transform_5(%arg0: i32, %arg1: i32) -> (i32, i32, i32) {
    %c0_i32 = arith.constant 0 : i32
    %c0_i32_0 = arith.constant 0 : i32
    %c0_i32_1 = arith.constant 0 : i32
    return %arg1, %c0_i32, %c0_i32_0 : i32, i32, i32
  }
  func.func @transform_6(%arg0: i32, %arg1: i32) -> (i32, i32, i32) {
    %c0_i32 = arith.constant 0 : i32
    %c0_i32_0 = arith.constant 0 : i32
    %c0_i32_1 = arith.constant 0 : i32
    return %arg1, %c0_i32, %c0_i32_0 : i32, i32, i32
  }
  func.func @transform_7(%arg0: i32, %arg1: i32) -> (i32, i32, i32) {
    %c0_i32 = arith.constant 0 : i32
    %c0_i32_0 = arith.constant 0 : i32
    %c0_i32_1 = arith.constant 0 : i32
    return %arg1, %c0_i32, %c0_i32_0 : i32, i32, i32
  }
  func.func @transform_8(%arg0: i32, %arg1: i32) -> (i32, i32, i32) {
    %c0_i32 = arith.constant 0 : i32
    %c0_i32_0 = arith.constant 0 : i32
    %c0_i32_1 = arith.constant 0 : i32
    return %arg1, %c0_i32, %c0_i32_0 : i32, i32, i32
  }
  func.func @transform_9(%arg0: i32, %arg1: i32) -> (i32, i32, i32) {
    %c0_i32 = arith.constant 0 : i32
    %c0_i32_0 = arith.constant 0 : i32
    %c0_i32_1 = arith.constant 0 : i32
    return %arg1, %c0_i32, %c0_i32_0 : i32, i32, i32
  }
  func.func @transform_10(%arg0: i32, %arg1: i32) -> (i32, i32) {
    %c0_i32 = arith.constant 0 : i32
    %c0_i32_0 = arith.constant 0 : i32
    %c0_i32_1 = arith.constant 0 : i32
    return %c0_i32, %c0_i32_0 : i32, i32
  }
  func.func @transform_11(%arg0: i32, %arg1: i32) -> (i32, i32) {
    %c0_i32 = arith.constant 0 : i32
    %c0_i32_0 = arith.constant 0 : i32
    %c0_i32_1 = arith.constant 0 : i32
    return %c0_i32, %c0_i32_0 : i32, i32
  }
  func.func @transform_12(%arg0: i32, %arg1: i32) -> (i32, i32) {
    %c0_i32 = arith.constant 0 : i32
    %c0_i32_0 = arith.constant 0 : i32
    %c0_i32_1 = arith.constant 0 : i32
    return %c0_i32, %c0_i32_0 : i32, i32
  }
  func.func @transform_13(%arg0: i32, %arg1: i32) -> (i32, i32) {
    %c0_i32 = arith.constant 0 : i32
    %c0_i32_0 = arith.constant 0 : i32
    %c0_i32_1 = arith.constant 0 : i32
    return %c0_i32, %c0_i32_0 : i32, i32
  }
  func.func @transform_14(%arg0: i32, %arg1: i32) -> (i32, i32) {
    %c0_i32 = arith.constant 0 : i32
    %c0_i32_0 = arith.constant 0 : i32
    %c0_i32_1 = arith.constant 0 : i32
    return %c0_i32, %c0_i32_0 : i32, i32
  }
  func.func @transform_15(%arg0: i32, %arg1: i32) -> (i32, i32) {
    %c0_i32 = arith.constant 0 : i32
    %c0_i32_0 = arith.constant 0 : i32
    %c0_i32_1 = arith.constant 0 : i32
    return %c0_i32, %c0_i32_0 : i32, i32
  }
  func.func @transform_16(%arg0: i32, %arg1: i32) -> (i32, i32) {
    %c0_i32 = arith.constant 0 : i32
    %c0_i32_0 = arith.constant 0 : i32
    %c0_i32_1 = arith.constant 0 : i32
    return %c0_i32, %c0_i32_0 : i32, i32
  }
  func.func @transform_17(%arg0: i32, %arg1: i32) -> (i32, i32, i32) {
    %c0_i32 = arith.constant 0 : i32
    %c0_i32_0 = arith.constant 0 : i32
    %c0_i32_1 = arith.constant 0 : i32
    return %arg0, %c0_i32, %c0_i32_0 : i32, i32, i32
  }
  func.func @transform_18(%arg0: i32, %arg1: i32) -> (i32, i32, i32, i32) {
    %c0_i32 = arith.constant 0 : i32
    %c0_i32_0 = arith.constant 0 : i32
    %c0_i32_1 = arith.constant 0 : i32
    return %arg0, %arg1, %c0_i32, %c0_i32_0 : i32, i32, i32, i32
  }
}

</mosaic_0001>

<llo_original>
// kernel: tpu_custom_call.1
$region0: #{tpu_custom_call.1}
  #allocation0 [shape = 'u32[]', space=smem, size = 0x4, offset = 0x4, fixed_abs, tag = 'smem constant byte address 0x4 - core index']
  #allocation1 [shape = 'u32[144,128]{1,0:T(1,128)}', space=vmem, size = 0x12000, scoped, tag = 'internal scratch']
  #allocation2 [shape = 'f32[128,128]{1,0:T(8,128)}', space=vmem, size = 0x10000, scoped, tag = 'scratch operand']
  %s0 = inlined_call_operand.hbm [shape: f32[4], index: 0, kind: input, shape index: {}]
  %s1 = inlined_call_operand.hbm [shape: bf16[2,128,128], index: 1, kind: input, shape index: {}]
  %s2 = inlined_call_operand.hbm [shape: bf16[2,128,128], index: 2, kind: input, shape index: {}]
  %s3 = inlined_call_operand.hbm [shape: bf16[2,128,128], index: 3, kind: input, shape index: {}]
  %s4 = inlined_call_operand.hbm [shape: f32[2,128,128], index: 4, kind: input, shape index: {}]
  %s5 = inlined_call_operand.hbm [shape: bf16[4,128,128], index: 5, kind: input, shape index: {}]
  %s6 = inlined_call_operand.vmem [shape: f32[4,1,128], index: 6, kind: input, shape index: {}]
  %s7 = inlined_call_operand.hbm [shape: bf16[4,128,128], index: 7, kind: input, shape index: {}]
  %s8 = inlined_call_operand.vmem [shape: f32[4,1,128], index: 8, kind: input, shape index: {}]
  %s9 = inlined_call_operand.hbm [shape: bf16[4,128,128], index: 9, kind: input, shape index: {}]
  %s10 = inlined_call_operand.vmem [shape: f32[1,128], index: 10, kind: input, shape index: {}]
  %s11 = inlined_call_operand.vmem [shape: f32[1,128], index: 11, kind: input, shape index: {}]
  %s12 = inlined_call_operand.vmem [shape: f32[1,128], index: 12, kind: input, shape index: {}]
  %s13 = inlined_call_operand.hbm [shape: f32[128,128], index: 13, kind: input, shape index: {}]
  %s14 = inlined_call_operand.hbm [shape: f32[128,128], index: 14, kind: input, shape index: {}]
  %s15 = inlined_call_operand.hbm [shape: f32[128,128], index: 15, kind: input, shape index: {}]
  %s16 = inlined_call_operand.hbm [shape: bf16[128,128], index: 16, kind: input, shape index: {}]
  %s17 = inlined_call_operand.hbm [shape: f32[2,128,128], index: 17, kind: output, shape index: {0}]
  %s18 = inlined_call_operand.hbm [shape: bf16[2,4,128,128], index: 18, kind: output, shape index: {1}]
  %19 = xla_tuple %s17, %s18
  %s20 = sld [smem:[#allocation0]]
  $region165: #{tpu_custom_call.1} parent=0
    _
  %s22 = ssub.s32 1, %s20
  %s23 = scalar_select 0, %s22, %s20
  $region1: #{tpu_custom_call.1} parent=0
    #allocation3 [shape = 'u8[512]{0}', space=smem, size = 0x200, scoped, tag = 'input window, operand 0, single buffered']
    #allocation4 [shape = 's32[2]{0}', space=sflag, size = 0x8, scoped, tag = 'scoped memory for tpu_custom_call.1']
    #allocation5 [shape = 's32[2]{0}', space=sflag, size = 0x8, scoped, tag = 'scoped memory for tpu_custom_call.1']
    #allocation6 [shape = 's32[2]{0}', space=sflag, size = 0x8, scoped, tag = 'scoped memory for tpu_custom_call.1']
    #allocation7 [shape = 'u8[65536]{0}', space=vmem, size = 0x10000, scoped, tag = 'input window, operand 1']
    #allocation8 [shape = 'u8[65536]{0}', space=vmem, size = 0x10000, scoped, tag = 'input window, operand 2']
    #allocation9 [shape = 's32[2]{0}', space=sflag, size = 0x8, scoped, tag = 'scoped memory for tpu_custom_call.1']
    #allocation10 [shape = 'u8[65536]{0}', space=vmem, size = 0x10000, scoped, tag = 'input window, operand 3']
    #allocation11 [shape = 'u8[131072]{0}', space=vmem, size = 0x20000, scoped, tag = 'input window, operand 4']
    #allocation12 [shape = 's32[2]{0}', space=sflag, size = 0x8, scoped, tag = 'scoped memory for tpu_custom_call.1']
    #allocation13 [shape = 'u8[65536]{0}', space=vmem, size = 0x10000, scoped, tag = 'input window, operand 5']
    #allocation14 [shape = 'u8[65536]{0}', space=vmem, size = 0x10000, scoped, tag = 'input window, operand 7']
    #allocation15 [shape = 's32[2]{0}', space=sflag, size = 0x8, scoped, tag = 'scoped memory for tpu_custom_call.1']
    #allocation16 [shape = 'u8[65536]{0}', space=vmem, size = 0x10000, scoped, tag = 'input window, operand 9']
    #allocation17 [shape = 'u8[65536]{0}', space=vmem, size = 0x10000, scoped, tag = 'input window, operand 13, single buffered']
    #allocation18 [shape = 's32[1]{0}', space=sflag, size = 0x4, scoped, tag = 'scoped memory for tpu_custom_call.1']
    #allocation19 [shape = 'u8[65536]{0}', space=vmem, size = 0x10000, scoped, tag = 'input window, operand 14, single buffered']
    #allocation20 [shape = 'u8[65536]{0}', space=vmem, size = 0x10000, scoped, tag = 'input window, operand 15, single buffered']
    #allocation21 [shape = 's32[1]{0}', space=sflag, size = 0x4, scoped, tag = 'scoped memory for tpu_custom_call.1']
    #allocation22 [shape = 'u8[32768]{0}', space=vmem, size = 0x8000, scoped, tag = 'input window, operand 16, single buffered']
    #allocation23 [shape = 'u8[131072]{0}', space=vmem, size = 0x20000, scoped, tag = 'output window, operand 0']
    #allocation24 [shape = 'u8[65536]{0}', space=vmem, size = 0x10000, scoped, tag = 'output window, operand 1']
    #allocation25 [shape = 's32[2]{0}', space=sflag, size = 0x8, scoped, tag = 'scoped memory for tpu_custom_call.1']
    %24 = vsyncpa [#allocation6], 0
    %25 = vsyncpa [#allocation4], 0
    %s26 = scalar_lea.sflag [#allocation4], 1
    %27 = vsyncpa %s26, 0
    %28 = vsyncpa [#allocation9], 0
    %s29 = scalar_lea.sflag [#allocation9], 1
    %30 = vsyncpa %s29, 0
    %31 = vsyncpa [#allocation12], 0
    %s32 = scalar_lea.sflag [#allocation12], 1
    %33 = vsyncpa %s32, 0
    %34 = vsyncpa [#allocation15], 0
    %s35 = scalar_lea.sflag [#allocation15], 1
    %36 = vsyncpa %s35, 0
    %37 = vsyncpa [#allocation18], 0
    %38 = vsyncpa [#allocation21], 0
    %39 = vsyncpa [#allocation5], 0
    %s40 = scalar_lea.sflag [#allocation5], 1
    %41 = vsyncpa %s40, 0
    %42 = vsyncpa [#allocation25], 0
    %s43 = scalar_lea.sflag [#allocation25], 1
    %44 = vsyncpa %s43, 0
    loop: start=0, step=1, limit=10
    $region2: #{tpu_custom_call.1} parent=1 // loop_pre_header
      _
    $region3: #{tpu_custom_call.1} parent=1 // loop_header
      %s46 = sphi 0, %s50
      %p47 = scmp.ge.s32.totalorder %s46, 10
      %s53 = sphi 0, %s65
      %s54 = sphi 0, %s61
      %s55 = sphi 0, %s53
      %s56 = sphi 0, %s54
      %s57 = sphi 0, %s55
      %s58 = sphi 0, %s56
      %s66 = sphi 0, %s66
      %s68 = sphi 0, %s66
      %s69 = sphi 0, %s68
      %s83 = sphi 0, %s69
      %s89 = sphi 0, %s91
      %s92 = sphi 0, %s89
      %s93 = sphi 0, %s92
      %s109 = sphi 0, %s93
      %s115 = sphi 0, %s117
      %s118 = sphi 0, %s115
      %s119 = sphi 0, %s118
      %s135 = sphi 0, %s119
      %s141 = sphi 0, %s143
      %s144 = sphi 0, %s141
      %s145 = sphi 0, %s144
      %s161 = sphi 0, %s145
      %s167 = sphi 0, %s169
      %s170 = sphi 0, %s167
      %s171 = sphi 0, %s170
      %s187 = sphi 0, %s171
      %s193 = sphi 0, %s195
      %s196 = sphi 0, %s193
      %s197 = sphi 0, %s196
      %s213 = sphi 0, %s197
      %s219 = sphi 0, %s221
      %s222 = sphi 0, %s219
      %s223 = sphi 0, %s222
      %s239 = sphi 0, %s223
      %s245 = sphi 0, %s247
      %s248 = sphi 0, %s245
      %s249 = sphi 0, %s248
      %s265 = sphi 0, %s249
      %s271 = sphi 0, %s273
      %s274 = sphi 0, %s271
      %s275 = sphi 0, %s274
      %s291 = sphi 0, %s275
      %s297 = sphi 0, %s299
      %s300 = sphi 0, %s297
      %s301 = sphi 0, %s300
      %s317 = sphi 0, %s301
      %s321 = sphi 0, %s321
      %s323 = sphi 0, %s321
      %s324 = sphi 0, %s323
      %s338 = sphi 0, %s324
      %s342 = sphi 0, %s342
      %s344 = sphi 0, %s342
      %s345 = sphi 0, %s344
      %s359 = sphi 0, %s345
      %s363 = sphi 0, %s363
      %s365 = sphi 0, %s363
      %s366 = sphi 0, %s365
      %s380 = sphi 0, %s366
      %s384 = sphi 0, %s384
      %s386 = sphi 0, %s384
      %s387 = sphi 0, %s386
      %s401 = sphi 0, %s387
      %s405 = sphi 0, %s405
      %s407 = sphi 0, %s405
      %s408 = sphi 0, %s407
      %s422 = sphi 0, %s408
      %s426 = sphi 0, %s426
      %s428 = sphi 0, %s426
      %s429 = sphi 0, %s428
      %s443 = sphi 0, %s429
      %s447 = sphi 0, %s447
      %s449 = sphi 0, %s447
      %s450 = sphi 0, %s449
      %s464 = sphi 0, %s450
      %s470 = sphi 0, %s472
      %s473 = sphi 0, %s470
      %s474 = sphi 0, %s473
      %s490 = sphi 0, %s474
      %s498 = sphi 0, %s500
      %s501 = sphi 0, %s498
      %s502 = sphi 0, %s501
      %s518 = sphi 0, %s502
    $region4: #{tpu_custom_call.1} parent=1 // loop_header_branch
      %49 = sbr.rel (%p47) target = $region8
    $region5: #{tpu_custom_call.1} parent=1 // loop_body
      %s51 = ssub.s32 %s46, 1
      %s52 = ssub.s32 %s46, 2
      %s59 = sadd.s32 1, %s54
      %p60 = scmp.ge.s32.totalorder %s59, 4
      %s61 = scalar_select %p60, 0, %s59
      %s62 = sadd.s32 1, %s53
      %s63 = scalar_select %p60, %s62, %s53
      %p64 = scmp.ge.s32.totalorder %s63, 2
      %s65 = scalar_select %p64, 0, %s63
      %s67 = sadd.s32 %s66, 1
      %p70 = scmp.eq.s32.totalorder %s46, 7
      %p71 = scmp.ne.s32.totalorder %s66, %s68
      %p72 = scmp.eq.s32.totalorder %s46, 0
      %p73 = por %p71, %p72
      %p74 = scmp.ne.s32.totalorder %s66, %s68
      %p75 = scmp.eq.s32.totalorder %s51, 7
      %p76 = por %p74, %p75
      %p77 = scmp.ne.s32.totalorder %s68, %s69
      %p78 = scmp.eq.s32.totalorder %s51, 0
      %p79 = por %p77, %p78
      %p80 = scmp.ne.s32.totalorder %s68, %s69
      %p81 = scmp.eq.s32.totalorder %s52, 7
      %p82 = por %p80, %p81
      %p84 = scmp.ne.s32.totalorder %s69, %s83
      %p85 = scmp.eq.s32.totalorder %s52, 0
      %p86 = por %p84, %p85
      %s87 = ssub.s32 %s53, %s65
      %p88 = scmp.eq.s32.totalorder %s87, 0
      %s90 = sadd.s32 %s89, 1
      %s91 = scalar_select %p88, %s89, %s90
      %p94 = pneg %p88
      %p95 = scmp.eq.s32.totalorder %s46, 7
      %p96 = por %p94, %p95
      %p97 = scmp.ne.s32.totalorder %s89, %s92
      %p98 = scmp.eq.s32.totalorder %s46, 0
      %p99 = por %p97, %p98
      %p100 = scmp.ne.s32.totalorder %s89, %s92
      %p101 = scmp.eq.s32.totalorder %s51, 7
      %p102 = por %p100, %p101
      %p103 = scmp.ne.s32.totalorder %s92, %s93
      %p104 = scmp.eq.s32.totalorder %s51, 0
      %p105 = por %p103, %p104
      %p106 = scmp.ne.s32.totalorder %s92, %s93
      %p107 = scmp.eq.s32.totalorder %s52, 7
      %p108 = por %p106, %p107
      %p110 = scmp.ne.s32.totalorder %s93, %s109
      %p111 = scmp.eq.s32.totalorder %s52, 0
      %p112 = por %p110, %p111
      %s113 = ssub.s32 %s53, %s65
      %p114 = scmp.eq.s32.totalorder %s113, 0
      %s116 = sadd.s32 %s115, 1
      %s117 = scalar_select %p114, %s115, %s116
      %p120 = pneg %p114
      %p121 = scmp.eq.s32.totalorder %s46, 7
      %p122 = por %p120, %p121
      %p123 = scmp.ne.s32.totalorder %s115, %s118
      %p124 = scmp.eq.s32.totalorder %s46, 0
      %p125 = por %p123, %p124
      %p126 = scmp.ne.s32.totalorder %s115, %s118
      %p127 = scmp.eq.s32.totalorder %s51, 7
      %p128 = por %p126, %p127
      %p129 = scmp.ne.s32.totalorder %s118, %s119
      %p130 = scmp.eq.s32.totalorder %s51, 0
      %p131 = por %p129, %p130
      %p132 = scmp.ne.s32.totalorder %s118, %s119
      %p133 = scmp.eq.s32.totalorder %s52, 7
      %p134 = por %p132, %p133
      %p136 = scmp.ne.s32.totalorder %s119, %s135
      %p137 = scmp.eq.s32.totalorder %s52, 0
      %p138 = por %p136, %p137
      %s139 = ssub.s32 %s53, %s65
      %p140 = scmp.eq.s32.totalorder %s139, 0
      %s142 = sadd.s32 %s141, 1
      %s143 = scalar_select %p140, %s141, %s142
      %p146 = pneg %p140
      %p147 = scmp.eq.s32.totalorder %s46, 7
      %p148 = por %p146, %p147
      %p149 = scmp.ne.s32.totalorder %s141, %s144
      %p150 = scmp.eq.s32.totalorder %s46, 0
      %p151 = por %p149, %p150
      %p152 = scmp.ne.s32.totalorder %s141, %s144
      %p153 = scmp.eq.s32.totalorder %s51, 7
      %p154 = por %p152, %p153
      %p155 = scmp.ne.s32.totalorder %s144, %s145
      %p156 = scmp.eq.s32.totalorder %s51, 0
      %p157 = por %p155, %p156
      %p158 = scmp.ne.s32.totalorder %s144, %s145
      %p159 = scmp.eq.s32.totalorder %s52, 7
      %p160 = por %p158, %p159
      %p162 = scmp.ne.s32.totalorder %s145, %s161
      %p163 = scmp.eq.s32.totalorder %s52, 0
      %p164 = por %p162, %p163
      %s165 = ssub.s32 %s53, %s65
      %p166 = scmp.eq.s32.totalorder %s165, 0
      %s168 = sadd.s32 %s167, 1
      %s169 = scalar_select %p166, %s167, %s168
      %p172 = pneg %p166
      %p173 = scmp.eq.s32.totalorder %s46, 7
      %p174 = por %p172, %p173
      %p175 = scmp.ne.s32.totalorder %s167, %s170
      %p176 = scmp.eq.s32.totalorder %s46, 0
      %p177 = por %p175, %p176
      %p178 = scmp.ne.s32.totalorder %s167, %s170
      %p179 = scmp.eq.s32.totalorder %s51, 7
      %p180 = por %p178, %p179
      %p181 = scmp.ne.s32.totalorder %s170, %s171
      %p182 = scmp.eq.s32.totalorder %s51, 0
      %p183 = por %p181, %p182
      %p184 = scmp.ne.s32.totalorder %s170, %s171
      %p185 = scmp.eq.s32.totalorder %s52, 7
      %p186 = por %p184, %p185
      %p188 = scmp.ne.s32.totalorder %s171, %s187
      %p189 = scmp.eq.s32.totalorder %s52, 0
      %p190 = por %p188, %p189
      %s191 = ssub.s32 %s54, %s61
      %p192 = scmp.eq.s32.totalorder %s191, 0
      %s194 = sadd.s32 %s193, 1
      %s195 = scalar_select %p192, %s193, %s194
      %p198 = pneg %p192
      %p199 = scmp.eq.s32.totalorder %s46, 7
      %p200 = por %p198, %p199
      %p201 = scmp.ne.s32.totalorder %s193, %s196
      %p202 = scmp.eq.s32.totalorder %s46, 0
      %p203 = por %p201, %p202
      %p204 = scmp.ne.s32.totalorder %s193, %s196
      %p205 = scmp.eq.s32.totalorder %s51, 7
      %p206 = por %p204, %p205
      %p207 = scmp.ne.s32.totalorder %s196, %s197
      %p208 = scmp.eq.s32.totalorder %s51, 0
      %p209 = por %p207, %p208
      %p210 = scmp.ne.s32.totalorder %s196, %s197
      %p211 = scmp.eq.s32.totalorder %s52, 7
      %p212 = por %p210, %p211
      %p214 = scmp.ne.s32.totalorder %s197, %s213
      %p215 = scmp.eq.s32.totalorder %s52, 0
      %p216 = por %p214, %p215
      %s217 = ssub.s32 %s54, %s61
      %p218 = scmp.eq.s32.totalorder %s217, 0
      %s220 = sadd.s32 %s219, 1
      %s221 = scalar_select %p218, %s219, %s220
      %p224 = pneg %p218
      %p225 = scmp.eq.s32.totalorder %s46, 7
      %p226 = por %p224, %p225
      %p227 = scmp.ne.s32.totalorder %s219, %s222
      %p228 = scmp.eq.s32.totalorder %s46, 0
      %p229 = por %p227, %p228
      %p230 = scmp.ne.s32.totalorder %s219, %s222
      %p231 = scmp.eq.s32.totalorder %s51, 7
      %p232 = por %p230, %p231
      %p233 = scmp.ne.s32.totalorder %s222, %s223
      %p234 = scmp.eq.s32.totalorder %s51, 0
      %p235 = por %p233, %p234
      %p236 = scmp.ne.s32.totalorder %s222, %s223
      %p237 = scmp.eq.s32.totalorder %s52, 7
      %p238 = por %p236, %p237
      %p240 = scmp.ne.s32.totalorder %s223, %s239
      %p241 = scmp.eq.s32.totalorder %s52, 0
      %p242 = por %p240, %p241
      %s243 = ssub.s32 %s54, %s61
      %p244 = scmp.eq.s32.totalorder %s243, 0
      %s246 = sadd.s32 %s245, 1
      %s247 = scalar_select %p244, %s245, %s246
      %p250 = pneg %p244
      %p251 = scmp.eq.s32.totalorder %s46, 7
      %p252 = por %p250, %p251
      %p253 = scmp.ne.s32.totalorder %s245, %s248
      %p254 = scmp.eq.s32.totalorder %s46, 0
      %p255 = por %p253, %p254
      %p256 = scmp.ne.s32.totalorder %s245, %s248
      %p257 = scmp.eq.s32.totalorder %s51, 7
      %p258 = por %p256, %p257
      %p259 = scmp.ne.s32.totalorder %s248, %s249
      %p260 = scmp.eq.s32.totalorder %s51, 0
      %p261 = por %p259, %p260
      %p262 = scmp.ne.s32.totalorder %s248, %s249
      %p263 = scmp.eq.s32.totalorder %s52, 7
      %p264 = por %p262, %p263
      %p266 = scmp.ne.s32.totalorder %s249, %s265
      %p267 = scmp.eq.s32.totalorder %s52, 0
      %p268 = por %p266, %p267
      %s269 = ssub.s32 %s54, %s61
      %p270 = scmp.eq.s32.totalorder %s269, 0
      %s272 = sadd.s32 %s271, 1
      %s273 = scalar_select %p270, %s271, %s272
      %p276 = pneg %p270
      %p277 = scmp.eq.s32.totalorder %s46, 7
      %p278 = por %p276, %p277
      %p279 = scmp.ne.s32.totalorder %s271, %s274
      %p280 = scmp.eq.s32.totalorder %s46, 0
      %p281 = por %p279, %p280
      %p282 = scmp.ne.s32.totalorder %s271, %s274
      %p283 = scmp.eq.s32.totalorder %s51, 7
      %p284 = por %p282, %p283
      %p285 = scmp.ne.s32.totalorder %s274, %s275
      %p286 = scmp.eq.s32.totalorder %s51, 0
      %p287 = por %p285, %p286
      %p288 = scmp.ne.s32.totalorder %s274, %s275
      %p289 = scmp.eq.s32.totalorder %s52, 7
      %p290 = por %p288, %p289
      %p292 = scmp.ne.s32.totalorder %s275, %s291
      %p293 = scmp.eq.s32.totalorder %s52, 0
      %p294 = por %p292, %p293
      %s295 = ssub.s32 %s54, %s61
      %p296 = scmp.eq.s32.totalorder %s295, 0
      %s298 = sadd.s32 %s297, 1
      %s299 = scalar_select %p296, %s297, %s298
      %p302 = pneg %p296
      %p303 = scmp.eq.s32.totalorder %s46, 7
      %p304 = por %p302, %p303
      %p305 = scmp.ne.s32.totalorder %s297, %s300
      %p306 = scmp.eq.s32.totalorder %s46, 0
      %p307 = por %p305, %p306
      %p308 = scmp.ne.s32.totalorder %s297, %s300
      %p309 = scmp.eq.s32.totalorder %s51, 7
      %p310 = por %p308, %p309
      %p311 = scmp.ne.s32.totalorder %s300, %s301
      %p312 = scmp.eq.s32.totalorder %s51, 0
      %p313 = por %p311, %p312
      %p314 = scmp.ne.s32.totalorder %s300, %s301
      %p315 = scmp.eq.s32.totalorder %s52, 7
      %p316 = por %p314, %p315
      %p318 = scmp.ne.s32.totalorder %s301, %s317
      %p319 = scmp.eq.s32.totalorder %s52, 0
      %p320 = por %p318, %p319
      %s322 = sadd.s32 %s321, 1
      %p325 = scmp.eq.s32.totalorder %s46, 7
      %p326 = scmp.ne.s32.totalorder %s321, %s323
      %p327 = scmp.eq.s32.totalorder %s46, 0
      %p328 = por %p326, %p327
      %p329 = scmp.ne.s32.totalorder %s321, %s323
      %p330 = scmp.eq.s32.totalorder %s51, 7
      %p331 = por %p329, %p330
      %p332 = scmp.ne.s32.totalorder %s323, %s324
      %p333 = scmp.eq.s32.totalorder %s51, 0
      %p334 = por %p332, %p333
      %p335 = scmp.ne.s32.totalorder %s323, %s324
      %p336 = scmp.eq.s32.totalorder %s52, 7
      %p337 = por %p335, %p336
      %p339 = scmp.ne.s32.totalorder %s324, %s338
      %p340 = scmp.eq.s32.totalorder %s52, 0
      %p341 = por %p339, %p340
      %s343 = sadd.s32 %s342, 1
      %p346 = scmp.eq.s32.totalorder %s46, 7
      %p347 = scmp.ne.s32.totalorder %s342, %s344
      %p348 = scmp.eq.s32.totalorder %s46, 0
      %p349 = por %p347, %p348
      %p350 = scmp.ne.s32.totalorder %s342, %s344
      %p351 = scmp.eq.s32.totalorder %s51, 7
      %p352 = por %p350, %p351
      %p353 = scmp.ne.s32.totalorder %s344, %s345
      %p354 = scmp.eq.s32.totalorder %s51, 0
      %p355 = por %p353, %p354
      %p356 = scmp.ne.s32.totalorder %s344, %s345
      %p357 = scmp.eq.s32.totalorder %s52, 7
      %p358 = por %p356, %p357
      %p360 = scmp.ne.s32.totalorder %s345, %s359
      %p361 = scmp.eq.s32.totalorder %s52, 0
      %p362 = por %p360, %p361
      %s364 = sadd.s32 %s363, 1
      %p367 = scmp.eq.s32.totalorder %s46, 7
      %p368 = scmp.ne.s32.totalorder %s363, %s365
      %p369 = scmp.eq.s32.totalorder %s46, 0
      %p370 = por %p368, %p369
      %p371 = scmp.ne.s32.totalorder %s363, %s365
      %p372 = scmp.eq.s32.totalorder %s51, 7
      %p373 = por %p371, %p372
      %p374 = scmp.ne.s32.totalorder %s365, %s366
      %p375 = scmp.eq.s32.totalorder %s51, 0
      %p376 = por %p374, %p375
      %p377 = scmp.ne.s32.totalorder %s365, %s366
      %p378 = scmp.eq.s32.totalorder %s52, 7
      %p379 = por %p377, %p378
      %p381 = scmp.ne.s32.totalorder %s366, %s380
      %p382 = scmp.eq.s32.totalorder %s52, 0
      %p383 = por %p381, %p382
      %s385 = sadd.s32 %s384, 1
      %p388 = scmp.eq.s32.totalorder %s46, 7
      %p389 = scmp.ne.s32.totalorder %s384, %s386
      %p390 = scmp.eq.s32.totalorder %s46, 0
      %p391 = por %p389, %p390
      %p392 = scmp.ne.s32.totalorder %s384, %s386
      %p393 = scmp.eq.s32.totalorder %s51, 7
      %p394 = por %p392, %p393
      %p395 = scmp.ne.s32.totalorder %s386, %s387
      %p396 = scmp.eq.s32.totalorder %s51, 0
      %p397 = por %p395, %p396
      %p398 = scmp.ne.s32.totalorder %s386, %s387
      %p399 = scmp.eq.s32.totalorder %s52, 7
      %p400 = por %p398, %p399
      %p402 = scmp.ne.s32.totalorder %s387, %s401
      %p403 = scmp.eq.s32.totalorder %s52, 0
      %p404 = por %p402, %p403
      %s406 = sadd.s32 %s405, 1
      %p409 = scmp.eq.s32.totalorder %s46, 7
      %p410 = scmp.ne.s32.totalorder %s405, %s407
      %p411 = scmp.eq.s32.totalorder %s46, 0
      %p412 = por %p410, %p411
      %p413 = scmp.ne.s32.totalorder %s405, %s407
      %p414 = scmp.eq.s32.totalorder %s51, 7
      %p415 = por %p413, %p414
      %p416 = scmp.ne.s32.totalorder %s407, %s408
      %p417 = scmp.eq.s32.totalorder %s51, 0
      %p418 = por %p416, %p417
      %p419 = scmp.ne.s32.totalorder %s407, %s408
      %p420 = scmp.eq.s32.totalorder %s52, 7
      %p421 = por %p419, %p420
      %p423 = scmp.ne.s32.totalorder %s408, %s422
      %p424 = scmp.eq.s32.totalorder %s52, 0
      %p425 = por %p423, %p424
      %s427 = sadd.s32 %s426, 1
      %p430 = scmp.eq.s32.totalorder %s46, 7
      %p431 = scmp.ne.s32.totalorder %s426, %s428
      %p432 = scmp.eq.s32.totalorder %s46, 0
      %p433 = por %p431, %p432
      %p434 = scmp.ne.s32.totalorder %s426, %s428
      %p435 = scmp.eq.s32.totalorder %s51, 7
      %p436 = por %p434, %p435
      %p437 = scmp.ne.s32.totalorder %s428, %s429
      %p438 = scmp.eq.s32.totalorder %s51, 0
      %p439 = por %p437, %p438
      %p440 = scmp.ne.s32.totalorder %s428, %s429
      %p441 = scmp.eq.s32.totalorder %s52, 7
      %p442 = por %p440, %p441
      %p444 = scmp.ne.s32.totalorder %s429, %s443
      %p445 = scmp.eq.s32.totalorder %s52, 0
      %p446 = por %p444, %p445
      %s448 = sadd.s32 %s447, 1
      %p451 = scmp.eq.s32.totalorder %s46, 7
      %p452 = scmp.ne.s32.totalorder %s447, %s449
      %p453 = scmp.eq.s32.totalorder %s46, 0
      %p454 = por %p452, %p453
      %p455 = scmp.ne.s32.totalorder %s447, %s449
      %p456 = scmp.eq.s32.totalorder %s51, 7
      %p457 = por %p455, %p456
      %p458 = scmp.ne.s32.totalorder %s449, %s450
      %p459 = scmp.eq.s32.totalorder %s51, 0
      %p460 = por %p458, %p459
      %p461 = scmp.ne.s32.totalorder %s449, %s450
      %p462 = scmp.eq.s32.totalorder %s52, 7
      %p463 = por %p461, %p462
      %p465 = scmp.ne.s32.totalorder %s450, %s464
      %p466 = scmp.eq.s32.totalorder %s52, 0
      %p467 = por %p465, %p466
      %s468 = ssub.s32 %s53, %s65
      %p469 = scmp.eq.s32.totalorder %s468, 0
      %s471 = sadd.s32 %s470, 1
      %s472 = scalar_select %p469, %s470, %s471
      %p475 = pneg %p469
      %p476 = scmp.eq.s32.totalorder %s46, 7
      %p477 = por %p475, %p476
      %p478 = scmp.ne.s32.totalorder %s470, %s473
      %p479 = scmp.eq.s32.totalorder %s46, 0
      %p480 = por %p478, %p479
      %p481 = scmp.ne.s32.totalorder %s470, %s473
      %p482 = scmp.eq.s32.totalorder %s51, 7
      %p483 = por %p481, %p482
      %p484 = scmp.ne.s32.totalorder %s473, %s474
      %p485 = scmp.eq.s32.totalorder %s51, 0
      %p486 = por %p484, %p485
      %p487 = scmp.ne.s32.totalorder %s473, %s474
      %p488 = scmp.eq.s32.totalorder %s52, 7
      %p489 = por %p487, %p488
      %p491 = scmp.ne.s32.totalorder %s474, %s490
      %p492 = scmp.eq.s32.totalorder %s52, 0
      %p493 = por %p491, %p492
      %s494 = ssub.s32 %s53, %s65
      %s495 = ssub.s32 %s54, %s61
      %s496 = sor.u32 %s494, %s495
      %p497 = scmp.eq.s32.totalorder %s496, 0
      %s499 = sadd.s32 %s498, 1
      %s500 = scalar_select %p497, %s498, %s499
      %p503 = pneg %p497
      %p504 = scmp.eq.s32.totalorder %s46, 7
      %p505 = por %p503, %p504
      %p506 = scmp.ne.s32.totalorder %s498, %s501
      %p507 = scmp.eq.s32.totalorder %s46, 0
      %p508 = por %p506, %p507
      %p509 = scmp.ne.s32.totalorder %s498, %s501
      %p510 = scmp.eq.s32.totalorder %s51, 7
      %p511 = por %p509, %p510
      %p512 = scmp.ne.s32.totalorder %s501, %s502
      %p513 = scmp.eq.s32.totalorder %s51, 0
      %p514 = por %p512, %p513
      %p515 = scmp.ne.s32.totalorder %s501, %s502
      %p516 = scmp.eq.s32.totalorder %s52, 7
      %p517 = por %p515, %p516
      %p519 = scmp.ne.s32.totalorder %s502, %s518
      %p520 = scmp.eq.s32.totalorder %s52, 0
      %p521 = por %p519, %p520
      %p522 = scmp.le.s32.totalorder 1, %s46
      %p523 = scmp.lt.s32.totalorder %s46, 9
      %p524 = pnand %p522, %p523
      %p525 = pneg %p524
      // Predicated region
      $region9: #{tpu_custom_call.1} parent=5 // pred_check
        _
      $region10: #{tpu_custom_call.1} parent=5 // pred_check_branch
        %527 = sbr.rel (%p524) target = $region12
      $region11: #{tpu_custom_call.1} parent=5 // pred_region
        %s528 = ssub.s32 %s46, 1
        // Predicated region
        $region13: #{tpu_custom_call.1} parent=11 // pred_check
          %p529 = pneg %p79
        $region14: #{tpu_custom_call.1} parent=11 // pred_check_branch
          %531 = sbr.rel (%p529) target = $region16
        $region15: #{tpu_custom_call.1} parent=11 // pred_region
          %s533 = ssub.s32 16, 16
          %534 = vsyncadd [#allocation6], %s533
          %537 = dma.hbm_to_smem %s0, 16, [#allocation3], [#allocation6]
        $region16: #{tpu_custom_call.1} parent=11 // pred_fallthru
          _
        // Predicated region
        $region17: #{tpu_custom_call.1} parent=11 // pred_check
          %p538 = pneg %p334
        $region18: #{tpu_custom_call.1} parent=11 // pred_check_branch
          %540 = sbr.rel (%p538) target = $region20
        $region19: #{tpu_custom_call.1} parent=11 // pred_region
          _
        $region20: #{tpu_custom_call.1} parent=11 // pred_fallthru
          _
        // Predicated region
        $region21: #{tpu_custom_call.1} parent=11 // pred_check
          %p541 = pneg %p355
        $region22: #{tpu_custom_call.1} parent=11 // pred_check_branch
          %543 = sbr.rel (%p541) target = $region24
        $region23: #{tpu_custom_call.1} parent=11 // pred_region
          _
        $region24: #{tpu_custom_call.1} parent=11 // pred_fallthru
          _
        // Predicated region
        $region25: #{tpu_custom_call.1} parent=11 // pred_check
          %p544 = pneg %p376
        $region26: #{tpu_custom_call.1} parent=11 // pred_check_branch
          %546 = sbr.rel (%p544) target = $region28
        $region27: #{tpu_custom_call.1} parent=11 // pred_region
          _
        $region28: #{tpu_custom_call.1} parent=11 // pred_fallthru
          _
        // Predicated region
        $region29: #{tpu_custom_call.1} parent=11 // pred_check
          %p547 = pneg %p397
        $region30: #{tpu_custom_call.1} parent=11 // pred_check_branch
          %549 = sbr.rel (%p547) target = $region32
        $region31: #{tpu_custom_call.1} parent=11 // pred_region
          %s551 = ssub.s32 2048, 2048
          %552 = vsyncadd [#allocation18], %s551
          %s553 = sshll.u32 [#allocation17], 4
          %s554 = int_to_ptr.vmem [resolvable:$true] %s553
          %559 = dma.hbm_to_vmem [thread:$0]  %s13, 2048, %s554, [#allocation18], 128, 128, 8
        $region32: #{tpu_custom_call.1} parent=11 // pred_fallthru
          _
        // Predicated region
        $region33: #{tpu_custom_call.1} parent=11 // pred_check
          %p560 = pneg %p418
        $region34: #{tpu_custom_call.1} parent=11 // pred_check_branch
          %562 = sbr.rel (%p560) target = $region36
        $region35: #{tpu_custom_call.1} parent=11 // pred_region
          %s564 = ssub.s32 2048, 2048
          %565 = vsyncadd [#allocation18], %s564
          %s566 = sshll.u32 [#allocation19], 4
          %s567 = int_to_ptr.vmem [resolvable:$true] %s566
          %572 = dma.hbm_to_vmem [thread:$0]  %s14, 2048, %s567, [#allocation18], 128, 128, 8
        $region36: #{tpu_custom_call.1} parent=11 // pred_fallthru
          _
        // Predicated region
        $region37: #{tpu_custom_call.1} parent=11 // pred_check
          %p573 = pneg %p439
        $region38: #{tpu_custom_call.1} parent=11 // pred_check_branch
          %575 = sbr.rel (%p573) target = $region40
        $region39: #{tpu_custom_call.1} parent=11 // pred_region
          %s577 = ssub.s32 2048, 2048
          %578 = vsyncadd [#allocation21], %s577
          %s579 = sshll.u32 [#allocation20], 4
          %s580 = int_to_ptr.vmem [resolvable:$true] %s579
          %585 = dma.hbm_to_vmem [thread:$0]  %s15, 2048, %s580, [#allocation21], 128, 128, 8
        $region40: #{tpu_custom_call.1} parent=11 // pred_fallthru
          _
        // Predicated region
        $region41: #{tpu_custom_call.1} parent=11 // pred_check
          %p586 = pneg %p460
        $region42: #{tpu_custom_call.1} parent=11 // pred_check_branch
          %588 = sbr.rel (%p586) target = $region44
        $region43: #{tpu_custom_call.1} parent=11 // pred_region
          %s590 = ssub.s32 1024, 1024
          %591 = vsyncadd [#allocation21], %s590
          %s592 = sshll.u32 [#allocation22], 4
          %s593 = int_to_ptr.vmem [resolvable:$true] %s592
          %598 = dma.hbm_to_vmem [thread:$0]  %s16, 1024, %s593, [#allocation21], 64, 64, 4
        $region44: #{tpu_custom_call.1} parent=11 // pred_fallthru
          _
      $region12: #{tpu_custom_call.1} parent=5 // pred_fallthru
        _
      %p599 = scmp.lt.s32.totalorder %s46, 8
      // Predicated region
      $region45: #{tpu_custom_call.1} parent=5 // pred_check
        %p600 = pneg %p599
      $region46: #{tpu_custom_call.1} parent=5 // pred_check_branch
        %602 = sbr.rel (%p600) target = $region48
      $region47: #{tpu_custom_call.1} parent=5 // pred_region
        // Predicated region
        $region49: #{tpu_custom_call.1} parent=47 // pred_check
          %p603 = pneg %p99
        $region50: #{tpu_custom_call.1} parent=47 // pred_check_branch
          %605 = sbr.rel (%p603) target = $region52
        $region51: #{tpu_custom_call.1} parent=47 // pred_region
          %s606 = sand.u32 %s89, 1
          %s607 = scalar_lea.sflag [#allocation4], %s606
          %s608 = sand.u32 %s89, 1
          %s609 = smul.addr %s608, 64
          %s610 = scalar_lea.vmem [#allocation7], %s609
          %s612 = ssub.s32 1024, 1024
          %613 = vsyncadd %s607, %s612
          %s614 = smul.addr %s53, 16
          %s615 = smul.addr %s614, 64
          %s616 = scalar_lea.hbm %s1, %s615
          %s617 = sshll.u32 %s610, 4
          %s618 = int_to_ptr.vmem [resolvable:$true] %s617
          %623 = dma.hbm_to_vmem [thread:$0]  %s616, 1024, %s618, %s607, 64, 64, 4
        $region52: #{tpu_custom_call.1} parent=47 // pred_fallthru
          _
        // Predicated region
        $region53: #{tpu_custom_call.1} parent=47 // pred_check
          %p624 = pneg %p125
        $region54: #{tpu_custom_call.1} parent=47 // pred_check_branch
          %626 = sbr.rel (%p624) target = $region56
        $region55: #{tpu_custom_call.1} parent=47 // pred_region
          %s627 = sand.u32 %s46, 1
          %s628 = scalar_lea.sflag [#allocation9], %s627
          %s629 = sand.u32 %s115, 1
          %s630 = smul.addr %s629, 64
          %s631 = scalar_lea.vmem [#allocation8], %s630
          %s633 = ssub.s32 1024, 1024
          %634 = vsyncadd %s628, %s633
          %s635 = smul.addr %s53, 16
          %s636 = smul.addr %s635, 64
          %s637 = scalar_lea.hbm %s2, %s636
          %s638 = sshll.u32 %s631, 4
          %s639 = int_to_ptr.vmem [resolvable:$true] %s638
          %644 = dma.hbm_to_vmem [thread:$0]  %s637, 1024, %s639, %s628, 64, 64, 4
        $region56: #{tpu_custom_call.1} parent=47 // pred_fallthru
          _
        // Predicated region
        $region57: #{tpu_custom_call.1} parent=47 // pred_check
          %p645 = pneg %p151
        $region58: #{tpu_custom_call.1} parent=47 // pred_check_branch
          %647 = sbr.rel (%p645) target = $region60
        $region59: #{tpu_custom_call.1} parent=47 // pred_region
          %s648 = sand.u32 %s46, 1
          %s649 = scalar_lea.sflag [#allocation9], %s648
          %s650 = sand.u32 %s141, 1
          %s651 = smul.addr %s650, 64
          %s652 = scalar_lea.vmem [#allocation10], %s651
          %s654 = ssub.s32 1024, 1024
          %655 = vsyncadd %s649, %s654
          %s656 = smul.addr %s53, 16
          %s657 = smul.addr %s656, 64
          %s658 = scalar_lea.hbm %s3, %s657
          %s659 = sshll.u32 %s652, 4
          %s660 = int_to_ptr.vmem [resolvable:$true] %s659
          %665 = dma.hbm_to_vmem [thread:$0]  %s658, 1024, %s660, %s649, 64, 64, 4
        $region60: #{tpu_custom_call.1} parent=47 // pred_fallthru
          _
        // Predicated region
        $region61: #{tpu_custom_call.1} parent=47 // pred_check
          %p666 = pneg %p177
        $region62: #{tpu_custom_call.1} parent=47 // pred_check_branch
          %668 = sbr.rel (%p666) target = $region64
        $region63: #{tpu_custom_call.1} parent=47 // pred_region
          %s669 = sand.u32 %s46, 1
          %s670 = scalar_lea.sflag [#allocation12], %s669
          %s671 = sand.u32 %s167, 1
          %s672 = smul.addr %s671, 128
          %s673 = scalar_lea.vmem [#allocation11], %s672
          %s675 = ssub.s32 2048, 2048
          %676 = vsyncadd %s670, %s675
          %s677 = smul.addr %s53, 16
          %s678 = smul.addr %s677, 128
          %s679 = scalar_lea.hbm %s4, %s678
          %s680 = sshll.u32 %s673, 4
          %s681 = int_to_ptr.vmem [resolvable:$true] %s680
          %686 = dma.hbm_to_vmem [thread:$0]  %s679, 2048, %s681, %s670, 128, 128, 8
        $region64: #{tpu_custom_call.1} parent=47 // pred_fallthru
          _
        // Predicated region
        $region65: #{tpu_custom_call.1} parent=47 // pred_check
          %p687 = pneg %p203
        $region66: #{tpu_custom_call.1} parent=47 // pred_check_branch
          %689 = sbr.rel (%p687) target = $region68
        $region67: #{tpu_custom_call.1} parent=47 // pred_region
          %s690 = sand.u32 %s46, 1
          %s691 = scalar_lea.sflag [#allocation12], %s690
          %s692 = sand.u32 %s193, 1
          %s693 = smul.addr %s692, 64
          %s694 = scalar_lea.vmem [#allocation13], %s693
          %s696 = ssub.s32 1024, 1024
          %697 = vsyncadd %s691, %s696
          %s698 = smul.addr %s54, 16
          %s699 = smul.addr %s698, 64
          %s700 = scalar_lea.hbm %s5, %s699
          %s701 = sshll.u32 %s694, 4
          %s702 = int_to_ptr.vmem [resolvable:$true] %s701
          %707 = dma.hbm_to_vmem [thread:$0]  %s700, 1024, %s702, %s691, 64, 64, 4
        $region68: #{tpu_custom_call.1} parent=47 // pred_fallthru
          _
        // Predicated region
        $region69: #{tpu_custom_call.1} parent=47 // pred_check
          %p708 = pneg %p229
        $region70: #{tpu_custom_call.1} parent=47 // pred_check_branch
          %710 = sbr.rel (%p708) target = $region72
        $region71: #{tpu_custom_call.1} parent=47 // pred_region
          %p711 = scmp.lt.s32.totalorder %s54, 3
          %s712 = scalar_select %p711, %s54, 3
          %s713 = scalar_lea.vmem %s6, %s712
        $region72: #{tpu_custom_call.1} parent=47 // pred_fallthru
          _
        // Predicated region
        $region73: #{tpu_custom_call.1} parent=47 // pred_check
          %p714 = pneg %p255
        $region74: #{tpu_custom_call.1} parent=47 // pred_check_branch
          %716 = sbr.rel (%p714) target = $region76
        $region75: #{tpu_custom_call.1} parent=47 // pred_region
          %s717 = sand.u32 %s46, 1
          %s718 = scalar_lea.sflag [#allocation15], %s717
          %s719 = sand.u32 %s245, 1
          %s720 = smul.addr %s719, 64
          %s721 = scalar_lea.vmem [#allocation14], %s720
          %s723 = ssub.s32 1024, 1024
          %724 = vsyncadd %s718, %s723
          %s725 = smul.addr %s54, 16
          %s726 = smul.addr %s725, 64
          %s727 = scalar_lea.hbm %s7, %s726
          %s728 = sshll.u32 %s721, 4
          %s729 = int_to_ptr.vmem [resolvable:$true] %s728
          %734 = dma.hbm_to_vmem [thread:$0]  %s727, 1024, %s729, %s718, 64, 64, 4
        $region76: #{tpu_custom_call.1} parent=47 // pred_fallthru
          _
        // Predicated region
        $region77: #{tpu_custom_call.1} parent=47 // pred_check
          %p735 = pneg %p281
        $region78: #{tpu_custom_call.1} parent=47 // pred_check_branch
          %737 = sbr.rel (%p735) target = $region80
        $region79: #{tpu_custom_call.1} parent=47 // pred_region
          %p738 = scmp.lt.s32.totalorder %s54, 3
          %s739 = scalar_select %p738, %s54, 3
          %s740 = scalar_lea.vmem %s8, %s739
        $region80: #{tpu_custom_call.1} parent=47 // pred_fallthru
          _
        // Predicated region
        $region81: #{tpu_custom_call.1} parent=47 // pred_check
          %p741 = pneg %p307
        $region82: #{tpu_custom_call.1} parent=47 // pred_check_branch
          %743 = sbr.rel (%p741) target = $region84
        $region83: #{tpu_custom_call.1} parent=47 // pred_region
          %s744 = sand.u32 %s46, 1
          %s745 = scalar_lea.sflag [#allocation15], %s744
          %s746 = sand.u32 %s297, 1
          %s747 = smul.addr %s746, 64
          %s748 = scalar_lea.vmem [#allocation16], %s747
          %s750 = ssub.s32 1024, 1024
          %751 = vsyncadd %s745, %s750
          %s752 = smul.addr %s54, 16
          %s753 = smul.addr %s752, 64
          %s754 = scalar_lea.hbm %s9, %s753
          %s755 = sshll.u32 %s748, 4
          %s756 = int_to_ptr.vmem [resolvable:$true] %s755
          %761 = dma.hbm_to_vmem [thread:$0]  %s754, 1024, %s756, %s745, 64, 64, 4
        $region84: #{tpu_custom_call.1} parent=47 // pred_fallthru
          _
      $region48: #{tpu_custom_call.1} parent=5 // pred_fallthru
        _
      %p762 = scmp.le.s32.totalorder 1, %s46
      %p763 = scmp.lt.s32.totalorder %s46, 9
      %p764 = pnand %p762, %p763
      %p765 = pneg %p764
      // Predicated region
      $region85: #{tpu_custom_call.1} parent=5 // pred_check
        _
      $region86: #{tpu_custom_call.1} parent=5 // pred_check_branch
        %767 = sbr.rel (%p764) target = $region88
      $region87: #{tpu_custom_call.1} parent=5 // pred_region
        %s768 = ssub.s32 %s46, 1
        // Predicated region
        $region89: #{tpu_custom_call.1} parent=87 // pred_check
          %p769 = pneg %p79
        $region90: #{tpu_custom_call.1} parent=87 // pred_check_branch
          %771 = sbr.rel (%p769) target = $region92
        $region91: #{tpu_custom_call.1} parent=87 // pred_region
          %772 = dma.done [#allocation6], 16
        $region92: #{tpu_custom_call.1} parent=87 // pred_fallthru
          _
        %s773 = sand.u32 %s92, 1
        %s774 = scalar_lea.sflag [#allocation4], %s773
        %s775 = sand.u32 %s92, 1
        %s776 = smul.addr %s775, 64
        %s777 = scalar_lea.vmem [#allocation7], %s776
        // Predicated region
        $region93: #{tpu_custom_call.1} parent=87 // pred_check
          %p778 = pneg %p105
        $region94: #{tpu_custom_call.1} parent=87 // pred_check_branch
          %780 = sbr.rel (%p778) target = $region96
        $region95: #{tpu_custom_call.1} parent=87 // pred_region
          %781 = dma.done %s774, 1024
        $region96: #{tpu_custom_call.1} parent=87 // pred_fallthru
          _
        %s782 = sand.u32 %s51, 1
        %s783 = scalar_lea.sflag [#allocation9], %s782
        %s784 = sand.u32 %s118, 1
        %s785 = smul.addr %s784, 64
        %s786 = scalar_lea.vmem [#allocation8], %s785
        // Predicated region
        $region97: #{tpu_custom_call.1} parent=87 // pred_check
          %p787 = pneg %p131
        $region98: #{tpu_custom_call.1} parent=87 // pred_check_branch
          %789 = sbr.rel (%p787) target = $region100
        $region99: #{tpu_custom_call.1} parent=87 // pred_region
          %790 = dma.done %s783, 1024
        $region100: #{tpu_custom_call.1} parent=87 // pred_fallthru
          _
        %s791 = sand.u32 %s51, 1
        %s792 = scalar_lea.sflag [#allocation9], %s791
        %s793 = sand.u32 %s144, 1
        %s794 = smul.addr %s793, 64
        %s795 = scalar_lea.vmem [#allocation10], %s794
        // Predicated region
        $region101: #{tpu_custom_call.1} parent=87 // pred_check
          %p796 = pneg %p157
        $region102: #{tpu_custom_call.1} parent=87 // pred_check_branch
          %798 = sbr.rel (%p796) target = $region104
        $region103: #{tpu_custom_call.1} parent=87 // pred_region
          %799 = dma.done %s792, 1024
        $region104: #{tpu_custom_call.1} parent=87 // pred_fallthru
          _
        %s800 = sand.u32 %s51, 1
        %s801 = scalar_lea.sflag [#allocation12], %s800
        %s802 = sand.u32 %s170, 1
        %s803 = smul.addr %s802, 128
        %s804 = scalar_lea.vmem [#allocation11], %s803
        // Predicated region
        $region105: #{tpu_custom_call.1} parent=87 // pred_check
          %p805 = pneg %p183
        $region106: #{tpu_custom_call.1} parent=87 // pred_check_branch
          %807 = sbr.rel (%p805) target = $region108
        $region107: #{tpu_custom_call.1} parent=87 // pred_region
          %808 = dma.done %s801, 2048
        $region108: #{tpu_custom_call.1} parent=87 // pred_fallthru
          _
        %s809 = sand.u32 %s51, 1
        %s810 = scalar_lea.sflag [#allocation12], %s809
        %s811 = sand.u32 %s196, 1
        %s812 = smul.addr %s811, 64
        %s813 = scalar_lea.vmem [#allocation13], %s812
        // Predicated region
        $region109: #{tpu_custom_call.1} parent=87 // pred_check
          %p814 = pneg %p209
        $region110: #{tpu_custom_call.1} parent=87 // pred_check_branch
          %816 = sbr.rel (%p814) target = $region112
        $region111: #{tpu_custom_call.1} parent=87 // pred_region
          %817 = dma.done %s810, 1024
        $region112: #{tpu_custom_call.1} parent=87 // pred_fallthru
          _
        %s818 = sand.u32 %s51, 1
        %s819 = scalar_lea.sflag [#allocation15], %s818
        %s820 = sand.u32 %s248, 1
        %s821 = smul.addr %s820, 64
        %s822 = scalar_lea.vmem [#allocation14], %s821
        // Predicated region
        $region113: #{tpu_custom_call.1} parent=87 // pred_check
          %p823 = pneg %p261
        $region114: #{tpu_custom_call.1} parent=87 // pred_check_branch
          %825 = sbr.rel (%p823) target = $region116
        $region115: #{tpu_custom_call.1} parent=87 // pred_region
          %826 = dma.done %s819, 1024
        $region116: #{tpu_custom_call.1} parent=87 // pred_fallthru
          _
        %s827 = sand.u32 %s51, 1
        %s828 = scalar_lea.sflag [#allocation15], %s827
        %s829 = sand.u32 %s300, 1
        %s830 = smul.addr %s829, 64
        %s831 = scalar_lea.vmem [#allocation16], %s830
        // Predicated region
        $region117: #{tpu_custom_call.1} parent=87 // pred_check
          %p832 = pneg %p313
        $region118: #{tpu_custom_call.1} parent=87 // pred_check_branch
          %834 = sbr.rel (%p832) target = $region120
        $region119: #{tpu_custom_call.1} parent=87 // pred_region
          %835 = dma.done %s828, 1024
        $region120: #{tpu_custom_call.1} parent=87 // pred_fallthru
          _
        // Predicated region
        $region121: #{tpu_custom_call.1} parent=87 // pred_check
          %p836 = pneg %p397
        $region122: #{tpu_custom_call.1} parent=87 // pred_check_branch
          %838 = sbr.rel (%p836) target = $region124
        $region123: #{tpu_custom_call.1} parent=87 // pred_region
          %839 = dma.done [#allocation18], 2048
        $region124: #{tpu_custom_call.1} parent=87 // pred_fallthru
          _
        // Predicated region
        $region125: #{tpu_custom_call.1} parent=87 // pred_check
          %p840 = pneg %p418
        $region126: #{tpu_custom_call.1} parent=87 // pred_check_branch
          %842 = sbr.rel (%p840) target = $region128
        $region127: #{tpu_custom_call.1} parent=87 // pred_region
          %843 = dma.done [#allocation18], 2048
        $region128: #{tpu_custom_call.1} parent=87 // pred_fallthru
          _
        // Predicated region
        $region129: #{tpu_custom_call.1} parent=87 // pred_check
          %p844 = pneg %p439
        $region130: #{tpu_custom_call.1} parent=87 // pred_check_branch
          %846 = sbr.rel (%p844) target = $region132
        $region131: #{tpu_custom_call.1} parent=87 // pred_region
          %847 = dma.done [#allocation21], 2048
        $region132: #{tpu_custom_call.1} parent=87 // pred_fallthru
          _
        // Predicated region
        $region133: #{tpu_custom_call.1} parent=87 // pred_check
          %p848 = pneg %p460
        $region134: #{tpu_custom_call.1} parent=87 // pred_check_branch
          %850 = sbr.rel (%p848) target = $region136
        $region135: #{tpu_custom_call.1} parent=87 // pred_region
          %851 = dma.done [#allocation21], 1024
        $region136: #{tpu_custom_call.1} parent=87 // pred_fallthru
          _
        %852 = sfence
        %p853 = pneg %p79
        %p854 = pneg %p76
        %s855 = sand.u32 %s92, 1
        %s856 = scalar_lea.sflag [#allocation4], %s855
        %s857 = sand.u32 %s92, 1
        %s858 = smul.addr %s857, 64
        %s859 = scalar_lea.vmem [#allocation7], %s858
        %p860 = pneg %p105
        %p861 = pneg %p102
        %s862 = sand.u32 %s51, 1
        %s863 = scalar_lea.sflag [#allocation9], %s862
        %s864 = sand.u32 %s118, 1
        %s865 = smul.addr %s864, 64
        %s866 = scalar_lea.vmem [#allocation8], %s865
        %p867 = pneg %p131
        %p868 = pneg %p128
        %s869 = sand.u32 %s51, 1
        %s870 = scalar_lea.sflag [#allocation9], %s869
        %s871 = sand.u32 %s144, 1
        %s872 = smul.addr %s871, 64
        %s873 = scalar_lea.vmem [#allocation10], %s872
        %p874 = pneg %p157
        %p875 = pneg %p154
        %s876 = sand.u32 %s51, 1
        %s877 = scalar_lea.sflag [#allocation12], %s876
        %s878 = sand.u32 %s170, 1
        %s879 = smul.addr %s878, 128
        %s880 = scalar_lea.vmem [#allocation11], %s879
        %p881 = pneg %p183
        %p882 = pneg %p180
        %s883 = sand.u32 %s51, 1
        %s884 = scalar_lea.sflag [#allocation12], %s883
        %s885 = sand.u32 %s196, 1
        %s886 = smul.addr %s885, 64
        %s887 = scalar_lea.vmem [#allocation13], %s886
        %p888 = pneg %p209
        %p889 = pneg %p206
        %p890 = scmp.lt.s32.totalorder %s56, 3
        %s891 = scalar_select %p890, %s56, 3
        %s892 = scalar_lea.vmem %s6, %s891
        %p893 = pneg %p235
        %p894 = pneg %p232
        %s895 = sand.u32 %s51, 1
        %s896 = scalar_lea.sflag [#allocation15], %s895
        %s897 = sand.u32 %s248, 1
        %s898 = smul.addr %s897, 64
        %s899 = scalar_lea.vmem [#allocation14], %s898
        %p900 = pneg %p261
        %p901 = pneg %p258
        %p902 = scmp.lt.s32.totalorder %s56, 3
        %s903 = scalar_select %p902, %s56, 3
        %s904 = scalar_lea.vmem %s8, %s903
        %p905 = pneg %p287
        %p906 = pneg %p284
        %s907 = sand.u32 %s51, 1
        %s908 = scalar_lea.sflag [#allocation15], %s907
        %s909 = sand.u32 %s300, 1
        %s910 = smul.addr %s909, 64
        %s911 = scalar_lea.vmem [#allocation16], %s910
        %p912 = pneg %p313
        %p913 = pneg %p310
        %p914 = pneg %p334
        %p915 = pneg %p331
        %p916 = pneg %p355
        %p917 = pneg %p352
        %p918 = pneg %p376
        %p919 = pneg %p373
        %p920 = pneg %p397
        %p921 = pneg %p394
        %p922 = pneg %p418
        %p923 = pneg %p415
        %p924 = pneg %p439
        %p925 = pneg %p436
        %p926 = pneg %p460
        %p927 = pneg %p457
        %p928 = pneg %p486
        %p929 = pneg %p483
        %s930 = sand.u32 %s473, 1
        %s931 = scalar_lea.sflag [#allocation5], %s930
        %s932 = sand.u32 %s473, 1
        %s933 = smul.addr %s932, 128
        %s934 = scalar_lea.vmem [#allocation23], %s933
        %p935 = pneg %p514
        %p936 = pneg %p511
        %s937 = sand.u32 %s501, 1
        %s938 = scalar_lea.sflag [#allocation25], %s937
        %s939 = sand.u32 %s501, 1
        %s940 = smul.addr %s939, 64
        %s941 = scalar_lea.vmem [#allocation24], %s940
        %p942 = scmp.lt.s32.totalorder %s56, 3
        %s943 = scalar_select %p942, %s56, 3
        %s944 = scalar_lea.vmem %s6, %s943
        %p945 = scmp.lt.s32.totalorder %s56, 3
        %s946 = scalar_select %p945, %s56, 3
        %s947 = scalar_lea.vmem %s8, %s946
        %p949 = scmp.eq.s32.totalorder %s56, 0
        // Predicated region
        $region137: #{tpu_custom_call.1} parent=87 // pred_check
          %p950 = pneg %p949
        $region138: #{tpu_custom_call.1} parent=87 // pred_check_branch
          %952 = sbr.rel (%p950) target = $region140
        $region139: #{tpu_custom_call.1} parent=87 // pred_region
          %953 = vst [vmem:[#allocation2] sm:$0xff] 0.0
          %954 = vst [vmem:[#allocation2 + $0x8] sm:$0xff] 0.0
          %955 = vst [vmem:[#allocation2 + $0x10] sm:$0xff] 0.0
          %956 = vst [vmem:[#allocation2 + $0x18] sm:$0xff] 0.0
          %957 = vst [vmem:[#allocation2 + $0x20] sm:$0xff] 0.0
          %958 = vst [vmem:[#allocation2 + $0x28] sm:$0xff] 0.0
          %959 = vst [vmem:[#allocation2 + $0x30] sm:$0xff] 0.0
          %960 = vst [vmem:[#allocation2 + $0x38] sm:$0xff] 0.0
          %961 = vst [vmem:[#allocation2 + $0x40] sm:$0xff] 0.0
          %962 = vst [vmem:[#allocation2 + $0x48] sm:$0xff] 0.0
          %963 = vst [vmem:[#allocation2 + $0x50] sm:$0xff] 0.0
          %964 = vst [vmem:[#allocation2 + $0x58] sm:$0xff] 0.0
          %965 = vst [vmem:[#allocation2 + $0x60] sm:$0xff] 0.0
          %966 = vst [vmem:[#allocation2 + $0x68] sm:$0xff] 0.0
          %967 = vst [vmem:[#allocation2 + $0x70] sm:$0xff] 0.0
          %968 = vst [vmem:[#allocation2 + $0x78] sm:$0xff] 0.0
        $region140: #{tpu_custom_call.1} parent=87 // pred_fallthru
          _
        %v969 = vld [vmem:[%s777] sm:$0xf]
        %v970 = vld [vmem:[%s777 + $0x4] sm:$0xf]
        %v971 = vld [vmem:[%s777 + $0x8] sm:$0xf]
        %v972 = vld [vmem:[%s777 + $0xc] sm:$0xf]
        %v973 = vld [vmem:[%s777 + $0x10] sm:$0xf]
        %v974 = vld [vmem:[%s777 + $0x14] sm:$0xf]
        %v975 = vld [vmem:[%s777 + $0x18] sm:$0xf]
        %v976 = vld [vmem:[%s777 + $0x1c] sm:$0xf]
        %v977 = vld [vmem:[%s777 + $0x20] sm:$0xf]
        %v978 = vld [vmem:[%s777 + $0x24] sm:$0xf]
        %v979 = vld [vmem:[%s777 + $0x28] sm:$0xf]
        %v980 = vld [vmem:[%s777 + $0x2c] sm:$0xf]
        %v981 = vld [vmem:[%s777 + $0x30] sm:$0xf]
        %v982 = vld [vmem:[%s777 + $0x34] sm:$0xf]
        %v983 = vld [vmem:[%s777 + $0x38] sm:$0xf]
        %v984 = vld [vmem:[%s777 + $0x3c] sm:$0xf]
        %v985 = vld [vmem:[%s786] sm:$0xf]
        %v986 = vld [vmem:[%s786 + $0x4] sm:$0xf]
        %v987 = vld [vmem:[%s786 + $0x8] sm:$0xf]
        %v988 = vld [vmem:[%s786 + $0xc] sm:$0xf]
        %v989 = vld [vmem:[%s786 + $0x10] sm:$0xf]
        %v990 = vld [vmem:[%s786 + $0x14] sm:$0xf]
        %v991 = vld [vmem:[%s786 + $0x18] sm:$0xf]
        %v992 = vld [vmem:[%s786 + $0x1c] sm:$0xf]
        %v993 = vld [vmem:[%s786 + $0x20] sm:$0xf]
        %v994 = vld [vmem:[%s786 + $0x24] sm:$0xf]
        %v995 = vld [vmem:[%s786 + $0x28] sm:$0xf]
        %v996 = vld [vmem:[%s786 + $0x2c] sm:$0xf]
        %v997 = vld [vmem:[%s786 + $0x30] sm:$0xf]
        %v998 = vld [vmem:[%s786 + $0x34] sm:$0xf]
        %v999 = vld [vmem:[%s786 + $0x38] sm:$0xf]
        %v1000 = vld [vmem:[%s786 + $0x3c] sm:$0xf]
        %v1001 = vld [vmem:[%s795] sm:$0xf]
        %v1002 = vld [vmem:[%s795 + $0x4] sm:$0xf]
        %v1003 = vld [vmem:[%s795 + $0x8] sm:$0xf]
        %v1004 = vld [vmem:[%s795 + $0xc] sm:$0xf]
        %v1005 = vld [vmem:[%s795 + $0x10] sm:$0xf]
        %v1006 = vld [vmem:[%s795 + $0x14] sm:$0xf]
        %v1007 = vld [vmem:[%s795 + $0x18] sm:$0xf]
        %v1008 = vld [vmem:[%s795 + $0x1c] sm:$0xf]
        %v1009 = vld [vmem:[%s795 + $0x20] sm:$0xf]
        %v1010 = vld [vmem:[%s795 + $0x24] sm:$0xf]
        %v1011 = vld [vmem:[%s795 + $0x28] sm:$0xf]
        %v1012 = vld [vmem:[%s795 + $0x2c] sm:$0xf]
        %v1013 = vld [vmem:[%s795 + $0x30] sm:$0xf]
        %v1014 = vld [vmem:[%s795 + $0x34] sm:$0xf]
        %v1015 = vld [vmem:[%s795 + $0x38] sm:$0xf]
        %v1016 = vld [vmem:[%s795 + $0x3c] sm:$0xf]
        %v1017 = vld [vmem:[%s813] sm:$0xf]
        %v1018 = vld [vmem:[%s813 + $0x4] sm:$0xf]
        %v1019 = vld [vmem:[%s813 + $0x8] sm:$0xf]
        %v1020 = vld [vmem:[%s813 + $0xc] sm:$0xf]
        %v1021 = vld [vmem:[%s813 + $0x10] sm:$0xf]
        %v1022 = vld [vmem:[%s813 + $0x14] sm:$0xf]
        %v1023 = vld [vmem:[%s813 + $0x18] sm:$0xf]
        %v1024 = vld [vmem:[%s813 + $0x1c] sm:$0xf]
        %v1025 = vld [vmem:[%s813 + $0x20] sm:$0xf]
        %v1026 = vld [vmem:[%s813 + $0x24] sm:$0xf]
        %v1027 = vld [vmem:[%s813 + $0x28] sm:$0xf]
        %v1028 = vld [vmem:[%s813 + $0x2c] sm:$0xf]
        %v1029 = vld [vmem:[%s813 + $0x30] sm:$0xf]
        %v1030 = vld [vmem:[%s813 + $0x34] sm:$0xf]
        %v1031 = vld [vmem:[%s813 + $0x38] sm:$0xf]
        %v1032 = vld [vmem:[%s813 + $0x3c] sm:$0xf]
        %v1033 = vld [vmem:[%s822] sm:$0xf]
        %v1034 = vld [vmem:[%s822 + $0x4] sm:$0xf]
        %v1035 = vld [vmem:[%s822 + $0x8] sm:$0xf]
        %v1036 = vld [vmem:[%s822 + $0xc] sm:$0xf]
        %v1037 = vld [vmem:[%s822 + $0x10] sm:$0xf]
        %v1038 = vld [vmem:[%s822 + $0x14] sm:$0xf]
        %v1039 = vld [vmem:[%s822 + $0x18] sm:$0xf]
        %v1040 = vld [vmem:[%s822 + $0x1c] sm:$0xf]
        %v1041 = vld [vmem:[%s822 + $0x20] sm:$0xf]
        %v1042 = vld [vmem:[%s822 + $0x24] sm:$0xf]
        %v1043 = vld [vmem:[%s822 + $0x28] sm:$0xf]
        %v1044 = vld [vmem:[%s822 + $0x2c] sm:$0xf]
        %v1045 = vld [vmem:[%s822 + $0x30] sm:$0xf]
        %v1046 = vld [vmem:[%s822 + $0x34] sm:$0xf]
        %v1047 = vld [vmem:[%s822 + $0x38] sm:$0xf]
        %v1048 = vld [vmem:[%s822 + $0x3c] sm:$0xf]
        %v1049 = vld [vmem:[%s944] sm:$0x1]
        %v1051 = vlaneseq
        %v1052 = vshrl.u32 %v1051, 7
        %v1053 = vsub.s32 0, %v1052
        %v1054 = vrot.slane %v1049, %v1053
        %v1072 = vunpack.c.l.b16 %v969
        %v1073 = vunpack.c.l.b16 %v970
        %v1074 = vunpack.c.l.b16 %v971
        %v1075 = vunpack.c.l.b16 %v972
        %v1076 = vunpack.c.l.b16 %v973
        %v1077 = vunpack.c.l.b16 %v974
        %v1078 = vunpack.c.l.b16 %v975
        %v1079 = vunpack.c.l.b16 %v976
        %v1080 = vunpack.c.l.b16 %v977
        %v1081 = vunpack.c.l.b16 %v978
        %v1082 = vunpack.c.l.b16 %v979
        %v1083 = vunpack.c.l.b16 %v980
        %v1084 = vunpack.c.l.b16 %v981
        %v1085 = vunpack.c.l.b16 %v982
        %v1086 = vunpack.c.l.b16 %v983
        %v1087 = vunpack.c.l.b16 %v984
        %v1088 = vpack.c.b16 %v1073, %v1072
        %v1089 = vpack.c.b16 %v1075, %v1074
        %v1090 = vpack.c.b16 %v1077, %v1076
        %v1091 = vpack.c.b16 %v1079, %v1078
        %v1092 = vpack.c.b16 %v1081, %v1080
        %v1093 = vpack.c.b16 %v1083, %v1082
        %v1094 = vpack.c.b16 %v1085, %v1084
        %v1095 = vpack.c.b16 %v1087, %v1086
        %v1120 = vunpack.c.l.b16 %v1017
        %v1121 = vunpack.c.l.b16 %v1018
        %v1122 = vunpack.c.l.b16 %v1019
        %v1123 = vunpack.c.l.b16 %v1020
        %v1124 = vunpack.c.l.b16 %v1021
        %v1125 = vunpack.c.l.b16 %v1022
        %v1126 = vunpack.c.l.b16 %v1023
        %v1127 = vunpack.c.l.b16 %v1024
        %v1128 = vunpack.c.l.b16 %v1025
        %v1129 = vunpack.c.l.b16 %v1026
        %v1130 = vunpack.c.l.b16 %v1027
        %v1131 = vunpack.c.l.b16 %v1028
        %v1132 = vunpack.c.l.b16 %v1029
        %v1133 = vunpack.c.l.b16 %v1030
        %v1134 = vunpack.c.l.b16 %v1031
        %v1135 = vunpack.c.l.b16 %v1032
        %v1136 = vpack.c.b16 %v1121, %v1120
        %v1137 = vpack.c.b16 %v1123, %v1122
        %v1138 = vpack.c.b16 %v1125, %v1124
        %v1139 = vpack.c.b16 %v1127, %v1126
        %v1140 = vpack.c.b16 %v1129, %v1128
        %v1141 = vpack.c.b16 %v1131, %v1130
        %v1142 = vpack.c.b16 %v1133, %v1132
        %v1143 = vpack.c.b16 %v1135, %v1134
        %1152 = vmatprep.subr.bf16.mxu0 0
        %1153 = vmatpush1.bf16.xpose.msra.mxu0 %v1136
        %1154 = vmatprep.subr.bf16.mxu0 0
        %1155 = vmatpush1.bf16.xpose.msra.mxu0 %v1137
        %1156 = vmatprep.subr.bf16.mxu0 0
        %1157 = vmatpush1.bf16.xpose.msra.mxu0 %v1138
        %1158 = vmatprep.subr.bf16.mxu0 0
        %1159 = vmatpush1.bf16.xpose.msra.mxu0 %v1139
        %1160 = vmatprep.subr.bf16.mxu0 0
        %1161 = vmatpush1.bf16.xpose.msra.mxu0 %v1140
        %1162 = vmatprep.subr.bf16.mxu0 0
        %1163 = vmatpush1.bf16.xpose.msra.mxu0 %v1141
        %1164 = vmatprep.subr.bf16.mxu0 0
        %1165 = vmatpush1.bf16.xpose.msra.mxu0 %v1142
        %1166 = vmatprep.subr.bf16.mxu0 0
        %1167 = vmatpush1.bf16.xpose.msra.mxu0 %v1143
        %1168 = vmatprep.subr.bf16.mxu0 0
        %1169 = vmatpush1.bf16.xpose.msra.mxu0 0
        %1170 = vmatprep.subr.bf16.mxu0 0
        %1171 = vmatpush1.bf16.xpose.msra.mxu0 0
        %1172 = vmatprep.subr.bf16.mxu0 0
        %1173 = vmatpush1.bf16.xpose.msra.mxu0 0
        %1174 = vmatprep.subr.bf16.mxu0 0
        %1175 = vmatpush1.bf16.xpose.msra.mxu0 0
        %1176 = vmatprep.subr.bf16.mxu0 0
        %1177 = vmatpush1.bf16.xpose.msra.mxu0 0
        %1178 = vmatprep.subr.bf16.mxu0 0
        %1179 = vmatpush1.bf16.xpose.msra.mxu0 0
        %1180 = vmatprep.subr.bf16.mxu0 0
        %1181 = vmatpush1.bf16.xpose.msra.mxu0 0
        %1182 = vmatprep.subr.bf16.mxu0 0
        %1183 = vmatpush1.bf16.xpose.msra.mxu0 0
        %1184 = vmatprep.mubr.bf16.mxu0 0
        %1185 = vmatmul.mubr.bf16.gmra.mrb[0].mxu0 %v1088
        %v1186 = vpop.f32.mrb[0].mxu0
        %v1187 = vadd.f32 %v1054, %v1186
        %v1188 = vpop.f32.mrb[0].mxu0
        %v1189 = vpop.f32.mrb[0].mxu0
        %v1190 = vadd.f32 %v1054, %v1189
        %v1191 = vpop.f32.mrb[0].mxu0
        %1192 = vmatprep.mubr.bf16.mxu0 0
        %1193 = vmatmul.mubr.bf16.gmra.mrb[0].mxu0 %v1089
        %v1194 = vpop.f32.mrb[0].mxu0
        %v1195 = vadd.f32 %v1054, %v1194
        %v1196 = vpop.f32.mrb[0].mxu0
        %v1197 = vpop.f32.mrb[0].mxu0
        %v1198 = vadd.f32 %v1054, %v1197
        %v1199 = vpop.f32.mrb[0].mxu0
        %1200 = vmatprep.mubr.bf16.mxu0 0
        %1201 = vmatmul.mubr.bf16.gmra.mrb[0].mxu0 %v1090
        %v1202 = vpop.f32.mrb[0].mxu0
        %v1203 = vadd.f32 %v1054, %v1202
        %v1204 = vpop.f32.mrb[0].mxu0
        %v1205 = vpop.f32.mrb[0].mxu0
        %v1206 = vadd.f32 %v1054, %v1205
        %v1207 = vpop.f32.mrb[0].mxu0
        %1208 = vmatprep.mubr.bf16.mxu0 0
        %1209 = vmatmul.mubr.bf16.gmra.mrb[0].mxu0 %v1091
        %v1210 = vpop.f32.mrb[0].mxu0
        %v1211 = vadd.f32 %v1054, %v1210
        %v1212 = vpop.f32.mrb[0].mxu0
        %v1213 = vpop.f32.mrb[0].mxu0
        %v1214 = vadd.f32 %v1054, %v1213
        %v1215 = vpop.f32.mrb[0].mxu0
        %1216 = vmatprep.mubr.bf16.mxu0 0
        %1217 = vmatmul.mubr.bf16.gmra.mrb[0].mxu0 %v1092
        %v1218 = vpop.f32.mrb[0].mxu0
        %v1219 = vadd.f32 %v1054, %v1218
        %v1220 = vpop.f32.mrb[0].mxu0
        %v1221 = vpop.f32.mrb[0].mxu0
        %v1222 = vadd.f32 %v1054, %v1221
        %v1223 = vpop.f32.mrb[0].mxu0
        %1224 = vmatprep.mubr.bf16.mxu0 0
        %1225 = vmatmul.mubr.bf16.gmra.mrb[0].mxu0 %v1093
        %v1226 = vpop.f32.mrb[0].mxu0
        %v1227 = vadd.f32 %v1054, %v1226
        %v1228 = vpop.f32.mrb[0].mxu0
        %v1229 = vpop.f32.mrb[0].mxu0
        %v1230 = vadd.f32 %v1054, %v1229
        %v1231 = vpop.f32.mrb[0].mxu0
        %1232 = vmatprep.mubr.bf16.mxu0 0
        %1233 = vmatmul.mubr.bf16.gmra.mrb[0].mxu0 %v1094
        %v1234 = vpop.f32.mrb[0].mxu0
        %v1235 = vadd.f32 %v1054, %v1234
        %v1236 = vpop.f32.mrb[0].mxu0
        %v1237 = vpop.f32.mrb[0].mxu0
        %v1238 = vadd.f32 %v1054, %v1237
        %v1239 = vpop.f32.mrb[0].mxu0
        %1240 = vmatprep.mubr.bf16.mxu0 0
        %1241 = vmatmul.mubr.bf16.gmra.mrb[0].mxu0 %v1095
        %v1242 = vpop.f32.mrb[0].mxu0
        %v1243 = vadd.f32 %v1054, %v1242
        %v1244 = vpop.f32.mrb[0].mxu0
        %v1245 = vpop.f32.mrb[0].mxu0
        %v1246 = vadd.f32 %v1054, %v1245
        %v1247 = vpop.f32.mrb[0].mxu0
        %1248 = vdwg.mxu0
        %v1249 = vmul.f32 %v1187, 0.35355338
        %v1250 = vmul.f32 %v1190, 0.35355338
        %v1251 = vmul.f32 %v1195, 0.35355338
        %v1252 = vmul.f32 %v1198, 0.35355338
        %v1253 = vmul.f32 %v1203, 0.35355338
        %v1254 = vmul.f32 %v1206, 0.35355338
        %v1255 = vmul.f32 %v1211, 0.35355338
        %v1256 = vmul.f32 %v1214, 0.35355338
        %v1257 = vmul.f32 %v1219, 0.35355338
        %v1258 = vmul.f32 %v1222, 0.35355338
        %v1259 = vmul.f32 %v1227, 0.35355338
        %v1260 = vmul.f32 %v1230, 0.35355338
        %v1261 = vmul.f32 %v1235, 0.35355338
        %v1262 = vmul.f32 %v1238, 0.35355338
        %v1263 = vmul.f32 %v1243, 0.35355338
        %v1264 = vmul.f32 %v1246, 0.35355338
        %v1265 = vpack.c.bf16 %v1250, %v1249
        %v1266 = vpack.c.bf16 %v1252, %v1251
        %v1267 = vpack.c.bf16 %v1254, %v1253
        %v1268 = vpack.c.bf16 %v1256, %v1255
        %v1269 = vpack.c.bf16 %v1258, %v1257
        %v1270 = vpack.c.bf16 %v1260, %v1259
        %v1271 = vpack.c.bf16 %v1262, %v1261
        %v1272 = vpack.c.bf16 %v1264, %v1263
        %v1289 = vunpack.c.l.b16 %v985
        %v1290 = vunpack.c.l.b16 %v986
        %v1291 = vunpack.c.l.b16 %v987
        %v1292 = vunpack.c.l.b16 %v988
        %v1293 = vunpack.c.l.b16 %v989
        %v1294 = vunpack.c.l.b16 %v990
        %v1295 = vunpack.c.l.b16 %v991
        %v1296 = vunpack.c.l.b16 %v992
        %v1297 = vunpack.c.l.b16 %v993
        %v1298 = vunpack.c.l.b16 %v994
        %v1299 = vunpack.c.l.b16 %v995
        %v1300 = vunpack.c.l.b16 %v996
        %v1301 = vunpack.c.l.b16 %v997
        %v1302 = vunpack.c.l.b16 %v998
        %v1303 = vunpack.c.l.b16 %v999
        %v1304 = vunpack.c.l.b16 %v1000
        %v1305 = vpack.c.b16 %v1290, %v1289
        %v1306 = vpack.c.b16 %v1292, %v1291
        %v1307 = vpack.c.b16 %v1294, %v1293
        %v1308 = vpack.c.b16 %v1296, %v1295
        %v1309 = vpack.c.b16 %v1298, %v1297
        %v1310 = vpack.c.b16 %v1300, %v1299
        %v1311 = vpack.c.b16 %v1302, %v1301
        %v1312 = vpack.c.b16 %v1304, %v1303
        %1321 = vmatprep.subr.bf16.mxu0 0
        %1322 = vmatpush1.bf16.xpose.msra.mxu0 %v1136
        %1323 = vmatprep.subr.bf16.mxu0 0
        %1324 = vmatpush1.bf16.xpose.msra.mxu0 %v1137
        %1325 = vmatprep.subr.bf16.mxu0 0
        %1326 = vmatpush1.bf16.xpose.msra.mxu0 %v1138
        %1327 = vmatprep.subr.bf16.mxu0 0
        %1328 = vmatpush1.bf16.xpose.msra.mxu0 %v1139
        %1329 = vmatprep.subr.bf16.mxu0 0
        %1330 = vmatpush1.bf16.xpose.msra.mxu0 %v1140
        %1331 = vmatprep.subr.bf16.mxu0 0
        %1332 = vmatpush1.bf16.xpose.msra.mxu0 %v1141
        %1333 = vmatprep.subr.bf16.mxu0 0
        %1334 = vmatpush1.bf16.xpose.msra.mxu0 %v1142
        %1335 = vmatprep.subr.bf16.mxu0 0
        %1336 = vmatpush1.bf16.xpose.msra.mxu0 %v1143
        %1337 = vmatprep.subr.bf16.mxu0 0
        %1338 = vmatpush1.bf16.xpose.msra.mxu0 0
        %1339 = vmatprep.subr.bf16.mxu0 0
        %1340 = vmatpush1.bf16.xpose.msra.mxu0 0
        %1341 = vmatprep.subr.bf16.mxu0 0
        %1342 = vmatpush1.bf16.xpose.msra.mxu0 0
        %1343 = vmatprep.subr.bf16.mxu0 0
        %1344 = vmatpush1.bf16.xpose.msra.mxu0 0
        %1345 = vmatprep.subr.bf16.mxu0 0
        %1346 = vmatpush1.bf16.xpose.msra.mxu0 0
        %1347 = vmatprep.subr.bf16.mxu0 0
        %1348 = vmatpush1.bf16.xpose.msra.mxu0 0
        %1349 = vmatprep.subr.bf16.mxu0 0
        %1350 = vmatpush1.bf16.xpose.msra.mxu0 0
        %1351 = vmatprep.subr.bf16.mxu0 0
        %1352 = vmatpush1.bf16.xpose.msra.mxu0 0
        %1353 = vmatprep.mubr.bf16.mxu0 0
        %1354 = vmatmul.mubr.bf16.gmra.mrb[0].mxu0 %v1305
        %v1355 = vpop.f32.mrb[0].mxu0
        %v1356 = vadd.f32 %v1054, %v1355
        %v1357 = vpop.f32.mrb[0].mxu0
        %v1358 = vpop.f32.mrb[0].mxu0
        %v1359 = vadd.f32 %v1054, %v1358
        %v1360 = vpop.f32.mrb[0].mxu0
        %1361 = vmatprep.mubr.bf16.mxu0 0
        %1362 = vmatmul.mubr.bf16.gmra.mrb[0].mxu0 %v1306
        %v1363 = vpop.f32.mrb[0].mxu0
        %v1364 = vadd.f32 %v1054, %v1363
        %v1365 = vpop.f32.mrb[0].mxu0
        %v1366 = vpop.f32.mrb[0].mxu0
        %v1367 = vadd.f32 %v1054, %v1366
        %v1368 = vpop.f32.mrb[0].mxu0
        %1369 = vmatprep.mubr.bf16.mxu0 0
        %1370 = vmatmul.mubr.bf16.gmra.mrb[0].mxu0 %v1307
        %v1371 = vpop.f32.mrb[0].mxu0
        %v1372 = vadd.f32 %v1054, %v1371
        %v1373 = vpop.f32.mrb[0].mxu0
        %v1374 = vpop.f32.mrb[0].mxu0
        %v1375 = vadd.f32 %v1054, %v1374
        %v1376 = vpop.f32.mrb[0].mxu0
        %1377 = vmatprep.mubr.bf16.mxu0 0
        %1378 = vmatmul.mubr.bf16.gmra.mrb[0].mxu0 %v1308
        %v1379 = vpop.f32.mrb[0].mxu0
        %v1380 = vadd.f32 %v1054, %v1379
        %v1381 = vpop.f32.mrb[0].mxu0
        %v1382 = vpop.f32.mrb[0].mxu0
        %v1383 = vadd.f32 %v1054, %v1382
        %v1384 = vpop.f32.mrb[0].mxu0
        %1385 = vmatprep.mubr.bf16.mxu0 0
        %1386 = vmatmul.mubr.bf16.gmra.mrb[0].mxu0 %v1309
        %v1387 = vpop.f32.mrb[0].mxu0
        %v1388 = vadd.f32 %v1054, %v1387
        %v1389 = vpop.f32.mrb[0].mxu0
        %v1390 = vpop.f32.mrb[0].mxu0
        %v1391 = vadd.f32 %v1054, %v1390
        %v1392 = vpop.f32.mrb[0].mxu0
        %1393 = vmatprep.mubr.bf16.mxu0 0
        %1394 = vmatmul.mubr.bf16.gmra.mrb[0].mxu0 %v1310
        %v1395 = vpop.f32.mrb[0].mxu0
        %v1396 = vadd.f32 %v1054, %v1395
        %v1397 = vpop.f32.mrb[0].mxu0
        %v1398 = vpop.f32.mrb[0].mxu0
        %v1399 = vadd.f32 %v1054, %v1398
        %v1400 = vpop.f32.mrb[0].mxu0
        %1401 = vmatprep.mubr.bf16.mxu0 0
        %1402 = vmatmul.mubr.bf16.gmra.mrb[0].mxu0 %v1311
        %v1403 = vpop.f32.mrb[0].mxu0
        %v1404 = vadd.f32 %v1054, %v1403
        %v1405 = vpop.f32.mrb[0].mxu0
        %v1406 = vpop.f32.mrb[0].mxu0
        %v1407 = vadd.f32 %v1054, %v1406
        %v1408 = vpop.f32.mrb[0].mxu0
        %1409 = vmatprep.mubr.bf16.mxu0 0
        %1410 = vmatmul.mubr.bf16.gmra.mrb[0].mxu0 %v1312
        %v1411 = vpop.f32.mrb[0].mxu0
        %v1412 = vadd.f32 %v1054, %v1411
        %v1413 = vpop.f32.mrb[0].mxu0
        %v1414 = vpop.f32.mrb[0].mxu0
        %v1415 = vadd.f32 %v1054, %v1414
        %v1416 = vpop.f32.mrb[0].mxu0
        %1417 = vdwg.mxu0
        %v1418 = vpack.c.bf16 %v1359, %v1356
        %v1419 = vpack.c.bf16 %v1367, %v1364
        %v1420 = vpack.c.bf16 %v1375, %v1372
        %v1421 = vpack.c.bf16 %v1383, %v1380
        %v1422 = vpack.c.bf16 %v1391, %v1388
        %v1423 = vpack.c.bf16 %v1399, %v1396
        %v1424 = vpack.c.bf16 %v1407, %v1404
        %v1425 = vpack.c.bf16 %v1415, %v1412
        %v1426 = vld [vmem:[%s947] sm:$0x1]
        %v1428 = vlaneseq
        %v1429 = vshrl.u32 %v1428, 7
        %v1430 = vsub.s32 0, %v1429
        %v1431 = vrot.slane %v1426, %v1430
        %v1449 = vunpack.c.l.b16 %v1001
        %v1450 = vunpack.c.l.b16 %v1002
        %v1451 = vunpack.c.l.b16 %v1003
        %v1452 = vunpack.c.l.b16 %v1004
        %v1453 = vunpack.c.l.b16 %v1005
        %v1454 = vunpack.c.l.b16 %v1006
        %v1455 = vunpack.c.l.b16 %v1007
        %v1456 = vunpack.c.l.b16 %v1008
        %v1457 = vunpack.c.l.b16 %v1009
        %v1458 = vunpack.c.l.b16 %v1010
        %v1459 = vunpack.c.l.b16 %v1011
        %v1460 = vunpack.c.l.b16 %v1012
        %v1461 = vunpack.c.l.b16 %v1013
        %v1462 = vunpack.c.l.b16 %v1014
        %v1463 = vunpack.c.l.b16 %v1015
        %v1464 = vunpack.c.l.b16 %v1016
        %v1465 = vpack.c.b16 %v1450, %v1449
        %v1466 = vpack.c.b16 %v1452, %v1451
        %v1467 = vpack.c.b16 %v1454, %v1453
        %v1468 = vpack.c.b16 %v1456, %v1455
        %v1469 = vpack.c.b16 %v1458, %v1457
        %v1470 = vpack.c.b16 %v1460, %v1459
        %v1471 = vpack.c.b16 %v1462, %v1461
        %v1472 = vpack.c.b16 %v1464, %v1463
        %v1497 = vunpack.c.l.b16 %v1033
        %v1498 = vunpack.c.l.b16 %v1034
        %v1499 = vunpack.c.l.b16 %v1035
        %v1500 = vunpack.c.l.b16 %v1036
        %v1501 = vunpack.c.l.b16 %v1037
        %v1502 = vunpack.c.l.b16 %v1038
        %v1503 = vunpack.c.l.b16 %v1039
        %v1504 = vunpack.c.l.b16 %v1040
        %v1505 = vunpack.c.l.b16 %v1041
        %v1506 = vunpack.c.l.b16 %v1042
        %v1507 = vunpack.c.l.b16 %v1043
        %v1508 = vunpack.c.l.b16 %v1044
        %v1509 = vunpack.c.l.b16 %v1045
        %v1510 = vunpack.c.l.b16 %v1046
        %v1511 = vunpack.c.l.b16 %v1047
        %v1512 = vunpack.c.l.b16 %v1048
        %v1513 = vpack.c.b16 %v1498, %v1497
        %v1514 = vpack.c.b16 %v1500, %v1499
        %v1515 = vpack.c.b16 %v1502, %v1501
        %v1516 = vpack.c.b16 %v1504, %v1503
        %v1517 = vpack.c.b16 %v1506, %v1505
        %v1518 = vpack.c.b16 %v1508, %v1507
        %v1519 = vpack.c.b16 %v1510, %v1509
        %v1520 = vpack.c.b16 %v1512, %v1511
        %1529 = vmatprep.subr.bf16.mxu0 0
        %1530 = vmatpush1.bf16.xpose.msra.mxu0 %v1513
        %1531 = vmatprep.subr.bf16.mxu0 0
        %1532 = vmatpush1.bf16.xpose.msra.mxu0 %v1514
        %1533 = vmatprep.subr.bf16.mxu0 0
        %1534 = vmatpush1.bf16.xpose.msra.mxu0 %v1515
        %1535 = vmatprep.subr.bf16.mxu0 0
        %1536 = vmatpush1.bf16.xpose.msra.mxu0 %v1516
        %1537 = vmatprep.subr.bf16.mxu0 0
        %1538 = vmatpush1.bf16.xpose.msra.mxu0 %v1517
        %1539 = vmatprep.subr.bf16.mxu0 0
        %1540 = vmatpush1.bf16.xpose.msra.mxu0 %v1518
        %1541 = vmatprep.subr.bf16.mxu0 0
        %1542 = vmatpush1.bf16.xpose.msra.mxu0 %v1519
        %1543 = vmatprep.subr.bf16.mxu0 0
        %1544 = vmatpush1.bf16.xpose.msra.mxu0 %v1520
        %1545 = vmatprep.subr.bf16.mxu0 0
        %1546 = vmatpush1.bf16.xpose.msra.mxu0 0
        %1547 = vmatprep.subr.bf16.mxu0 0
        %1548 = vmatpush1.bf16.xpose.msra.mxu0 0
        %1549 = vmatprep.subr.bf16.mxu0 0
        %1550 = vmatpush1.bf16.xpose.msra.mxu0 0
        %1551 = vmatprep.subr.bf16.mxu0 0
        %1552 = vmatpush1.bf16.xpose.msra.mxu0 0
        %1553 = vmatprep.subr.bf16.mxu0 0
        %1554 = vmatpush1.bf16.xpose.msra.mxu0 0
        %1555 = vmatprep.subr.bf16.mxu0 0
        %1556 = vmatpush1.bf16.xpose.msra.mxu0 0
        %1557 = vmatprep.subr.bf16.mxu0 0
        %1558 = vmatpush1.bf16.xpose.msra.mxu0 0
        %1559 = vmatprep.subr.bf16.mxu0 0
        %1560 = vmatpush1.bf16.xpose.msra.mxu0 0
        %1561 = vmatprep.mubr.bf16.mxu0 0
        %1562 = vmatmul.mubr.bf16.gmra.mrb[0].mxu0 %v1465
        %v1563 = vpop.f32.mrb[0].mxu0
        %v1564 = vadd.f32 %v1431, %v1563
        %v1565 = vpop.f32.mrb[0].mxu0
        %v1566 = vpop.f32.mrb[0].mxu0
        %v1567 = vadd.f32 %v1431, %v1566
        %v1568 = vpop.f32.mrb[0].mxu0
        %1569 = vmatprep.mubr.bf16.mxu0 0
        %1570 = vmatmul.mubr.bf16.gmra.mrb[0].mxu0 %v1466
        %v1571 = vpop.f32.mrb[0].mxu0
        %v1572 = vadd.f32 %v1431, %v1571
        %v1573 = vpop.f32.mrb[0].mxu0
        %v1574 = vpop.f32.mrb[0].mxu0
        %v1575 = vadd.f32 %v1431, %v1574
        %v1576 = vpop.f32.mrb[0].mxu0
        %1577 = vmatprep.mubr.bf16.mxu0 0
        %1578 = vmatmul.mubr.bf16.gmra.mrb[0].mxu0 %v1467
        %v1579 = vpop.f32.mrb[0].mxu0
        %v1580 = vadd.f32 %v1431, %v1579
        %v1581 = vpop.f32.mrb[0].mxu0
        %v1582 = vpop.f32.mrb[0].mxu0
        %v1583 = vadd.f32 %v1431, %v1582
        %v1584 = vpop.f32.mrb[0].mxu0
        %1585 = vmatprep.mubr.bf16.mxu0 0
        %1586 = vmatmul.mubr.bf16.gmra.mrb[0].mxu0 %v1468
        %v1587 = vpop.f32.mrb[0].mxu0
        %v1588 = vadd.f32 %v1431, %v1587
        %v1589 = vpop.f32.mrb[0].mxu0
        %v1590 = vpop.f32.mrb[0].mxu0
        %v1591 = vadd.f32 %v1431, %v1590
        %v1592 = vpop.f32.mrb[0].mxu0
        %1593 = vmatprep.mubr.bf16.mxu0 0
        %1594 = vmatmul.mubr.bf16.gmra.mrb[0].mxu0 %v1469
        %v1595 = vpop.f32.mrb[0].mxu0
        %v1596 = vadd.f32 %v1431, %v1595
        %v1597 = vpop.f32.mrb[0].mxu0
        %v1598 = vpop.f32.mrb[0].mxu0
        %v1599 = vadd.f32 %v1431, %v1598
        %v1600 = vpop.f32.mrb[0].mxu0
        %1601 = vmatprep.mubr.bf16.mxu0 0
        %1602 = vmatmul.mubr.bf16.gmra.mrb[0].mxu0 %v1470
        %v1603 = vpop.f32.mrb[0].mxu0
        %v1604 = vadd.f32 %v1431, %v1603
        %v1605 = vpop.f32.mrb[0].mxu0
        %v1606 = vpop.f32.mrb[0].mxu0
        %v1607 = vadd.f32 %v1431, %v1606
        %v1608 = vpop.f32.mrb[0].mxu0
        %1609 = vmatprep.mubr.bf16.mxu0 0
        %1610 = vmatmul.mubr.bf16.gmra.mrb[0].mxu0 %v1471
        %v1611 = vpop.f32.mrb[0].mxu0
        %v1612 = vadd.f32 %v1431, %v1611
        %v1613 = vpop.f32.mrb[0].mxu0
        %v1614 = vpop.f32.mrb[0].mxu0
        %v1615 = vadd.f32 %v1431, %v1614
        %v1616 = vpop.f32.mrb[0].mxu0
        %1617 = vmatprep.mubr.bf16.mxu0 0
        %1618 = vmatmul.mubr.bf16.gmra.mrb[0].mxu0 %v1472
        %v1619 = vpop.f32.mrb[0].mxu0
        %v1620 = vadd.f32 %v1431, %v1619
        %v1621 = vpop.f32.mrb[0].mxu0
        %v1622 = vpop.f32.mrb[0].mxu0
        %v1623 = vadd.f32 %v1431, %v1622
        %v1624 = vpop.f32.mrb[0].mxu0
        %1625 = vdwg.mxu0
        %v1626 = vpack.c.bf16 %v1567, %v1564
        %v1627 = vpack.c.bf16 %v1575, %v1572
        %v1628 = vpack.c.bf16 %v1583, %v1580
        %v1629 = vpack.c.bf16 %v1591, %v1588
        %v1630 = vpack.c.bf16 %v1599, %v1596
        %v1631 = vpack.c.bf16 %v1607, %v1604
        %v1632 = vpack.c.bf16 %v1615, %v1612
        %v1633 = vpack.c.bf16 %v1623, %v1620
        %1634 = vmatprep.subr.bf16.mxu0 0
        %1635 = vmatpush1.bf16.xpose.msra.mxu0 %v1418
        %1636 = vmatprep.subr.bf16.mxu0 0
        %1637 = vmatpush1.bf16.xpose.msra.mxu0 %v1419
        %1638 = vmatprep.subr.bf16.mxu0 0
        %1639 = vmatpush1.bf16.xpose.msra.mxu0 %v1420
        %1640 = vmatprep.subr.bf16.mxu0 0
        %1641 = vmatpush1.bf16.xpose.msra.mxu0 %v1421
        %1642 = vmatprep.subr.bf16.mxu0 0
        %1643 = vmatpush1.bf16.xpose.msra.mxu0 %v1422
        %1644 = vmatprep.subr.bf16.mxu0 0
        %1645 = vmatpush1.bf16.xpose.msra.mxu0 %v1423
        %1646 = vmatprep.subr.bf16.mxu0 0
        %1647 = vmatpush1.bf16.xpose.msra.mxu0 %v1424
        %1648 = vmatprep.subr.bf16.mxu0 0
        %1649 = vmatpush1.bf16.xpose.msra.mxu0 %v1425
        %1650 = vmatprep.subr.bf16.mxu0 0
        %1651 = vmatpush1.bf16.xpose.msra.mxu0 0
        %1652 = vmatprep.subr.bf16.mxu0 0
        %1653 = vmatpush1.bf16.xpose.msra.mxu0 0
        %1654 = vmatprep.subr.bf16.mxu0 0
        %1655 = vmatpush1.bf16.xpose.msra.mxu0 0
        %1656 = vmatprep.subr.bf16.mxu0 0
        %1657 = vmatpush1.bf16.xpose.msra.mxu0 0
        %1658 = vmatprep.subr.bf16.mxu0 0
        %1659 = vmatpush1.bf16.xpose.msra.mxu0 0
        %1660 = vmatprep.subr.bf16.mxu0 0
        %1661 = vmatpush1.bf16.xpose.msra.mxu0 0
        %1662 = vmatprep.subr.bf16.mxu0 0
        %1663 = vmatpush1.bf16.xpose.msra.mxu0 0
        %1664 = vmatprep.subr.bf16.mxu0 0
        %1665 = vmatpush1.bf16.xpose.msra.mxu0 0
        %1666 = vmatprep.mubr.bf16.mxu0 0
        %1667 = vmatmul.mubr.bf16.gmra.mrb[0].mxu0 %v1265
        %v1668 = vpop.f32.mrb[0].mxu0
        %v1669 = vadd.f32 0.0, %v1668
        %v1670 = vpop.f32.mrb[0].mxu0
        %v1671 = vpop.f32.mrb[0].mxu0
        %v1672 = vadd.f32 0.0, %v1671
        %v1673 = vpop.f32.mrb[0].mxu0
        %1674 = vmatprep.mubr.bf16.mxu0 0
        %1675 = vmatmul.mubr.bf16.gmra.mrb[0].mxu0 %v1266
        %v1676 = vpop.f32.mrb[0].mxu0
        %v1677 = vadd.f32 0.0, %v1676
        %v1678 = vpop.f32.mrb[0].mxu0
        %v1679 = vpop.f32.mrb[0].mxu0
        %v1680 = vadd.f32 0.0, %v1679
        %v1681 = vpop.f32.mrb[0].mxu0
        %1682 = vmatprep.mubr.bf16.mxu0 0
        %1683 = vmatmul.mubr.bf16.gmra.mrb[0].mxu0 %v1267
        %v1684 = vpop.f32.mrb[0].mxu0
        %v1685 = vadd.f32 0.0, %v1684
        %v1686 = vpop.f32.mrb[0].mxu0
        %v1687 = vpop.f32.mrb[0].mxu0
        %v1688 = vadd.f32 0.0, %v1687
        %v1689 = vpop.f32.mrb[0].mxu0
        %1690 = vmatprep.mubr.bf16.mxu0 0
        %1691 = vmatmul.mubr.bf16.gmra.mrb[0].mxu0 %v1268
        %v1692 = vpop.f32.mrb[0].mxu0
        %v1693 = vadd.f32 0.0, %v1692
        %v1694 = vpop.f32.mrb[0].mxu0
        %v1695 = vpop.f32.mrb[0].mxu0
        %v1696 = vadd.f32 0.0, %v1695
        %v1697 = vpop.f32.mrb[0].mxu0
        %1698 = vmatprep.mubr.bf16.mxu0 0
        %1699 = vmatmul.mubr.bf16.gmra.mrb[0].mxu0 %v1269
        %v1700 = vpop.f32.mrb[0].mxu0
        %v1701 = vadd.f32 0.0, %v1700
        %v1702 = vpop.f32.mrb[0].mxu0
        %v1703 = vpop.f32.mrb[0].mxu0
        %v1704 = vadd.f32 0.0, %v1703
        %v1705 = vpop.f32.mrb[0].mxu0
        %1706 = vmatprep.mubr.bf16.mxu0 0
        %1707 = vmatmul.mubr.bf16.gmra.mrb[0].mxu0 %v1270
        %v1708 = vpop.f32.mrb[0].mxu0
        %v1709 = vadd.f32 0.0, %v1708
        %v1710 = vpop.f32.mrb[0].mxu0
        %v1711 = vpop.f32.mrb[0].mxu0
        %v1712 = vadd.f32 0.0, %v1711
        %v1713 = vpop.f32.mrb[0].mxu0
        %1714 = vmatprep.mubr.bf16.mxu0 0
        %1715 = vmatmul.mubr.bf16.gmra.mrb[0].mxu0 %v1271
        %v1716 = vpop.f32.mrb[0].mxu0
        %v1717 = vadd.f32 0.0, %v1716
        %v1718 = vpop.f32.mrb[0].mxu0
        %v1719 = vpop.f32.mrb[0].mxu0
        %v1720 = vadd.f32 0.0, %v1719
        %v1721 = vpop.f32.mrb[0].mxu0
        %1722 = vmatprep.mubr.bf16.mxu0 0
        %1723 = vmatmul.mubr.bf16.gmra.mrb[0].mxu0 %v1272
        %v1724 = vpop.f32.mrb[0].mxu0
        %v1725 = vadd.f32 0.0, %v1724
        %v1726 = vpop.f32.mrb[0].mxu0
        %v1727 = vpop.f32.mrb[0].mxu0
        %v1728 = vadd.f32 0.0, %v1727
        %v1729 = vpop.f32.mrb[0].mxu0
        %1730 = vdwg.mxu0
        %v1731 = vld [vmem:[#allocation17] sm:$0xff]
        %v1732 = vld [vmem:[#allocation17 + $0x8] sm:$0xff]
        %v1733 = vld [vmem:[#allocation17 + $0x10] sm:$0xff]
        %v1734 = vld [vmem:[#allocation17 + $0x18] sm:$0xff]
        %v1735 = vld [vmem:[#allocation17 + $0x20] sm:$0xff]
        %v1736 = vld [vmem:[#allocation17 + $0x28] sm:$0xff]
        %v1737 = vld [vmem:[#allocation17 + $0x30] sm:$0xff]
        %v1738 = vld [vmem:[#allocation17 + $0x38] sm:$0xff]
        %v1739 = vld [vmem:[#allocation17 + $0x40] sm:$0xff]
        %v1740 = vld [vmem:[#allocation17 + $0x48] sm:$0xff]
        %v1741 = vld [vmem:[#allocation17 + $0x50] sm:$0xff]
        %v1742 = vld [vmem:[#allocation17 + $0x58] sm:$0xff]
        %v1743 = vld [vmem:[#allocation17 + $0x60] sm:$0xff]
        %v1744 = vld [vmem:[#allocation17 + $0x68] sm:$0xff]
        %v1745 = vld [vmem:[#allocation17 + $0x70] sm:$0xff]
        %v1746 = vld [vmem:[#allocation17 + $0x78] sm:$0xff]
        %v1747 = vadd.f32 %v1669, %v1731
        %v1748 = vadd.f32 %v1672, %v1732
        %v1749 = vadd.f32 %v1677, %v1733
        %v1750 = vadd.f32 %v1680, %v1734
        %v1751 = vadd.f32 %v1685, %v1735
        %v1752 = vadd.f32 %v1688, %v1736
        %v1753 = vadd.f32 %v1693, %v1737
        %v1754 = vadd.f32 %v1696, %v1738
        %v1755 = vadd.f32 %v1701, %v1739
        %v1756 = vadd.f32 %v1704, %v1740
        %v1757 = vadd.f32 %v1709, %v1741
        %v1758 = vadd.f32 %v1712, %v1742
        %v1759 = vadd.f32 %v1717, %v1743
        %v1760 = vadd.f32 %v1720, %v1744
        %v1761 = vadd.f32 %v1725, %v1745
        %v1762 = vadd.f32 %v1728, %v1746
        %1763 = vmax.xlane.f32.xlu0 %v1747
        %v1764 = vpop.xlane.xlu0 %1763
        %1765 = vmax.xlane.f32.xlu0 %v1748
        %v1766 = vpop.xlane.xlu0 %1765
        %1767 = vmax.xlane.f32.xlu0 %v1749
        %v1768 = vpop.xlane.xlu0 %1767
        %1769 = vmax.xlane.f32.xlu0 %v1750
        %v1770 = vpop.xlane.xlu0 %1769
        %1771 = vmax.xlane.f32.xlu0 %v1751
        %v1772 = vpop.xlane.xlu0 %1771
        %1773 = vmax.xlane.f32.xlu0 %v1752
        %v1774 = vpop.xlane.xlu0 %1773
        %1775 = vmax.xlane.f32.xlu0 %v1753
        %v1776 = vpop.xlane.xlu0 %1775
        %1777 = vmax.xlane.f32.xlu0 %v1754
        %v1778 = vpop.xlane.xlu0 %1777
        %1779 = vmax.xlane.f32.xlu0 %v1755
        %v1780 = vpop.xlane.xlu0 %1779
        %1781 = vmax.xlane.f32.xlu0 %v1756
        %v1782 = vpop.xlane.xlu0 %1781
        %1783 = vmax.xlane.f32.xlu0 %v1757
        %v1784 = vpop.xlane.xlu0 %1783
        %1785 = vmax.xlane.f32.xlu0 %v1758
        %v1786 = vpop.xlane.xlu0 %1785
        %1787 = vmax.xlane.f32.xlu0 %v1759
        %v1788 = vpop.xlane.xlu0 %1787
        %1789 = vmax.xlane.f32.xlu0 %v1760
        %v1790 = vpop.xlane.xlu0 %1789
        %1791 = vmax.xlane.f32.xlu0 %v1761
        %v1792 = vpop.xlane.xlu0 %1791
        %1793 = vmax.xlane.f32.xlu0 %v1762
        %v1794 = vpop.xlane.xlu0 %1793
        %v1795 = vsub.f32 %v1747, %v1764
        %v1796 = vsub.f32 %v1748, %v1766
        %v1797 = vsub.f32 %v1749, %v1768
        %v1798 = vsub.f32 %v1750, %v1770
        %v1799 = vsub.f32 %v1751, %v1772
        %v1800 = vsub.f32 %v1752, %v1774
        %v1801 = vsub.f32 %v1753, %v1776
        %v1802 = vsub.f32 %v1754, %v1778
        %v1803 = vsub.f32 %v1755, %v1780
        %v1804 = vsub.f32 %v1756, %v1782
        %v1805 = vsub.f32 %v1757, %v1784
        %v1806 = vsub.f32 %v1758, %v1786
        %v1807 = vsub.f32 %v1759, %v1788
        %v1808 = vsub.f32 %v1760, %v1790
        %v1809 = vsub.f32 %v1761, %v1792
        %v1810 = vsub.f32 %v1762, %v1794
        %v1811 = vmul.f32 %v1795, 1.442695
        %v1812 = vpow.pop %v1811
        %v1813 = vmul.f32 %v1796, 1.442695
        %v1814 = vpow.pop %v1813
        %v1815 = vmul.f32 %v1797, 1.442695
        %v1816 = vpow.pop %v1815
        %v1817 = vmul.f32 %v1798, 1.442695
        %v1818 = vpow.pop %v1817
        %v1819 = vmul.f32 %v1799, 1.442695
        %v1820 = vpow.pop %v1819
        %v1821 = vmul.f32 %v1800, 1.442695
        %v1822 = vpow.pop %v1821
        %v1823 = vmul.f32 %v1801, 1.442695
        %v1824 = vpow.pop %v1823
        %v1825 = vmul.f32 %v1802, 1.442695
        %v1826 = vpow.pop %v1825
        %v1827 = vmul.f32 %v1803, 1.442695
        %v1828 = vpow.pop %v1827
        %v1829 = vmul.f32 %v1804, 1.442695
        %v1830 = vpow.pop %v1829
        %v1831 = vmul.f32 %v1805, 1.442695
        %v1832 = vpow.pop %v1831
        %v1833 = vmul.f32 %v1806, 1.442695
        %v1834 = vpow.pop %v1833
        %v1835 = vmul.f32 %v1807, 1.442695
        %v1836 = vpow.pop %v1835
        %v1837 = vmul.f32 %v1808, 1.442695
        %v1838 = vpow.pop %v1837
        %v1839 = vmul.f32 %v1809, 1.442695
        %v1840 = vpow.pop %v1839
        %v1841 = vmul.f32 %v1810, 1.442695
        %v1842 = vpow.pop %v1841
        %1843 = vadd.xlane.f32.xlu0 %v1812
        %v1844 = vpop.xlane.xlu0 %1843
        %1845 = vadd.xlane.f32.xlu0 %v1814
        %v1846 = vpop.xlane.xlu0 %1845
        %1847 = vadd.xlane.f32.xlu0 %v1816
        %v1848 = vpop.xlane.xlu0 %1847
        %1849 = vadd.xlane.f32.xlu0 %v1818
        %v1850 = vpop.xlane.xlu0 %1849
        %1851 = vadd.xlane.f32.xlu0 %v1820
        %v1852 = vpop.xlane.xlu0 %1851
        %1853 = vadd.xlane.f32.xlu0 %v1822
        %v1854 = vpop.xlane.xlu0 %1853
        %1855 = vadd.xlane.f32.xlu0 %v1824
        %v1856 = vpop.xlane.xlu0 %1855
        %1857 = vadd.xlane.f32.xlu0 %v1826
        %v1858 = vpop.xlane.xlu0 %1857
        %1859 = vadd.xlane.f32.xlu0 %v1828
        %v1860 = vpop.xlane.xlu0 %1859
        %1861 = vadd.xlane.f32.xlu0 %v1830
        %v1862 = vpop.xlane.xlu0 %1861
        %1863 = vadd.xlane.f32.xlu0 %v1832
        %v1864 = vpop.xlane.xlu0 %1863
        %1865 = vadd.xlane.f32.xlu0 %v1834
        %v1866 = vpop.xlane.xlu0 %1865
        %1867 = vadd.xlane.f32.xlu0 %v1836
        %v1868 = vpop.xlane.xlu0 %1867
        %1869 = vadd.xlane.f32.xlu0 %v1838
        %v1870 = vpop.xlane.xlu0 %1869
        %1871 = vadd.xlane.f32.xlu0 %v1840
        %v1872 = vpop.xlane.xlu0 %1871
        %1873 = vadd.xlane.f32.xlu0 %v1842
        %v1874 = vpop.xlane.xlu0 %1873
        %v1875 = vrcp.pop %v1844
        %v1876 = vrcp.pop %v1846
        %v1877 = vrcp.pop %v1848
        %v1878 = vrcp.pop %v1850
        %v1879 = vrcp.pop %v1852
        %v1880 = vrcp.pop %v1854
        %v1881 = vrcp.pop %v1856
        %v1882 = vrcp.pop %v1858
        %v1883 = vrcp.pop %v1860
        %v1884 = vrcp.pop %v1862
        %v1885 = vrcp.pop %v1864
        %v1886 = vrcp.pop %v1866
        %v1887 = vrcp.pop %v1868
        %v1888 = vrcp.pop %v1870
        %v1889 = vrcp.pop %v1872
        %v1890 = vrcp.pop %v1874
        %v1891 = vpack.c.bf16 %v1814, %v1812
        %v1892 = vpack.c.bf16 %v1818, %v1816
        %v1893 = vpack.c.bf16 %v1822, %v1820
        %v1894 = vpack.c.bf16 %v1826, %v1824
        %v1895 = vpack.c.bf16 %v1830, %v1828
        %v1896 = vpack.c.bf16 %v1834, %v1832
        %v1897 = vpack.c.bf16 %v1838, %v1836
        %v1898 = vpack.c.bf16 %v1842, %v1840
        %v1899 = vld [vmem:[#allocation22] sm:$0xf]
        %v1900 = vld [vmem:[#allocation22 + $0x4] sm:$0xf]
        %v1901 = vld [vmem:[#allocation22 + $0x8] sm:$0xf]
        %v1902 = vld [vmem:[#allocation22 + $0xc] sm:$0xf]
        %v1903 = vld [vmem:[#allocation22 + $0x10] sm:$0xf]
        %v1904 = vld [vmem:[#allocation22 + $0x14] sm:$0xf]
        %v1905 = vld [vmem:[#allocation22 + $0x18] sm:$0xf]
        %v1906 = vld [vmem:[#allocation22 + $0x1c] sm:$0xf]
        %v1907 = vld [vmem:[#allocation22 + $0x20] sm:$0xf]
        %v1908 = vld [vmem:[#allocation22 + $0x24] sm:$0xf]
        %v1909 = vld [vmem:[#allocation22 + $0x28] sm:$0xf]
        %v1910 = vld [vmem:[#allocation22 + $0x2c] sm:$0xf]
        %v1911 = vld [vmem:[#allocation22 + $0x30] sm:$0xf]
        %v1912 = vld [vmem:[#allocation22 + $0x34] sm:$0xf]
        %v1913 = vld [vmem:[#allocation22 + $0x38] sm:$0xf]
        %v1914 = vld [vmem:[#allocation22 + $0x3c] sm:$0xf]
        %v1931 = vunpack.c.l.b16 %v1899
        %v1932 = vunpack.c.l.b16 %v1900
        %v1933 = vunpack.c.l.b16 %v1901
        %v1934 = vunpack.c.l.b16 %v1902
        %v1935 = vunpack.c.l.b16 %v1903
        %v1936 = vunpack.c.l.b16 %v1904
        %v1937 = vunpack.c.l.b16 %v1905
        %v1938 = vunpack.c.l.b16 %v1906
        %v1939 = vunpack.c.l.b16 %v1907
        %v1940 = vunpack.c.l.b16 %v1908
        %v1941 = vunpack.c.l.b16 %v1909
        %v1942 = vunpack.c.l.b16 %v1910
        %v1943 = vunpack.c.l.b16 %v1911
        %v1944 = vunpack.c.l.b16 %v1912
        %v1945 = vunpack.c.l.b16 %v1913
        %v1946 = vunpack.c.l.b16 %v1914
        %v1947 = vpack.c.b16 %v1932, %v1931
        %v1948 = vpack.c.b16 %v1934, %v1933
        %v1949 = vpack.c.b16 %v1936, %v1935
        %v1950 = vpack.c.b16 %v1938, %v1937
        %v1951 = vpack.c.b16 %v1940, %v1939
        %v1952 = vpack.c.b16 %v1942, %v1941
        %v1953 = vpack.c.b16 %v1944, %v1943
        %v1954 = vpack.c.b16 %v1946, %v1945
        %1963 = vmatprep.subr.bf16.mxu0 0
        %1964 = vmatpush1.bf16.msra.mxu0 %v1947
        %1965 = vmatprep.subr.bf16.mxu0 0
        %1966 = vmatpush1.bf16.msra.mxu0 %v1948
        %1967 = vmatprep.subr.bf16.mxu0 0
        %1968 = vmatpush1.bf16.msra.mxu0 %v1949
        %1969 = vmatprep.subr.bf16.mxu0 0
        %1970 = vmatpush1.bf16.msra.mxu0 %v1950
        %1971 = vmatprep.subr.bf16.mxu0 0
        %1972 = vmatpush1.bf16.msra.mxu0 %v1951
        %1973 = vmatprep.subr.bf16.mxu0 0
        %1974 = vmatpush1.bf16.msra.mxu0 %v1952
        %1975 = vmatprep.subr.bf16.mxu0 0
        %1976 = vmatpush1.bf16.msra.mxu0 %v1953
        %1977 = vmatprep.subr.bf16.mxu0 0
        %1978 = vmatpush1.bf16.msra.mxu0 %v1954
        %1979 = vmatprep.subr.bf16.mxu0 0
        %1980 = vmatpush1.bf16.msra.mxu0 0
        %1981 = vmatprep.subr.bf16.mxu0 0
        %1982 = vmatpush1.bf16.msra.mxu0 0
        %1983 = vmatprep.subr.bf16.mxu0 0
        %1984 = vmatpush1.bf16.msra.mxu0 0
        %1985 = vmatprep.subr.bf16.mxu0 0
        %1986 = vmatpush1.bf16.msra.mxu0 0
        %1987 = vmatprep.subr.bf16.mxu0 0
        %1988 = vmatpush1.bf16.msra.mxu0 0
        %1989 = vmatprep.subr.bf16.mxu0 0
        %1990 = vmatpush1.bf16.msra.mxu0 0
        %1991 = vmatprep.subr.bf16.mxu0 0
        %1992 = vmatpush1.bf16.msra.mxu0 0
        %1993 = vmatprep.subr.bf16.mxu0 0
        %1994 = vmatpush1.bf16.msra.mxu0 0
        %1995 = vmatprep.mubr.bf16.mxu0 0
        %1996 = vmatmul.mubr.bf16.gmra.mrb[0].mxu0 %v1891
        %v1997 = vpop.f32.mrb[0].mxu0
        %v1998 = vadd.f32 0.0, %v1997
        %v1999 = vpop.f32.mrb[0].mxu0
        %v2000 = vpop.f32.mrb[0].mxu0
        %v2001 = vadd.f32 0.0, %v2000
        %v2002 = vpop.f32.mrb[0].mxu0
        %2003 = vmatprep.mubr.bf16.mxu0 0
        %2004 = vmatmul.mubr.bf16.gmra.mrb[0].mxu0 %v1892
        %v2005 = vpop.f32.mrb[0].mxu0
        %v2006 = vadd.f32 0.0, %v2005
        %v2007 = vpop.f32.mrb[0].mxu0
        %v2008 = vpop.f32.mrb[0].mxu0
        %v2009 = vadd.f32 0.0, %v2008
        %v2010 = vpop.f32.mrb[0].mxu0
        %2011 = vmatprep.mubr.bf16.mxu0 0
        %2012 = vmatmul.mubr.bf16.gmra.mrb[0].mxu0 %v1893
        %v2013 = vpop.f32.mrb[0].mxu0
        %v2014 = vadd.f32 0.0, %v2013
        %v2015 = vpop.f32.mrb[0].mxu0
        %v2016 = vpop.f32.mrb[0].mxu0
        %v2017 = vadd.f32 0.0, %v2016
        %v2018 = vpop.f32.mrb[0].mxu0
        %2019 = vmatprep.mubr.bf16.mxu0 0
        %2020 = vmatmul.mubr.bf16.gmra.mrb[0].mxu0 %v1894
        %v2021 = vpop.f32.mrb[0].mxu0
        %v2022 = vadd.f32 0.0, %v2021
        %v2023 = vpop.f32.mrb[0].mxu0
        %v2024 = vpop.f32.mrb[0].mxu0
        %v2025 = vadd.f32 0.0, %v2024
        %v2026 = vpop.f32.mrb[0].mxu0
        %2027 = vmatprep.mubr.bf16.mxu0 0
        %2028 = vmatmul.mubr.bf16.gmra.mrb[0].mxu0 %v1895
        %v2029 = vpop.f32.mrb[0].mxu0
        %v2030 = vadd.f32 0.0, %v2029
        %v2031 = vpop.f32.mrb[0].mxu0
        %v2032 = vpop.f32.mrb[0].mxu0
        %v2033 = vadd.f32 0.0, %v2032
        %v2034 = vpop.f32.mrb[0].mxu0
        %2035 = vmatprep.mubr.bf16.mxu0 0
        %2036 = vmatmul.mubr.bf16.gmra.mrb[0].mxu0 %v1896
        %v2037 = vpop.f32.mrb[0].mxu0
        %v2038 = vadd.f32 0.0, %v2037
        %v2039 = vpop.f32.mrb[0].mxu0
        %v2040 = vpop.f32.mrb[0].mxu0
        %v2041 = vadd.f32 0.0, %v2040
        %v2042 = vpop.f32.mrb[0].mxu0
        %2043 = vmatprep.mubr.bf16.mxu0 0
        %2044 = vmatmul.mubr.bf16.gmra.mrb[0].mxu0 %v1897
        %v2045 = vpop.f32.mrb[0].mxu0
        %v2046 = vadd.f32 0.0, %v2045
        %v2047 = vpop.f32.mrb[0].mxu0
        %v2048 = vpop.f32.mrb[0].mxu0
        %v2049 = vadd.f32 0.0, %v2048
        %v2050 = vpop.f32.mrb[0].mxu0
        %2051 = vmatprep.mubr.bf16.mxu0 0
        %2052 = vmatmul.mubr.bf16.gmra.mrb[0].mxu0 %v1898
        %v2053 = vpop.f32.mrb[0].mxu0
        %v2054 = vadd.f32 0.0, %v2053
        %v2055 = vpop.f32.mrb[0].mxu0
        %v2056 = vpop.f32.mrb[0].mxu0
        %v2057 = vadd.f32 0.0, %v2056
        %v2058 = vpop.f32.mrb[0].mxu0
        %2059 = vdwg.mxu0
        %v2060 = vmul.f32 %v1998, %v1875
        %v2061 = vmul.f32 %v2001, %v1876
        %v2062 = vmul.f32 %v2006, %v1877
        %v2063 = vmul.f32 %v2009, %v1878
        %v2064 = vmul.f32 %v2014, %v1879
        %v2065 = vmul.f32 %v2017, %v1880
        %v2066 = vmul.f32 %v2022, %v1881
        %v2067 = vmul.f32 %v2025, %v1882
        %v2068 = vmul.f32 %v2030, %v1883
        %v2069 = vmul.f32 %v2033, %v1884
        %v2070 = vmul.f32 %v2038, %v1885
        %v2071 = vmul.f32 %v2041, %v1886
        %v2072 = vmul.f32 %v2046, %v1887
        %v2073 = vmul.f32 %v2049, %v1888
        %v2074 = vmul.f32 %v2054, %v1889
        %v2075 = vmul.f32 %v2057, %v1890
        %v2076 = vld [vmem:[#allocation20] sm:$0xff]
        %v2077 = vld [vmem:[#allocation20 + $0x8] sm:$0xff]
        %v2078 = vld [vmem:[#allocation20 + $0x10] sm:$0xff]
        %v2079 = vld [vmem:[#allocation20 + $0x18] sm:$0xff]
        %v2080 = vld [vmem:[#allocation20 + $0x20] sm:$0xff]
        %v2081 = vld [vmem:[#allocation20 + $0x28] sm:$0xff]
        %v2082 = vld [vmem:[#allocation20 + $0x30] sm:$0xff]
        %v2083 = vld [vmem:[#allocation20 + $0x38] sm:$0xff]
        %v2084 = vld [vmem:[#allocation20 + $0x40] sm:$0xff]
        %v2085 = vld [vmem:[#allocation20 + $0x48] sm:$0xff]
        %v2086 = vld [vmem:[#allocation20 + $0x50] sm:$0xff]
        %v2087 = vld [vmem:[#allocation20 + $0x58] sm:$0xff]
        %v2088 = vld [vmem:[#allocation20 + $0x60] sm:$0xff]
        %v2089 = vld [vmem:[#allocation20 + $0x68] sm:$0xff]
        %v2090 = vld [vmem:[#allocation20 + $0x70] sm:$0xff]
        %v2091 = vld [vmem:[#allocation20 + $0x78] sm:$0xff]
        %v2092 = vmul.f32 %v2060, %v2076
        %v2093 = vmul.f32 %v2061, %v2077
        %v2094 = vmul.f32 %v2062, %v2078
        %v2095 = vmul.f32 %v2063, %v2079
        %v2096 = vmul.f32 %v2064, %v2080
        %v2097 = vmul.f32 %v2065, %v2081
        %v2098 = vmul.f32 %v2066, %v2082
        %v2099 = vmul.f32 %v2067, %v2083
        %v2100 = vmul.f32 %v2068, %v2084
        %v2101 = vmul.f32 %v2069, %v2085
        %v2102 = vmul.f32 %v2070, %v2086
        %v2103 = vmul.f32 %v2071, %v2087
        %v2104 = vmul.f32 %v2072, %v2088
        %v2105 = vmul.f32 %v2073, %v2089
        %v2106 = vmul.f32 %v2074, %v2090
        %v2107 = vmul.f32 %v2075, %v2091
        %v2108 = vmax.f32 %v2092, 0.0
        %v2109 = vmax.f32 %v2093, 0.0
        %v2110 = vmax.f32 %v2094, 0.0
        %v2111 = vmax.f32 %v2095, 0.0
        %v2112 = vmax.f32 %v2096, 0.0
        %v2113 = vmax.f32 %v2097, 0.0
        %v2114 = vmax.f32 %v2098, 0.0
        %v2115 = vmax.f32 %v2099, 0.0
        %v2116 = vmax.f32 %v2100, 0.0
        %v2117 = vmax.f32 %v2101, 0.0
        %v2118 = vmax.f32 %v2102, 0.0
        %v2119 = vmax.f32 %v2103, 0.0
        %v2120 = vmax.f32 %v2104, 0.0
        %v2121 = vmax.f32 %v2105, 0.0
        %v2122 = vmax.f32 %v2106, 0.0
        %v2123 = vmax.f32 %v2107, 0.0
        %v2124 = vrsqrt.pop %v2108
        %v2125 = vmul.f32 %v2108, %v2124
        %vm2126 = vcmp.eq.f32.partialorder %v2108, inf
        %v2127 = vsel %vm2126, %v2108, %v2125
        %vm2128 = vcmp.eq.f32.partialorder %v2108, 0.0
        %v2129 = vand.u32 %v2108, 2147483648
        %v2130 = vsel %vm2128, %v2129, %v2127
        %v2131 = vrsqrt.pop %v2109
        %v2132 = vmul.f32 %v2109, %v2131
        %vm2133 = vcmp.eq.f32.partialorder %v2109, inf
        %v2134 = vsel %vm2133, %v2109, %v2132
        %vm2135 = vcmp.eq.f32.partialorder %v2109, 0.0
        %v2136 = vand.u32 %v2109, 2147483648
        %v2137 = vsel %vm2135, %v2136, %v2134
        %v2138 = vrsqrt.pop %v2110
        %v2139 = vmul.f32 %v2110, %v2138
        %vm2140 = vcmp.eq.f32.partialorder %v2110, inf
        %v2141 = vsel %vm2140, %v2110, %v2139
        %vm2142 = vcmp.eq.f32.partialorder %v2110, 0.0
        %v2143 = vand.u32 %v2110, 2147483648
        %v2144 = vsel %vm2142, %v2143, %v2141
        %v2145 = vrsqrt.pop %v2111
        %v2146 = vmul.f32 %v2111, %v2145
        %vm2147 = vcmp.eq.f32.partialorder %v2111, inf
        %v2148 = vsel %vm2147, %v2111, %v2146
        %vm2149 = vcmp.eq.f32.partialorder %v2111, 0.0
        %v2150 = vand.u32 %v2111, 2147483648
        %v2151 = vsel %vm2149, %v2150, %v2148
        %v2152 = vrsqrt.pop %v2112
        %v2153 = vmul.f32 %v2112, %v2152
        %vm2154 = vcmp.eq.f32.partialorder %v2112, inf
        %v2155 = vsel %vm2154, %v2112, %v2153
        %vm2156 = vcmp.eq.f32.partialorder %v2112, 0.0
        %v2157 = vand.u32 %v2112, 2147483648
        %v2158 = vsel %vm2156, %v2157, %v2155
        %v2159 = vrsqrt.pop %v2113
        %v2160 = vmul.f32 %v2113, %v2159
        %vm2161 = vcmp.eq.f32.partialorder %v2113, inf
        %v2162 = vsel %vm2161, %v2113, %v2160
        %vm2163 = vcmp.eq.f32.partialorder %v2113, 0.0
        %v2164 = vand.u32 %v2113, 2147483648
        %v2165 = vsel %vm2163, %v2164, %v2162
        %v2166 = vrsqrt.pop %v2114
        %v2167 = vmul.f32 %v2114, %v2166
        %vm2168 = vcmp.eq.f32.partialorder %v2114, inf
        %v2169 = vsel %vm2168, %v2114, %v2167
        %vm2170 = vcmp.eq.f32.partialorder %v2114, 0.0
        %v2171 = vand.u32 %v2114, 2147483648
        %v2172 = vsel %vm2170, %v2171, %v2169
        %v2173 = vrsqrt.pop %v2115
        %v2174 = vmul.f32 %v2115, %v2173
        %vm2175 = vcmp.eq.f32.partialorder %v2115, inf
        %v2176 = vsel %vm2175, %v2115, %v2174
        %vm2177 = vcmp.eq.f32.partialorder %v2115, 0.0
        %v2178 = vand.u32 %v2115, 2147483648
        %v2179 = vsel %vm2177, %v2178, %v2176
        %v2180 = vrsqrt.pop %v2116
        %v2181 = vmul.f32 %v2116, %v2180
        %vm2182 = vcmp.eq.f32.partialorder %v2116, inf
        %v2183 = vsel %vm2182, %v2116, %v2181
        %vm2184 = vcmp.eq.f32.partialorder %v2116, 0.0
        %v2185 = vand.u32 %v2116, 2147483648
        %v2186 = vsel %vm2184, %v2185, %v2183
        %v2187 = vrsqrt.pop %v2117
        %v2188 = vmul.f32 %v2117, %v2187
        %vm2189 = vcmp.eq.f32.partialorder %v2117, inf
        %v2190 = vsel %vm2189, %v2117, %v2188
        %vm2191 = vcmp.eq.f32.partialorder %v2117, 0.0
        %v2192 = vand.u32 %v2117, 2147483648
        %v2193 = vsel %vm2191, %v2192, %v2190
        %v2194 = vrsqrt.pop %v2118
        %v2195 = vmul.f32 %v2118, %v2194
        %vm2196 = vcmp.eq.f32.partialorder %v2118, inf
        %v2197 = vsel %vm2196, %v2118, %v2195
        %vm2198 = vcmp.eq.f32.partialorder %v2118, 0.0
        %v2199 = vand.u32 %v2118, 2147483648
        %v2200 = vsel %vm2198, %v2199, %v2197
        %v2201 = vrsqrt.pop %v2119
        %v2202 = vmul.f32 %v2119, %v2201
        %vm2203 = vcmp.eq.f32.partialorder %v2119, inf
        %v2204 = vsel %vm2203, %v2119, %v2202
        %vm2205 = vcmp.eq.f32.partialorder %v2119, 0.0
        %v2206 = vand.u32 %v2119, 2147483648
        %v2207 = vsel %vm2205, %v2206, %v2204
        %v2208 = vrsqrt.pop %v2120
        %v2209 = vmul.f32 %v2120, %v2208
        %vm2210 = vcmp.eq.f32.partialorder %v2120, inf
        %v2211 = vsel %vm2210, %v2120, %v2209
        %vm2212 = vcmp.eq.f32.partialorder %v2120, 0.0
        %v2213 = vand.u32 %v2120, 2147483648
        %v2214 = vsel %vm2212, %v2213, %v2211
        %v2215 = vrsqrt.pop %v2121
        %v2216 = vmul.f32 %v2121, %v2215
        %vm2217 = vcmp.eq.f32.partialorder %v2121, inf
        %v2218 = vsel %vm2217, %v2121, %v2216
        %vm2219 = vcmp.eq.f32.partialorder %v2121, 0.0
        %v2220 = vand.u32 %v2121, 2147483648
        %v2221 = vsel %vm2219, %v2220, %v2218
        %v2222 = vrsqrt.pop %v2122
        %v2223 = vmul.f32 %v2122, %v2222
        %vm2224 = vcmp.eq.f32.partialorder %v2122, inf
        %v2225 = vsel %vm2224, %v2122, %v2223
        %vm2226 = vcmp.eq.f32.partialorder %v2122, 0.0
        %v2227 = vand.u32 %v2122, 2147483648
        %v2228 = vsel %vm2226, %v2227, %v2225
        %v2229 = vrsqrt.pop %v2123
        %v2230 = vmul.f32 %v2123, %v2229
        %vm2231 = vcmp.eq.f32.partialorder %v2123, inf
        %v2232 = vsel %vm2231, %v2123, %v2230
        %vm2233 = vcmp.eq.f32.partialorder %v2123, 0.0
        %v2234 = vand.u32 %v2123, 2147483648
        %v2235 = vsel %vm2233, %v2234, %v2232
        %s2236 = sld [smem:[#allocation3 + %s56]]
        %s2237 = sand.u32 2147483647, %s2236
        %s2238 = ssub.f32 0.0, %s2237
        %v2239 = vstv %s2238
        %v2240 = vmul.f32 %v2130, %v2239
        %v2241 = vmul.f32 %v2137, %v2239
        %v2242 = vmul.f32 %v2144, %v2239
        %v2243 = vmul.f32 %v2151, %v2239
        %v2244 = vmul.f32 %v2158, %v2239
        %v2245 = vmul.f32 %v2165, %v2239
        %v2246 = vmul.f32 %v2172, %v2239
        %v2247 = vmul.f32 %v2179, %v2239
        %v2248 = vmul.f32 %v2186, %v2239
        %v2249 = vmul.f32 %v2193, %v2239
        %v2250 = vmul.f32 %v2200, %v2239
        %v2251 = vmul.f32 %v2207, %v2239
        %v2252 = vmul.f32 %v2214, %v2239
        %v2253 = vmul.f32 %v2221, %v2239
        %v2254 = vmul.f32 %v2228, %v2239
        %v2255 = vmul.f32 %v2235, %v2239
        %v2256 = vmul.f32 %v2240, 1.442695
        %v2257 = vpow.pop %v2256
        %v2258 = vmul.f32 %v2241, 1.442695
        %v2259 = vpow.pop %v2258
        %v2260 = vmul.f32 %v2242, 1.442695
        %v2261 = vpow.pop %v2260
        %v2262 = vmul.f32 %v2243, 1.442695
        %v2263 = vpow.pop %v2262
        %v2264 = vmul.f32 %v2244, 1.442695
        %v2265 = vpow.pop %v2264
        %v2266 = vmul.f32 %v2245, 1.442695
        %v2267 = vpow.pop %v2266
        %v2268 = vmul.f32 %v2246, 1.442695
        %v2269 = vpow.pop %v2268
        %v2270 = vmul.f32 %v2247, 1.442695
        %v2271 = vpow.pop %v2270
        %v2272 = vmul.f32 %v2248, 1.442695
        %v2273 = vpow.pop %v2272
        %v2274 = vmul.f32 %v2249, 1.442695
        %v2275 = vpow.pop %v2274
        %v2276 = vmul.f32 %v2250, 1.442695
        %v2277 = vpow.pop %v2276
        %v2278 = vmul.f32 %v2251, 1.442695
        %v2279 = vpow.pop %v2278
        %v2280 = vmul.f32 %v2252, 1.442695
        %v2281 = vpow.pop %v2280
        %v2282 = vmul.f32 %v2253, 1.442695
        %v2283 = vpow.pop %v2282
        %v2284 = vmul.f32 %v2254, 1.442695
        %v2285 = vpow.pop %v2284
        %v2286 = vmul.f32 %v2255, 1.442695
        %v2287 = vpow.pop %v2286
        %v2288 = vmax.f32 %v2257, 1e-05
        %v2289 = vmax.f32 %v2259, 1e-05
        %v2290 = vmax.f32 %v2261, 1e-05
        %v2291 = vmax.f32 %v2263, 1e-05
        %v2292 = vmax.f32 %v2265, 1e-05
        %v2293 = vmax.f32 %v2267, 1e-05
        %v2294 = vmax.f32 %v2269, 1e-05
        %v2295 = vmax.f32 %v2271, 1e-05
        %v2296 = vmax.f32 %v2273, 1e-05
        %v2297 = vmax.f32 %v2275, 1e-05
        %v2298 = vmax.f32 %v2277, 1e-05
        %v2299 = vmax.f32 %v2279, 1e-05
        %v2300 = vmax.f32 %v2281, 1e-05
        %v2301 = vmax.f32 %v2283, 1e-05
        %v2302 = vmax.f32 %v2285, 1e-05
        %v2303 = vmax.f32 %v2287, 1e-05
        %v2304 = vmin.f32 %v2288, 100000.0
        %v2305 = vmin.f32 %v2289, 100000.0
        %v2306 = vmin.f32 %v2290, 100000.0
        %v2307 = vmin.f32 %v2291, 100000.0
        %v2308 = vmin.f32 %v2292, 100000.0
        %v2309 = vmin.f32 %v2293, 100000.0
        %v2310 = vmin.f32 %v2294, 100000.0
        %v2311 = vmin.f32 %v2295, 100000.0
        %v2312 = vmin.f32 %v2296, 100000.0
        %v2313 = vmin.f32 %v2297, 100000.0
        %v2314 = vmin.f32 %v2298, 100000.0
        %v2315 = vmin.f32 %v2299, 100000.0
        %v2316 = vmin.f32 %v2300, 100000.0
        %v2317 = vmin.f32 %v2301, 100000.0
        %v2318 = vmin.f32 %v2302, 100000.0
        %v2319 = vmin.f32 %v2303, 100000.0
        %v2320 = vmul.f32 %v1669, %v2304
        %v2321 = vmul.f32 %v1672, %v2305
        %v2322 = vmul.f32 %v1677, %v2306
        %v2323 = vmul.f32 %v1680, %v2307
        %v2324 = vmul.f32 %v1685, %v2308
        %v2325 = vmul.f32 %v1688, %v2309
        %v2326 = vmul.f32 %v1693, %v2310
        %v2327 = vmul.f32 %v1696, %v2311
        %v2328 = vmul.f32 %v1701, %v2312
        %v2329 = vmul.f32 %v1704, %v2313
        %v2330 = vmul.f32 %v1709, %v2314
        %v2331 = vmul.f32 %v1712, %v2315
        %v2332 = vmul.f32 %v1717, %v2316
        %v2333 = vmul.f32 %v1720, %v2317
        %v2334 = vmul.f32 %v1725, %v2318
        %v2335 = vmul.f32 %v1728, %v2319
        %v2336 = vadd.f32 %v2320, %v1731
        %v2337 = vadd.f32 %v2321, %v1732
        %v2338 = vadd.f32 %v2322, %v1733
        %v2339 = vadd.f32 %v2323, %v1734
        %v2340 = vadd.f32 %v2324, %v1735
        %v2341 = vadd.f32 %v2325, %v1736
        %v2342 = vadd.f32 %v2326, %v1737
        %v2343 = vadd.f32 %v2327, %v1738
        %v2344 = vadd.f32 %v2328, %v1739
        %v2345 = vadd.f32 %v2329, %v1740
        %v2346 = vadd.f32 %v2330, %v1741
        %v2347 = vadd.f32 %v2331, %v1742
        %v2348 = vadd.f32 %v2332, %v1743
        %v2349 = vadd.f32 %v2333, %v1744
        %v2350 = vadd.f32 %v2334, %v1745
        %v2351 = vadd.f32 %v2335, %v1746
        %2352 = vmax.xlane.f32.xlu0 %v2336
        %v2353 = vpop.xlane.xlu0 %2352
        %2354 = vmax.xlane.f32.xlu0 %v2337
        %v2355 = vpop.xlane.xlu0 %2354
        %2356 = vmax.xlane.f32.xlu0 %v2338
        %v2357 = vpop.xlane.xlu0 %2356
        %2358 = vmax.xlane.f32.xlu0 %v2339
        %v2359 = vpop.xlane.xlu0 %2358
        %2360 = vmax.xlane.f32.xlu0 %v2340
        %v2361 = vpop.xlane.xlu0 %2360
        %2362 = vmax.xlane.f32.xlu0 %v2341
        %v2363 = vpop.xlane.xlu0 %2362
        %2364 = vmax.xlane.f32.xlu0 %v2342
        %v2365 = vpop.xlane.xlu0 %2364
        %2366 = vmax.xlane.f32.xlu0 %v2343
        %v2367 = vpop.xlane.xlu0 %2366
        %2368 = vmax.xlane.f32.xlu0 %v2344
        %v2369 = vpop.xlane.xlu0 %2368
        %2370 = vmax.xlane.f32.xlu0 %v2345
        %v2371 = vpop.xlane.xlu0 %2370
        %2372 = vmax.xlane.f32.xlu0 %v2346
        %v2373 = vpop.xlane.xlu0 %2372
        %2374 = vmax.xlane.f32.xlu0 %v2347
        %v2375 = vpop.xlane.xlu0 %2374
        %2376 = vmax.xlane.f32.xlu0 %v2348
        %v2377 = vpop.xlane.xlu0 %2376
        %2378 = vmax.xlane.f32.xlu0 %v2349
        %v2379 = vpop.xlane.xlu0 %2378
        %2380 = vmax.xlane.f32.xlu0 %v2350
        %v2381 = vpop.xlane.xlu0 %2380
        %2382 = vmax.xlane.f32.xlu0 %v2351
        %v2383 = vpop.xlane.xlu0 %2382
        %v2384 = vsub.f32 %v2336, %v2353
        %v2385 = vsub.f32 %v2337, %v2355
        %v2386 = vsub.f32 %v2338, %v2357
        %v2387 = vsub.f32 %v2339, %v2359
        %v2388 = vsub.f32 %v2340, %v2361
        %v2389 = vsub.f32 %v2341, %v2363
        %v2390 = vsub.f32 %v2342, %v2365
        %v2391 = vsub.f32 %v2343, %v2367
        %v2392 = vsub.f32 %v2344, %v2369
        %v2393 = vsub.f32 %v2345, %v2371
        %v2394 = vsub.f32 %v2346, %v2373
        %v2395 = vsub.f32 %v2347, %v2375
        %v2396 = vsub.f32 %v2348, %v2377
        %v2397 = vsub.f32 %v2349, %v2379
        %v2398 = vsub.f32 %v2350, %v2381
        %v2399 = vsub.f32 %v2351, %v2383
        %v2400 = vmul.f32 %v2384, 1.442695
        %v2401 = vpow.pop %v2400
        %v2402 = vmul.f32 %v2385, 1.442695
        %v2403 = vpow.pop %v2402
        %v2404 = vmul.f32 %v2386, 1.442695
        %v2405 = vpow.pop %v2404
        %v2406 = vmul.f32 %v2387, 1.442695
        %v2407 = vpow.pop %v2406
        %v2408 = vmul.f32 %v2388, 1.442695
        %v2409 = vpow.pop %v2408
        %v2410 = vmul.f32 %v2389, 1.442695
        %v2411 = vpow.pop %v2410
        %v2412 = vmul.f32 %v2390, 1.442695
        %v2413 = vpow.pop %v2412
        %v2414 = vmul.f32 %v2391, 1.442695
        %v2415 = vpow.pop %v2414
        %v2416 = vmul.f32 %v2392, 1.442695
        %v2417 = vpow.pop %v2416
        %v2418 = vmul.f32 %v2393, 1.442695
        %v2419 = vpow.pop %v2418
        %v2420 = vmul.f32 %v2394, 1.442695
        %v2421 = vpow.pop %v2420
        %v2422 = vmul.f32 %v2395, 1.442695
        %v2423 = vpow.pop %v2422
        %v2424 = vmul.f32 %v2396, 1.442695
        %v2425 = vpow.pop %v2424
        %v2426 = vmul.f32 %v2397, 1.442695
        %v2427 = vpow.pop %v2426
        %v2428 = vmul.f32 %v2398, 1.442695
        %v2429 = vpow.pop %v2428
        %v2430 = vmul.f32 %v2399, 1.442695
        %v2431 = vpow.pop %v2430
        %2432 = vadd.xlane.f32.xlu0 %v2401
        %v2433 = vpop.xlane.xlu0 %2432
        %2434 = vadd.xlane.f32.xlu0 %v2403
        %v2435 = vpop.xlane.xlu0 %2434
        %2436 = vadd.xlane.f32.xlu0 %v2405
        %v2437 = vpop.xlane.xlu0 %2436
        %2438 = vadd.xlane.f32.xlu0 %v2407
        %v2439 = vpop.xlane.xlu0 %2438
        %2440 = vadd.xlane.f32.xlu0 %v2409
        %v2441 = vpop.xlane.xlu0 %2440
        %2442 = vadd.xlane.f32.xlu0 %v2411
        %v2443 = vpop.xlane.xlu0 %2442
        %2444 = vadd.xlane.f32.xlu0 %v2413
        %v2445 = vpop.xlane.xlu0 %2444
        %2446 = vadd.xlane.f32.xlu0 %v2415
        %v2447 = vpop.xlane.xlu0 %2446
        %2448 = vadd.xlane.f32.xlu0 %v2417
        %v2449 = vpop.xlane.xlu0 %2448
        %2450 = vadd.xlane.f32.xlu0 %v2419
        %v2451 = vpop.xlane.xlu0 %2450
        %2452 = vadd.xlane.f32.xlu0 %v2421
        %v2453 = vpop.xlane.xlu0 %2452
        %2454 = vadd.xlane.f32.xlu0 %v2423
        %v2455 = vpop.xlane.xlu0 %2454
        %2456 = vadd.xlane.f32.xlu0 %v2425
        %v2457 = vpop.xlane.xlu0 %2456
        %2458 = vadd.xlane.f32.xlu0 %v2427
        %v2459 = vpop.xlane.xlu0 %2458
        %2460 = vadd.xlane.f32.xlu0 %v2429
        %v2461 = vpop.xlane.xlu0 %2460
        %2462 = vadd.xlane.f32.xlu0 %v2431
        %v2463 = vpop.xlane.xlu0 %2462
        %v2464 = vrcp.pop %v2433
        %v2465 = vmul.f32 1.0, %v2464
        %v2466 = vrcp.pop %v2435
        %v2467 = vmul.f32 1.0, %v2466
        %v2468 = vrcp.pop %v2437
        %v2469 = vmul.f32 1.0, %v2468
        %v2470 = vrcp.pop %v2439
        %v2471 = vmul.f32 1.0, %v2470
        %v2472 = vrcp.pop %v2441
        %v2473 = vmul.f32 1.0, %v2472
        %v2474 = vrcp.pop %v2443
        %v2475 = vmul.f32 1.0, %v2474
        %v2476 = vrcp.pop %v2445
        %v2477 = vmul.f32 1.0, %v2476
        %v2478 = vrcp.pop %v2447
        %v2479 = vmul.f32 1.0, %v2478
        %v2480 = vrcp.pop %v2449
        %v2481 = vmul.f32 1.0, %v2480
        %v2482 = vrcp.pop %v2451
        %v2483 = vmul.f32 1.0, %v2482
        %v2484 = vrcp.pop %v2453
        %v2485 = vmul.f32 1.0, %v2484
        %v2486 = vrcp.pop %v2455
        %v2487 = vmul.f32 1.0, %v2486
        %v2488 = vrcp.pop %v2457
        %v2489 = vmul.f32 1.0, %v2488
        %v2490 = vrcp.pop %v2459
        %v2491 = vmul.f32 1.0, %v2490
        %v2492 = vrcp.pop %v2461
        %v2493 = vmul.f32 1.0, %v2492
        %v2494 = vrcp.pop %v2463
        %v2495 = vmul.f32 1.0, %v2494
        %v2496 = vmul.f32 %v2401, %v2465
        %v2497 = vmul.f32 %v2403, %v2467
        %v2498 = vmul.f32 %v2405, %v2469
        %v2499 = vmul.f32 %v2407, %v2471
        %v2500 = vmul.f32 %v2409, %v2473
        %v2501 = vmul.f32 %v2411, %v2475
        %v2502 = vmul.f32 %v2413, %v2477
        %v2503 = vmul.f32 %v2415, %v2479
        %v2504 = vmul.f32 %v2417, %v2481
        %v2505 = vmul.f32 %v2419, %v2483
        %v2506 = vmul.f32 %v2421, %v2485
        %v2507 = vmul.f32 %v2423, %v2487
        %v2508 = vmul.f32 %v2425, %v2489
        %v2509 = vmul.f32 %v2427, %v2491
        %v2510 = vmul.f32 %v2429, %v2493
        %v2511 = vmul.f32 %v2431, %v2495
        %v2512 = vld [vmem:[#allocation19] sm:$0xff]
        %v2513 = vld [vmem:[#allocation19 + $0x8] sm:$0xff]
        %v2514 = vld [vmem:[#allocation19 + $0x10] sm:$0xff]
        %v2515 = vld [vmem:[#allocation19 + $0x18] sm:$0xff]
        %v2516 = vld [vmem:[#allocation19 + $0x20] sm:$0xff]
        %v2517 = vld [vmem:[#allocation19 + $0x28] sm:$0xff]
        %v2518 = vld [vmem:[#allocation19 + $0x30] sm:$0xff]
        %v2519 = vld [vmem:[#allocation19 + $0x38] sm:$0xff]
        %v2520 = vld [vmem:[#allocation19 + $0x40] sm:$0xff]
        %v2521 = vld [vmem:[#allocation19 + $0x48] sm:$0xff]
        %v2522 = vld [vmem:[#allocation19 + $0x50] sm:$0xff]
        %v2523 = vld [vmem:[#allocation19 + $0x58] sm:$0xff]
        %v2524 = vld [vmem:[#allocation19 + $0x60] sm:$0xff]
        %v2525 = vld [vmem:[#allocation19 + $0x68] sm:$0xff]
        %v2526 = vld [vmem:[#allocation19 + $0x70] sm:$0xff]
        %v2527 = vld [vmem:[#allocation19 + $0x78] sm:$0xff]
        %v2528 = vmul.f32 %v2496, %v2512
        %v2529 = vmul.f32 %v2497, %v2513
        %v2530 = vmul.f32 %v2498, %v2514
        %v2531 = vmul.f32 %v2499, %v2515
        %v2532 = vmul.f32 %v2500, %v2516
        %v2533 = vmul.f32 %v2501, %v2517
        %v2534 = vmul.f32 %v2502, %v2518
        %v2535 = vmul.f32 %v2503, %v2519
        %v2536 = vmul.f32 %v2504, %v2520
        %v2537 = vmul.f32 %v2505, %v2521
        %v2538 = vmul.f32 %v2506, %v2522
        %v2539 = vmul.f32 %v2507, %v2523
        %v2540 = vmul.f32 %v2508, %v2524
        %v2541 = vmul.f32 %v2509, %v2525
        %v2542 = vmul.f32 %v2510, %v2526
        %v2543 = vmul.f32 %v2511, %v2527
        %2544 = vmax.xlane.f32.xlu0 %v2528
        %v2545 = vpop.xlane.xlu0 %2544
        %2546 = vmax.xlane.f32.xlu0 %v2529
        %v2547 = vpop.xlane.xlu0 %2546
        %2548 = vmax.xlane.f32.xlu0 %v2530
        %v2549 = vpop.xlane.xlu0 %2548
        %2550 = vmax.xlane.f32.xlu0 %v2531
        %v2551 = vpop.xlane.xlu0 %2550
        %2552 = vmax.xlane.f32.xlu0 %v2532
        %v2553 = vpop.xlane.xlu0 %2552
        %2554 = vmax.xlane.f32.xlu0 %v2533
        %v2555 = vpop.xlane.xlu0 %2554
        %2556 = vmax.xlane.f32.xlu0 %v2534
        %v2557 = vpop.xlane.xlu0 %2556
        %2558 = vmax.xlane.f32.xlu0 %v2535
        %v2559 = vpop.xlane.xlu0 %2558
        %2560 = vmax.xlane.f32.xlu0 %v2536
        %v2561 = vpop.xlane.xlu0 %2560
        %2562 = vmax.xlane.f32.xlu0 %v2537
        %v2563 = vpop.xlane.xlu0 %2562
        %2564 = vmax.xlane.f32.xlu0 %v2538
        %v2565 = vpop.xlane.xlu0 %2564
        %2566 = vmax.xlane.f32.xlu0 %v2539
        %v2567 = vpop.xlane.xlu0 %2566
        %2568 = vmax.xlane.f32.xlu0 %v2540
        %v2569 = vpop.xlane.xlu0 %2568
        %2570 = vmax.xlane.f32.xlu0 %v2541
        %v2571 = vpop.xlane.xlu0 %2570
        %2572 = vmax.xlane.f32.xlu0 %v2542
        %v2573 = vpop.xlane.xlu0 %2572
        %2574 = vmax.xlane.f32.xlu0 %v2543
        %v2575 = vpop.xlane.xlu0 %2574
        %v2576 = vadd.f32 %v2545, 1e-08
        %v2577 = vadd.f32 %v2547, 1e-08
        %v2578 = vadd.f32 %v2549, 1e-08
        %v2579 = vadd.f32 %v2551, 1e-08
        %v2580 = vadd.f32 %v2553, 1e-08
        %v2581 = vadd.f32 %v2555, 1e-08
        %v2582 = vadd.f32 %v2557, 1e-08
        %v2583 = vadd.f32 %v2559, 1e-08
        %v2584 = vadd.f32 %v2561, 1e-08
        %v2585 = vadd.f32 %v2563, 1e-08
        %v2586 = vadd.f32 %v2565, 1e-08
        %v2587 = vadd.f32 %v2567, 1e-08
        %v2588 = vadd.f32 %v2569, 1e-08
        %v2589 = vadd.f32 %v2571, 1e-08
        %v2590 = vadd.f32 %v2573, 1e-08
        %v2591 = vadd.f32 %v2575, 1e-08
        %v2592 = vrcp.pop %v2576
        %v2593 = vmul.f32 1.0, %v2592
        %v2594 = vrcp.pop %v2577
        %v2595 = vmul.f32 1.0, %v2594
        %v2596 = vrcp.pop %v2578
        %v2597 = vmul.f32 1.0, %v2596
        %v2598 = vrcp.pop %v2579
        %v2599 = vmul.f32 1.0, %v2598
        %v2600 = vrcp.pop %v2580
        %v2601 = vmul.f32 1.0, %v2600
        %v2602 = vrcp.pop %v2581
        %v2603 = vmul.f32 1.0, %v2602
        %v2604 = vrcp.pop %v2582
        %v2605 = vmul.f32 1.0, %v2604
        %v2606 = vrcp.pop %v2583
        %v2607 = vmul.f32 1.0, %v2606
        %v2608 = vrcp.pop %v2584
        %v2609 = vmul.f32 1.0, %v2608
        %v2610 = vrcp.pop %v2585
        %v2611 = vmul.f32 1.0, %v2610
        %v2612 = vrcp.pop %v2586
        %v2613 = vmul.f32 1.0, %v2612
        %v2614 = vrcp.pop %v2587
        %v2615 = vmul.f32 1.0, %v2614
        %v2616 = vrcp.pop %v2588
        %v2617 = vmul.f32 1.0, %v2616
        %v2618 = vrcp.pop %v2589
        %v2619 = vmul.f32 1.0, %v2618
        %v2620 = vrcp.pop %v2590
        %v2621 = vmul.f32 1.0, %v2620
        %v2622 = vrcp.pop %v2591
        %v2623 = vmul.f32 1.0, %v2622
        %v2624 = vmin.f32 %v2593, 5.0
        %v2625 = vmin.f32 %v2595, 5.0
        %v2626 = vmin.f32 %v2597, 5.0
        %v2627 = vmin.f32 %v2599, 5.0
        %v2628 = vmin.f32 %v2601, 5.0
        %v2629 = vmin.f32 %v2603, 5.0
        %v2630 = vmin.f32 %v2605, 5.0
        %v2631 = vmin.f32 %v2607, 5.0
        %v2632 = vmin.f32 %v2609, 5.0
        %v2633 = vmin.f32 %v2611, 5.0
        %v2634 = vmin.f32 %v2613, 5.0
        %v2635 = vmin.f32 %v2615, 5.0
        %v2636 = vmin.f32 %v2617, 5.0
        %v2637 = vmin.f32 %v2619, 5.0
        %v2638 = vmin.f32 %v2621, 5.0
        %v2639 = vmin.f32 %v2623, 5.0
        %v2640 = vmul.f32 %v2528, %v2624
        %v2641 = vmul.f32 %v2529, %v2625
        %v2642 = vmul.f32 %v2530, %v2626
        %v2643 = vmul.f32 %v2531, %v2627
        %v2644 = vmul.f32 %v2532, %v2628
        %v2645 = vmul.f32 %v2533, %v2629
        %v2646 = vmul.f32 %v2534, %v2630
        %v2647 = vmul.f32 %v2535, %v2631
        %v2648 = vmul.f32 %v2536, %v2632
        %v2649 = vmul.f32 %v2537, %v2633
        %v2650 = vmul.f32 %v2538, %v2634
        %v2651 = vmul.f32 %v2539, %v2635
        %v2652 = vmul.f32 %v2540, %v2636
        %v2653 = vmul.f32 %v2541, %v2637
        %v2654 = vmul.f32 %v2542, %v2638
        %v2655 = vmul.f32 %v2543, %v2639
        %v2656 = vpack.c.bf16 %v2641, %v2640
        %v2657 = vpack.c.bf16 %v2643, %v2642
        %v2658 = vpack.c.bf16 %v2645, %v2644
        %v2659 = vpack.c.bf16 %v2647, %v2646
        %v2660 = vpack.c.bf16 %v2649, %v2648
        %v2661 = vpack.c.bf16 %v2651, %v2650
        %v2662 = vpack.c.bf16 %v2653, %v2652
        %v2663 = vpack.c.bf16 %v2655, %v2654
        %v2672 = vunpack.c.l.b16 %v2656
        %v2673 = vunpack.c.h.b16 %v2656
        %v2674 = vunpack.c.l.b16 %v2657
        %v2675 = vunpack.c.h.b16 %v2657
        %v2676 = vunpack.c.l.b16 %v2658
        %v2677 = vunpack.c.h.b16 %v2658
        %v2678 = vunpack.c.l.b16 %v2659
        %v2679 = vunpack.c.h.b16 %v2659
        %v2680 = vunpack.c.l.b16 %v2660
        %v2681 = vunpack.c.h.b16 %v2660
        %v2682 = vunpack.c.l.b16 %v2661
        %v2683 = vunpack.c.h.b16 %v2661
        %v2684 = vunpack.c.l.b16 %v2662
        %v2685 = vunpack.c.h.b16 %v2662
        %v2686 = vunpack.c.l.b16 %v2663
        %v2687 = vunpack.c.h.b16 %v2663
        %v2688 = vpack.c.b16 %v2672, %v2672
        %v2689 = vpack.c.b16 %v2673, %v2673
        %v2690 = vpack.c.b16 %v2674, %v2674
        %v2691 = vpack.c.b16 %v2675, %v2675
        %v2692 = vpack.c.b16 %v2676, %v2676
        %v2693 = vpack.c.b16 %v2677, %v2677
        %v2694 = vpack.c.b16 %v2678, %v2678
        %v2695 = vpack.c.b16 %v2679, %v2679
        %v2696 = vpack.c.b16 %v2680, %v2680
        %v2697 = vpack.c.b16 %v2681, %v2681
        %v2698 = vpack.c.b16 %v2682, %v2682
        %v2699 = vpack.c.b16 %v2683, %v2683
        %v2700 = vpack.c.b16 %v2684, %v2684
        %v2701 = vpack.c.b16 %v2685, %v2685
        %v2702 = vpack.c.b16 %v2686, %v2686
        %v2703 = vpack.c.b16 %v2687, %v2687
        %2720 = vst [vmem:[%s941] sm:$0xf] %v2688
        %2721 = vst [vmem:[%s941 + $0x4] sm:$0xf] %v2689
        %2722 = vst [vmem:[%s941 + $0x8] sm:$0xf] %v2690
        %2723 = vst [vmem:[%s941 + $0xc] sm:$0xf] %v2691
        %2724 = vst [vmem:[%s941 + $0x10] sm:$0xf] %v2692
        %2725 = vst [vmem:[%s941 + $0x14] sm:$0xf] %v2693
        %2726 = vst [vmem:[%s941 + $0x18] sm:$0xf] %v2694
        %2727 = vst [vmem:[%s941 + $0x1c] sm:$0xf] %v2695
        %2728 = vst [vmem:[%s941 + $0x20] sm:$0xf] %v2696
        %2729 = vst [vmem:[%s941 + $0x24] sm:$0xf] %v2697
        %2730 = vst [vmem:[%s941 + $0x28] sm:$0xf] %v2698
        %2731 = vst [vmem:[%s941 + $0x2c] sm:$0xf] %v2699
        %2732 = vst [vmem:[%s941 + $0x30] sm:$0xf] %v2700
        %2733 = vst [vmem:[%s941 + $0x34] sm:$0xf] %v2701
        %2734 = vst [vmem:[%s941 + $0x38] sm:$0xf] %v2702
        %2735 = vst [vmem:[%s941 + $0x3c] sm:$0xf] %v2703
        %2736 = vmatprep.subr.bf16.mxu0 0
        %2737 = vmatpush1.bf16.msra.mxu0 %v1626
        %2738 = vmatprep.subr.bf16.mxu0 0
        %2739 = vmatpush1.bf16.msra.mxu0 %v1627
        %2740 = vmatprep.subr.bf16.mxu0 0
        %2741 = vmatpush1.bf16.msra.mxu0 %v1628
        %2742 = vmatprep.subr.bf16.mxu0 0
        %2743 = vmatpush1.bf16.msra.mxu0 %v1629
        %2744 = vmatprep.subr.bf16.mxu0 0
        %2745 = vmatpush1.bf16.msra.mxu0 %v1630
        %2746 = vmatprep.subr.bf16.mxu0 0
        %2747 = vmatpush1.bf16.msra.mxu0 %v1631
        %2748 = vmatprep.subr.bf16.mxu0 0
        %2749 = vmatpush1.bf16.msra.mxu0 %v1632
        %2750 = vmatprep.subr.bf16.mxu0 0
        %2751 = vmatpush1.bf16.msra.mxu0 %v1633
        %2752 = vmatprep.subr.bf16.mxu0 0
        %2753 = vmatpush1.bf16.msra.mxu0 0
        %2754 = vmatprep.subr.bf16.mxu0 0
        %2755 = vmatpush1.bf16.msra.mxu0 0
        %2756 = vmatprep.subr.bf16.mxu0 0
        %2757 = vmatpush1.bf16.msra.mxu0 0
        %2758 = vmatprep.subr.bf16.mxu0 0
        %2759 = vmatpush1.bf16.msra.mxu0 0
        %2760 = vmatprep.subr.bf16.mxu0 0
        %2761 = vmatpush1.bf16.msra.mxu0 0
        %2762 = vmatprep.subr.bf16.mxu0 0
        %2763 = vmatpush1.bf16.msra.mxu0 0
        %2764 = vmatprep.subr.bf16.mxu0 0
        %2765 = vmatpush1.bf16.msra.mxu0 0
        %2766 = vmatprep.subr.bf16.mxu0 0
        %2767 = vmatpush1.bf16.msra.mxu0 0
        %2768 = vmatprep.mubr.bf16.mxu0 0
        %2769 = vmatmul.mubr.bf16.gmra.mrb[0].mxu0 %v2656
        %v2770 = vpop.f32.mrb[0].mxu0
        %v2771 = vadd.f32 0.0, %v2770
        %v2772 = vpop.f32.mrb[0].mxu0
        %v2773 = vpop.f32.mrb[0].mxu0
        %v2774 = vadd.f32 0.0, %v2773
        %v2775 = vpop.f32.mrb[0].mxu0
        %2776 = vmatprep.mubr.bf16.mxu0 0
        %2777 = vmatmul.mubr.bf16.gmra.mrb[0].mxu0 %v2657
        %v2778 = vpop.f32.mrb[0].mxu0
        %v2779 = vadd.f32 0.0, %v2778
        %v2780 = vpop.f32.mrb[0].mxu0
        %v2781 = vpop.f32.mrb[0].mxu0
        %v2782 = vadd.f32 0.0, %v2781
        %v2783 = vpop.f32.mrb[0].mxu0
        %2784 = vmatprep.mubr.bf16.mxu0 0
        %2785 = vmatmul.mubr.bf16.gmra.mrb[0].mxu0 %v2658
        %v2786 = vpop.f32.mrb[0].mxu0
        %v2787 = vadd.f32 0.0, %v2786
        %v2788 = vpop.f32.mrb[0].mxu0
        %v2789 = vpop.f32.mrb[0].mxu0
        %v2790 = vadd.f32 0.0, %v2789
        %v2791 = vpop.f32.mrb[0].mxu0
        %2792 = vmatprep.mubr.bf16.mxu0 0
        %2793 = vmatmul.mubr.bf16.gmra.mrb[0].mxu0 %v2659
        %v2794 = vpop.f32.mrb[0].mxu0
        %v2795 = vadd.f32 0.0, %v2794
        %v2796 = vpop.f32.mrb[0].mxu0
        %v2797 = vpop.f32.mrb[0].mxu0
        %v2798 = vadd.f32 0.0, %v2797
        %v2799 = vpop.f32.mrb[0].mxu0
        %2800 = vmatprep.mubr.bf16.mxu0 0
        %2801 = vmatmul.mubr.bf16.gmra.mrb[0].mxu0 %v2660
        %v2802 = vpop.f32.mrb[0].mxu0
        %v2803 = vadd.f32 0.0, %v2802
        %v2804 = vpop.f32.mrb[0].mxu0
        %v2805 = vpop.f32.mrb[0].mxu0
        %v2806 = vadd.f32 0.0, %v2805
        %v2807 = vpop.f32.mrb[0].mxu0
        %2808 = vmatprep.mubr.bf16.mxu0 0
        %2809 = vmatmul.mubr.bf16.gmra.mrb[0].mxu0 %v2661
        %v2810 = vpop.f32.mrb[0].mxu0
        %v2811 = vadd.f32 0.0, %v2810
        %v2812 = vpop.f32.mrb[0].mxu0
        %v2813 = vpop.f32.mrb[0].mxu0
        %v2814 = vadd.f32 0.0, %v2813
        %v2815 = vpop.f32.mrb[0].mxu0
        %2816 = vmatprep.mubr.bf16.mxu0 0
        %2817 = vmatmul.mubr.bf16.gmra.mrb[0].mxu0 %v2662
        %v2818 = vpop.f32.mrb[0].mxu0
        %v2819 = vadd.f32 0.0, %v2818
        %v2820 = vpop.f32.mrb[0].mxu0
        %v2821 = vpop.f32.mrb[0].mxu0
        %v2822 = vadd.f32 0.0, %v2821
        %v2823 = vpop.f32.mrb[0].mxu0
        %2824 = vmatprep.mubr.bf16.mxu0 0
        %2825 = vmatmul.mubr.bf16.gmra.mrb[0].mxu0 %v2663
        %v2826 = vpop.f32.mrb[0].mxu0
        %v2827 = vadd.f32 0.0, %v2826
        %v2828 = vpop.f32.mrb[0].mxu0
        %v2829 = vpop.f32.mrb[0].mxu0
        %v2830 = vadd.f32 0.0, %v2829
        %v2831 = vpop.f32.mrb[0].mxu0
        %2832 = vdwg.mxu0
        %v2833 = vld [vmem:[#allocation2] sm:$0xff]
        %v2834 = vld [vmem:[#allocation2 + $0x8] sm:$0xff]
        %v2835 = vld [vmem:[#allocation2 + $0x10] sm:$0xff]
        %v2836 = vld [vmem:[#allocation2 + $0x18] sm:$0xff]
        %v2837 = vld [vmem:[#allocation2 + $0x20] sm:$0xff]
        %v2838 = vld [vmem:[#allocation2 + $0x28] sm:$0xff]
        %v2839 = vld [vmem:[#allocation2 + $0x30] sm:$0xff]
        %v2840 = vld [vmem:[#allocation2 + $0x38] sm:$0xff]
        %v2841 = vld [vmem:[#allocation2 + $0x40] sm:$0xff]
        %v2842 = vld [vmem:[#allocation2 + $0x48] sm:$0xff]
        %v2843 = vld [vmem:[#allocation2 + $0x50] sm:$0xff]
        %v2844 = vld [vmem:[#allocation2 + $0x58] sm:$0xff]
        %v2845 = vld [vmem:[#allocation2 + $0x60] sm:$0xff]
        %v2846 = vld [vmem:[#allocation2 + $0x68] sm:$0xff]
        %v2847 = vld [vmem:[#allocation2 + $0x70] sm:$0xff]
        %v2848 = vld [vmem:[#allocation2 + $0x78] sm:$0xff]
        %v2849 = vpack.c.bf16 %v2774, %v2771
        %v2850 = vpack.c.bf16 %v2782, %v2779
        %v2851 = vpack.c.bf16 %v2790, %v2787
        %v2852 = vpack.c.bf16 %v2798, %v2795
        %v2853 = vpack.c.bf16 %v2806, %v2803
        %v2854 = vpack.c.bf16 %v2814, %v2811
        %v2855 = vpack.c.bf16 %v2822, %v2819
        %v2856 = vpack.c.bf16 %v2830, %v2827
        %v2857 = vld [vmem:[%s831] sm:$0xf]
        %v2858 = vld [vmem:[%s831 + $0x4] sm:$0xf]
        %v2859 = vld [vmem:[%s831 + $0x8] sm:$0xf]
        %v2860 = vld [vmem:[%s831 + $0xc] sm:$0xf]
        %v2861 = vld [vmem:[%s831 + $0x10] sm:$0xf]
        %v2862 = vld [vmem:[%s831 + $0x14] sm:$0xf]
        %v2863 = vld [vmem:[%s831 + $0x18] sm:$0xf]
        %v2864 = vld [vmem:[%s831 + $0x1c] sm:$0xf]
        %v2865 = vld [vmem:[%s831 + $0x20] sm:$0xf]
        %v2866 = vld [vmem:[%s831 + $0x24] sm:$0xf]
        %v2867 = vld [vmem:[%s831 + $0x28] sm:$0xf]
        %v2868 = vld [vmem:[%s831 + $0x2c] sm:$0xf]
        %v2869 = vld [vmem:[%s831 + $0x30] sm:$0xf]
        %v2870 = vld [vmem:[%s831 + $0x34] sm:$0xf]
        %v2871 = vld [vmem:[%s831 + $0x38] sm:$0xf]
        %v2872 = vld [vmem:[%s831 + $0x3c] sm:$0xf]
        %v2889 = vunpack.c.l.b16 %v2857
        %v2890 = vunpack.c.l.b16 %v2858
        %v2891 = vunpack.c.l.b16 %v2859
        %v2892 = vunpack.c.l.b16 %v2860
        %v2893 = vunpack.c.l.b16 %v2861
        %v2894 = vunpack.c.l.b16 %v2862
        %v2895 = vunpack.c.l.b16 %v2863
        %v2896 = vunpack.c.l.b16 %v2864
        %v2897 = vunpack.c.l.b16 %v2865
        %v2898 = vunpack.c.l.b16 %v2866
        %v2899 = vunpack.c.l.b16 %v2867
        %v2900 = vunpack.c.l.b16 %v2868
        %v2901 = vunpack.c.l.b16 %v2869
        %v2902 = vunpack.c.l.b16 %v2870
        %v2903 = vunpack.c.l.b16 %v2871
        %v2904 = vunpack.c.l.b16 %v2872
        %v2905 = vpack.c.b16 %v2890, %v2889
        %v2906 = vpack.c.b16 %v2892, %v2891
        %v2907 = vpack.c.b16 %v2894, %v2893
        %v2908 = vpack.c.b16 %v2896, %v2895
        %v2909 = vpack.c.b16 %v2898, %v2897
        %v2910 = vpack.c.b16 %v2900, %v2899
        %v2911 = vpack.c.b16 %v2902, %v2901
        %v2912 = vpack.c.b16 %v2904, %v2903
        %2921 = vmatprep.subr.bf16.mxu0 0
        %2922 = vmatpush1.bf16.msra.mxu0 %v2905
        %2923 = vmatprep.subr.bf16.mxu0 0
        %2924 = vmatpush1.bf16.msra.mxu0 %v2906
        %2925 = vmatprep.subr.bf16.mxu0 0
        %2926 = vmatpush1.bf16.msra.mxu0 %v2907
        %2927 = vmatprep.subr.bf16.mxu0 0
        %2928 = vmatpush1.bf16.msra.mxu0 %v2908
        %2929 = vmatprep.subr.bf16.mxu0 0
        %2930 = vmatpush1.bf16.msra.mxu0 %v2909
        %2931 = vmatprep.subr.bf16.mxu0 0
        %2932 = vmatpush1.bf16.msra.mxu0 %v2910
        %2933 = vmatprep.subr.bf16.mxu0 0
        %2934 = vmatpush1.bf16.msra.mxu0 %v2911
        %2935 = vmatprep.subr.bf16.mxu0 0
        %2936 = vmatpush1.bf16.msra.mxu0 %v2912
        %2937 = vmatprep.subr.bf16.mxu0 0
        %2938 = vmatpush1.bf16.msra.mxu0 0
        %2939 = vmatprep.subr.bf16.mxu0 0
        %2940 = vmatpush1.bf16.msra.mxu0 0
        %2941 = vmatprep.subr.bf16.mxu0 0
        %2942 = vmatpush1.bf16.msra.mxu0 0
        %2943 = vmatprep.subr.bf16.mxu0 0
        %2944 = vmatpush1.bf16.msra.mxu0 0
        %2945 = vmatprep.subr.bf16.mxu0 0
        %2946 = vmatpush1.bf16.msra.mxu0 0
        %2947 = vmatprep.subr.bf16.mxu0 0
        %2948 = vmatpush1.bf16.msra.mxu0 0
        %2949 = vmatprep.subr.bf16.mxu0 0
        %2950 = vmatpush1.bf16.msra.mxu0 0
        %2951 = vmatprep.subr.bf16.mxu0 0
        %2952 = vmatpush1.bf16.msra.mxu0 0
        %2953 = vmatprep.mubr.bf16.mxu0 0
        %2954 = vmatmul.mubr.bf16.gmra.mrb[0].mxu0 %v2849
        %v2955 = vpop.f32.mrb[0].mxu0
        %v2956 = vadd.f32 0.0, %v2955
        %v2957 = vpop.f32.mrb[0].mxu0
        %v2958 = vpop.f32.mrb[0].mxu0
        %v2959 = vadd.f32 0.0, %v2958
        %v2960 = vpop.f32.mrb[0].mxu0
        %2961 = vmatprep.mubr.bf16.mxu0 0
        %2962 = vmatmul.mubr.bf16.gmra.mrb[0].mxu0 %v2850
        %v2963 = vpop.f32.mrb[0].mxu0
        %v2964 = vadd.f32 0.0, %v2963
        %v2965 = vpop.f32.mrb[0].mxu0
        %v2966 = vpop.f32.mrb[0].mxu0
        %v2967 = vadd.f32 0.0, %v2966
        %v2968 = vpop.f32.mrb[0].mxu0
        %2969 = vmatprep.mubr.bf16.mxu0 0
        %2970 = vmatmul.mubr.bf16.gmra.mrb[0].mxu0 %v2851
        %v2971 = vpop.f32.mrb[0].mxu0
        %v2972 = vadd.f32 0.0, %v2971
        %v2973 = vpop.f32.mrb[0].mxu0
        %v2974 = vpop.f32.mrb[0].mxu0
        %v2975 = vadd.f32 0.0, %v2974
        %v2976 = vpop.f32.mrb[0].mxu0
        %2977 = vmatprep.mubr.bf16.mxu0 0
        %2978 = vmatmul.mubr.bf16.gmra.mrb[0].mxu0 %v2852
        %v2979 = vpop.f32.mrb[0].mxu0
        %v2980 = vadd.f32 0.0, %v2979
        %v2981 = vpop.f32.mrb[0].mxu0
        %v2982 = vpop.f32.mrb[0].mxu0
        %v2983 = vadd.f32 0.0, %v2982
        %v2984 = vpop.f32.mrb[0].mxu0
        %2985 = vmatprep.mubr.bf16.mxu0 0
        %2986 = vmatmul.mubr.bf16.gmra.mrb[0].mxu0 %v2853
        %v2987 = vpop.f32.mrb[0].mxu0
        %v2988 = vadd.f32 0.0, %v2987
        %v2989 = vpop.f32.mrb[0].mxu0
        %v2990 = vpop.f32.mrb[0].mxu0
        %v2991 = vadd.f32 0.0, %v2990
        %v2992 = vpop.f32.mrb[0].mxu0
        %2993 = vmatprep.mubr.bf16.mxu0 0
        %2994 = vmatmul.mubr.bf16.gmra.mrb[0].mxu0 %v2854
        %v2995 = vpop.f32.mrb[0].mxu0
        %v2996 = vadd.f32 0.0, %v2995
        %v2997 = vpop.f32.mrb[0].mxu0
        %v2998 = vpop.f32.mrb[0].mxu0
        %v2999 = vadd.f32 0.0, %v2998
        %v3000 = vpop.f32.mrb[0].mxu0
        %3001 = vmatprep.mubr.bf16.mxu0 0
        %3002 = vmatmul.mubr.bf16.gmra.mrb[0].mxu0 %v2855
        %v3003 = vpop.f32.mrb[0].mxu0
        %v3004 = vadd.f32 0.0, %v3003
        %v3005 = vpop.f32.mrb[0].mxu0
        %v3006 = vpop.f32.mrb[0].mxu0
        %v3007 = vadd.f32 0.0, %v3006
        %v3008 = vpop.f32.mrb[0].mxu0
        %3009 = vmatprep.mubr.bf16.mxu0 0
        %3010 = vmatmul.mubr.bf16.gmra.mrb[0].mxu0 %v2856
        %v3011 = vpop.f32.mrb[0].mxu0
        %v3012 = vadd.f32 0.0, %v3011
        %v3013 = vpop.f32.mrb[0].mxu0
        %v3014 = vpop.f32.mrb[0].mxu0
        %v3015 = vadd.f32 0.0, %v3014
        %v3016 = vpop.f32.mrb[0].mxu0
        %3017 = vdwg.mxu0
        %v3018 = vadd.f32 %v2833, %v2956
        %v3019 = vadd.f32 %v2834, %v2959
        %v3020 = vadd.f32 %v2835, %v2964
        %v3021 = vadd.f32 %v2836, %v2967
        %v3022 = vadd.f32 %v2837, %v2972
        %v3023 = vadd.f32 %v2838, %v2975
        %v3024 = vadd.f32 %v2839, %v2980
        %v3025 = vadd.f32 %v2840, %v2983
        %v3026 = vadd.f32 %v2841, %v2988
        %v3027 = vadd.f32 %v2842, %v2991
        %v3028 = vadd.f32 %v2843, %v2996
        %v3029 = vadd.f32 %v2844, %v2999
        %v3030 = vadd.f32 %v2845, %v3004
        %v3031 = vadd.f32 %v2846, %v3007
        %v3032 = vadd.f32 %v2847, %v3012
        %v3033 = vadd.f32 %v2848, %v3015
        %3034 = vst [vmem:[#allocation2] sm:$0xff] %v3018
        %3035 = vst [vmem:[#allocation2 + $0x8] sm:$0xff] %v3019
        %3036 = vst [vmem:[#allocation2 + $0x10] sm:$0xff] %v3020
        %3037 = vst [vmem:[#allocation2 + $0x18] sm:$0xff] %v3021
        %3038 = vst [vmem:[#allocation2 + $0x20] sm:$0xff] %v3022
        %3039 = vst [vmem:[#allocation2 + $0x28] sm:$0xff] %v3023
        %3040 = vst [vmem:[#allocation2 + $0x30] sm:$0xff] %v3024
        %3041 = vst [vmem:[#allocation2 + $0x38] sm:$0xff] %v3025
        %3042 = vst [vmem:[#allocation2 + $0x40] sm:$0xff] %v3026
        %3043 = vst [vmem:[#allocation2 + $0x48] sm:$0xff] %v3027
        %3044 = vst [vmem:[#allocation2 + $0x50] sm:$0xff] %v3028
        %3045 = vst [vmem:[#allocation2 + $0x58] sm:$0xff] %v3029
        %3046 = vst [vmem:[#allocation2 + $0x60] sm:$0xff] %v3030
        %3047 = vst [vmem:[#allocation2 + $0x68] sm:$0xff] %v3031
        %3048 = vst [vmem:[#allocation2 + $0x70] sm:$0xff] %v3032
        %3049 = vst [vmem:[#allocation2 + $0x78] sm:$0xff] %v3033
        %p3050 = scmp.eq.s32.totalorder %s56, 3
        // Predicated region
        $region141: #{tpu_custom_call.1} parent=87 // pred_check
          %p3051 = pneg %p3050
        $region142: #{tpu_custom_call.1} parent=87 // pred_check_branch
          %3053 = sbr.rel (%p3051) target = $region144
        $region143: #{tpu_custom_call.1} parent=87 // pred_region
          %v3054 = vld [vmem:[%s804] sm:$0xff]
          %v3055 = vld [vmem:[%s804 + $0x8] sm:$0xff]
          %v3056 = vld [vmem:[%s804 + $0x10] sm:$0xff]
          %v3057 = vld [vmem:[%s804 + $0x18] sm:$0xff]
          %v3058 = vld [vmem:[%s804 + $0x20] sm:$0xff]
          %v3059 = vld [vmem:[%s804 + $0x28] sm:$0xff]
          %v3060 = vld [vmem:[%s804 + $0x30] sm:$0xff]
          %v3061 = vld [vmem:[%s804 + $0x38] sm:$0xff]
          %v3062 = vld [vmem:[%s804 + $0x40] sm:$0xff]
          %v3063 = vld [vmem:[%s804 + $0x48] sm:$0xff]
          %v3064 = vld [vmem:[%s804 + $0x50] sm:$0xff]
          %v3065 = vld [vmem:[%s804 + $0x58] sm:$0xff]
          %v3066 = vld [vmem:[%s804 + $0x60] sm:$0xff]
          %v3067 = vld [vmem:[%s804 + $0x68] sm:$0xff]
          %v3068 = vld [vmem:[%s804 + $0x70] sm:$0xff]
          %v3069 = vld [vmem:[%s804 + $0x78] sm:$0xff]
          %v3070 = vld [vmem:[#allocation2] sm:$0xff]
          %v3071 = vld [vmem:[#allocation2 + $0x8] sm:$0xff]
          %v3072 = vld [vmem:[#allocation2 + $0x10] sm:$0xff]
          %v3073 = vld [vmem:[#allocation2 + $0x18] sm:$0xff]
          %v3074 = vld [vmem:[#allocation2 + $0x20] sm:$0xff]
          %v3075 = vld [vmem:[#allocation2 + $0x28] sm:$0xff]
          %v3076 = vld [vmem:[#allocation2 + $0x30] sm:$0xff]
          %v3077 = vld [vmem:[#allocation2 + $0x38] sm:$0xff]
          %v3078 = vld [vmem:[#allocation2 + $0x40] sm:$0xff]
          %v3079 = vld [vmem:[#allocation2 + $0x48] sm:$0xff]
          %v3080 = vld [vmem:[#allocation2 + $0x50] sm:$0xff]
          %v3081 = vld [vmem:[#allocation2 + $0x58] sm:$0xff]
          %v3082 = vld [vmem:[#allocation2 + $0x60] sm:$0xff]
          %v3083 = vld [vmem:[#allocation2 + $0x68] sm:$0xff]
          %v3084 = vld [vmem:[#allocation2 + $0x70] sm:$0xff]
          %v3085 = vld [vmem:[#allocation2 + $0x78] sm:$0xff]
          %v3086 = vadd.f32 %v3054, %v3070
          %v3087 = vadd.f32 %v3055, %v3071
          %v3088 = vadd.f32 %v3056, %v3072
          %v3089 = vadd.f32 %v3057, %v3073
          %v3090 = vadd.f32 %v3058, %v3074
          %v3091 = vadd.f32 %v3059, %v3075
          %v3092 = vadd.f32 %v3060, %v3076
          %v3093 = vadd.f32 %v3061, %v3077
          %v3094 = vadd.f32 %v3062, %v3078
          %v3095 = vadd.f32 %v3063, %v3079
          %v3096 = vadd.f32 %v3064, %v3080
          %v3097 = vadd.f32 %v3065, %v3081
          %v3098 = vadd.f32 %v3066, %v3082
          %v3099 = vadd.f32 %v3067, %v3083
          %v3100 = vadd.f32 %v3068, %v3084
          %v3101 = vadd.f32 %v3069, %v3085
          %v3102 = vld [vmem:[%s10] sm:$0x1]
          %v3104 = vlaneseq
          %v3105 = vshrl.u32 %v3104, 7
          %v3106 = vsub.s32 0, %v3105
          %v3107 = vrot.slane %v3102, %v3106
          %v3109 = vadd.f32 %v3086, %v3107
          %v3110 = vadd.f32 %v3087, %v3107
          %v3111 = vadd.f32 %v3088, %v3107
          %v3112 = vadd.f32 %v3089, %v3107
          %v3113 = vadd.f32 %v3090, %v3107
          %v3114 = vadd.f32 %v3091, %v3107
          %v3115 = vadd.f32 %v3092, %v3107
          %v3116 = vadd.f32 %v3093, %v3107
          %v3117 = vadd.f32 %v3094, %v3107
          %v3118 = vadd.f32 %v3095, %v3107
          %v3119 = vadd.f32 %v3096, %v3107
          %v3120 = vadd.f32 %v3097, %v3107
          %v3121 = vadd.f32 %v3098, %v3107
          %v3122 = vadd.f32 %v3099, %v3107
          %v3123 = vadd.f32 %v3100, %v3107
          %v3124 = vadd.f32 %v3101, %v3107
          %3125 = vadd.xlane.f32.xlu0 %v3109
          %v3126 = vpop.xlane.xlu0 %3125
          %3127 = vadd.xlane.f32.xlu0 %v3110
          %v3128 = vpop.xlane.xlu0 %3127
          %3129 = vadd.xlane.f32.xlu0 %v3111
          %v3130 = vpop.xlane.xlu0 %3129
          %3131 = vadd.xlane.f32.xlu0 %v3112
          %v3132 = vpop.xlane.xlu0 %3131
          %3133 = vadd.xlane.f32.xlu0 %v3113
          %v3134 = vpop.xlane.xlu0 %3133
          %3135 = vadd.xlane.f32.xlu0 %v3114
          %v3136 = vpop.xlane.xlu0 %3135
          %3137 = vadd.xlane.f32.xlu0 %v3115
          %v3138 = vpop.xlane.xlu0 %3137
          %3139 = vadd.xlane.f32.xlu0 %v3116
          %v3140 = vpop.xlane.xlu0 %3139
          %3141 = vadd.xlane.f32.xlu0 %v3117
          %v3142 = vpop.xlane.xlu0 %3141
          %3143 = vadd.xlane.f32.xlu0 %v3118
          %v3144 = vpop.xlane.xlu0 %3143
          %3145 = vadd.xlane.f32.xlu0 %v3119
          %v3146 = vpop.xlane.xlu0 %3145
          %3147 = vadd.xlane.f32.xlu0 %v3120
          %v3148 = vpop.xlane.xlu0 %3147
          %3149 = vadd.xlane.f32.xlu0 %v3121
          %v3150 = vpop.xlane.xlu0 %3149
          %3151 = vadd.xlane.f32.xlu0 %v3122
          %v3152 = vpop.xlane.xlu0 %3151
          %3153 = vadd.xlane.f32.xlu0 %v3123
          %v3154 = vpop.xlane.xlu0 %3153
          %3155 = vadd.xlane.f32.xlu0 %v3124
          %v3156 = vpop.xlane.xlu0 %3155
          %v3157 = vmul.f32 %v3126, 0.03125
          %v3158 = vmul.f32 %v3128, 0.03125
          %v3159 = vmul.f32 %v3130, 0.03125
          %v3160 = vmul.f32 %v3132, 0.03125
          %v3161 = vmul.f32 %v3134, 0.03125
          %v3162 = vmul.f32 %v3136, 0.03125
          %v3163 = vmul.f32 %v3138, 0.03125
          %v3164 = vmul.f32 %v3140, 0.03125
          %v3165 = vmul.f32 %v3142, 0.03125
          %v3166 = vmul.f32 %v3144, 0.03125
          %v3167 = vmul.f32 %v3146, 0.03125
          %v3168 = vmul.f32 %v3148, 0.03125
          %v3169 = vmul.f32 %v3150, 0.03125
          %v3170 = vmul.f32 %v3152, 0.03125
          %v3171 = vmul.f32 %v3154, 0.03125
          %v3172 = vmul.f32 %v3156, 0.03125
          %v3173 = vlaneseq
          %v3174 = vand.u32 %v3173, 127
          %vm3175 = vcmp.lt.s32.totalorder %v3174, 32
          %v3176 = vsub.f32 %v3109, %v3157
          %v3177 = vsub.f32 %v3110, %v3158
          %v3178 = vsub.f32 %v3111, %v3159
          %v3179 = vsub.f32 %v3112, %v3160
          %v3180 = vsub.f32 %v3113, %v3161
          %v3181 = vsub.f32 %v3114, %v3162
          %v3182 = vsub.f32 %v3115, %v3163
          %v3183 = vsub.f32 %v3116, %v3164
          %v3184 = vsub.f32 %v3117, %v3165
          %v3185 = vsub.f32 %v3118, %v3166
          %v3186 = vsub.f32 %v3119, %v3167
          %v3187 = vsub.f32 %v3120, %v3168
          %v3188 = vsub.f32 %v3121, %v3169
          %v3189 = vsub.f32 %v3122, %v3170
          %v3190 = vsub.f32 %v3123, %v3171
          %v3191 = vsub.f32 %v3124, %v3172
          %v3192 = vsel %vm3175, 1, 0
          %vm3193 = vcmp.eq.s32.totalorder %v3192, 1
          %v3194 = vsel %vm3193, %v3176, 0.0
          %v3195 = vsel %vm3193, %v3177, 0.0
          %v3196 = vsel %vm3193, %v3178, 0.0
          %v3197 = vsel %vm3193, %v3179, 0.0
          %v3198 = vsel %vm3193, %v3180, 0.0
          %v3199 = vsel %vm3193, %v3181, 0.0
          %v3200 = vsel %vm3193, %v3182, 0.0
          %v3201 = vsel %vm3193, %v3183, 0.0
          %v3202 = vsel %vm3193, %v3184, 0.0
          %v3203 = vsel %vm3193, %v3185, 0.0
          %v3204 = vsel %vm3193, %v3186, 0.0
          %v3205 = vsel %vm3193, %v3187, 0.0
          %v3206 = vsel %vm3193, %v3188, 0.0
          %v3207 = vsel %vm3193, %v3189, 0.0
          %v3208 = vsel %vm3193, %v3190, 0.0
          %v3209 = vsel %vm3193, %v3191, 0.0
          %v3210 = vmul.f32 %v3194, %v3194
          %v3211 = vmul.f32 %v3195, %v3195
          %v3212 = vmul.f32 %v3196, %v3196
          %v3213 = vmul.f32 %v3197, %v3197
          %v3214 = vmul.f32 %v3198, %v3198
          %v3215 = vmul.f32 %v3199, %v3199
          %v3216 = vmul.f32 %v3200, %v3200
          %v3217 = vmul.f32 %v3201, %v3201
          %v3218 = vmul.f32 %v3202, %v3202
          %v3219 = vmul.f32 %v3203, %v3203
          %v3220 = vmul.f32 %v3204, %v3204
          %v3221 = vmul.f32 %v3205, %v3205
          %v3222 = vmul.f32 %v3206, %v3206
          %v3223 = vmul.f32 %v3207, %v3207
          %v3224 = vmul.f32 %v3208, %v3208
          %v3225 = vmul.f32 %v3209, %v3209
          %3226 = vadd.xlane.f32.xlu0 %v3210
          %v3227 = vpop.xlane.xlu0 %3226
          %3228 = vadd.xlane.f32.xlu0 %v3211
          %v3229 = vpop.xlane.xlu0 %3228
          %3230 = vadd.xlane.f32.xlu0 %v3212
          %v3231 = vpop.xlane.xlu0 %3230
          %3232 = vadd.xlane.f32.xlu0 %v3213
          %v3233 = vpop.xlane.xlu0 %3232
          %3234 = vadd.xlane.f32.xlu0 %v3214
          %v3235 = vpop.xlane.xlu0 %3234
          %3236 = vadd.xlane.f32.xlu0 %v3215
          %v3237 = vpop.xlane.xlu0 %3236
          %3238 = vadd.xlane.f32.xlu0 %v3216
          %v3239 = vpop.xlane.xlu0 %3238
          %3240 = vadd.xlane.f32.xlu0 %v3217
          %v3241 = vpop.xlane.xlu0 %3240
          %3242 = vadd.xlane.f32.xlu0 %v3218
          %v3243 = vpop.xlane.xlu0 %3242
          %3244 = vadd.xlane.f32.xlu0 %v3219
          %v3245 = vpop.xlane.xlu0 %3244
          %3246 = vadd.xlane.f32.xlu0 %v3220
          %v3247 = vpop.xlane.xlu0 %3246
          %3248 = vadd.xlane.f32.xlu0 %v3221
          %v3249 = vpop.xlane.xlu0 %3248
          %3250 = vadd.xlane.f32.xlu0 %v3222
          %v3251 = vpop.xlane.xlu0 %3250
          %3252 = vadd.xlane.f32.xlu0 %v3223
          %v3253 = vpop.xlane.xlu0 %3252
          %3254 = vadd.xlane.f32.xlu0 %v3224
          %v3255 = vpop.xlane.xlu0 %3254
          %3256 = vadd.xlane.f32.xlu0 %v3225
          %v3257 = vpop.xlane.xlu0 %3256
          %v3258 = vmul.f32 %v3227, 0.03125
          %v3259 = vmul.f32 %v3229, 0.03125
          %v3260 = vmul.f32 %v3231, 0.03125
          %v3261 = vmul.f32 %v3233, 0.03125
          %v3262 = vmul.f32 %v3235, 0.03125
          %v3263 = vmul.f32 %v3237, 0.03125
          %v3264 = vmul.f32 %v3239, 0.03125
          %v3265 = vmul.f32 %v3241, 0.03125
          %v3266 = vmul.f32 %v3243, 0.03125
          %v3267 = vmul.f32 %v3245, 0.03125
          %v3268 = vmul.f32 %v3247, 0.03125
          %v3269 = vmul.f32 %v3249, 0.03125
          %v3270 = vmul.f32 %v3251, 0.03125
          %v3271 = vmul.f32 %v3253, 0.03125
          %v3272 = vmul.f32 %v3255, 0.03125
          %v3273 = vmul.f32 %v3257, 0.03125
          %v3274 = vadd.f32 %v3258, 1e-05
          %v3275 = vadd.f32 %v3259, 1e-05
          %v3276 = vadd.f32 %v3260, 1e-05
          %v3277 = vadd.f32 %v3261, 1e-05
          %v3278 = vadd.f32 %v3262, 1e-05
          %v3279 = vadd.f32 %v3263, 1e-05
          %v3280 = vadd.f32 %v3264, 1e-05
          %v3281 = vadd.f32 %v3265, 1e-05
          %v3282 = vadd.f32 %v3266, 1e-05
          %v3283 = vadd.f32 %v3267, 1e-05
          %v3284 = vadd.f32 %v3268, 1e-05
          %v3285 = vadd.f32 %v3269, 1e-05
          %v3286 = vadd.f32 %v3270, 1e-05
          %v3287 = vadd.f32 %v3271, 1e-05
          %v3288 = vadd.f32 %v3272, 1e-05
          %v3289 = vadd.f32 %v3273, 1e-05
          %v3290 = vrsqrt.pop %v3274
          %v3291 = vrsqrt.pop %v3275
          %v3292 = vrsqrt.pop %v3276
          %v3293 = vrsqrt.pop %v3277
          %v3294 = vrsqrt.pop %v3278
          %v3295 = vrsqrt.pop %v3279
          %v3296 = vrsqrt.pop %v3280
          %v3297 = vrsqrt.pop %v3281
          %v3298 = vrsqrt.pop %v3282
          %v3299 = vrsqrt.pop %v3283
          %v3300 = vrsqrt.pop %v3284
          %v3301 = vrsqrt.pop %v3285
          %v3302 = vrsqrt.pop %v3286
          %v3303 = vrsqrt.pop %v3287
          %v3304 = vrsqrt.pop %v3288
          %v3305 = vrsqrt.pop %v3289
          %v3306 = vmul.f32 %v3194, %v3290
          %v3307 = vmul.f32 %v3195, %v3291
          %v3308 = vmul.f32 %v3196, %v3292
          %v3309 = vmul.f32 %v3197, %v3293
          %v3310 = vmul.f32 %v3198, %v3294
          %v3311 = vmul.f32 %v3199, %v3295
          %v3312 = vmul.f32 %v3200, %v3296
          %v3313 = vmul.f32 %v3201, %v3297
          %v3314 = vmul.f32 %v3202, %v3298
          %v3315 = vmul.f32 %v3203, %v3299
          %v3316 = vmul.f32 %v3204, %v3300
          %v3317 = vmul.f32 %v3205, %v3301
          %v3318 = vmul.f32 %v3206, %v3302
          %v3319 = vmul.f32 %v3207, %v3303
          %v3320 = vmul.f32 %v3208, %v3304
          %v3321 = vmul.f32 %v3209, %v3305
          %v3322 = vld [vmem:[%s11] sm:$0x1]
          %v3324 = vlaneseq
          %v3325 = vshrl.u32 %v3324, 7
          %v3326 = vsub.s32 0, %v3325
          %v3327 = vrot.slane %v3322, %v3326
          %v3329 = vmul.f32 %v3306, %v3327
          %v3330 = vmul.f32 %v3307, %v3327
          %v3331 = vmul.f32 %v3308, %v3327
          %v3332 = vmul.f32 %v3309, %v3327
          %v3333 = vmul.f32 %v3310, %v3327
          %v3334 = vmul.f32 %v3311, %v3327
          %v3335 = vmul.f32 %v3312, %v3327
          %v3336 = vmul.f32 %v3313, %v3327
          %v3337 = vmul.f32 %v3314, %v3327
          %v3338 = vmul.f32 %v3315, %v3327
          %v3339 = vmul.f32 %v3316, %v3327
          %v3340 = vmul.f32 %v3317, %v3327
          %v3341 = vmul.f32 %v3318, %v3327
          %v3342 = vmul.f32 %v3319, %v3327
          %v3343 = vmul.f32 %v3320, %v3327
          %v3344 = vmul.f32 %v3321, %v3327
          %v3345 = vld [vmem:[%s12] sm:$0x1]
          %v3347 = vlaneseq
          %v3348 = vshrl.u32 %v3347, 7
          %v3349 = vsub.s32 0, %v3348
          %v3350 = vrot.slane %v3345, %v3349
          %v3352 = vadd.f32 %v3329, %v3350
          %v3353 = vadd.f32 %v3330, %v3350
          %v3354 = vadd.f32 %v3331, %v3350
          %v3355 = vadd.f32 %v3332, %v3350
          %v3356 = vadd.f32 %v3333, %v3350
          %v3357 = vadd.f32 %v3334, %v3350
          %v3358 = vadd.f32 %v3335, %v3350
          %v3359 = vadd.f32 %v3336, %v3350
          %v3360 = vadd.f32 %v3337, %v3350
          %v3361 = vadd.f32 %v3338, %v3350
          %v3362 = vadd.f32 %v3339, %v3350
          %v3363 = vadd.f32 %v3340, %v3350
          %v3364 = vadd.f32 %v3341, %v3350
          %v3365 = vadd.f32 %v3342, %v3350
          %v3366 = vadd.f32 %v3343, %v3350
          %v3367 = vadd.f32 %v3344, %v3350
          %3368 = vst [vmem:[%s934] sm:$0xff] %v3352
          %3369 = vst [vmem:[%s934 + $0x8] sm:$0xff] %v3353
          %3370 = vst [vmem:[%s934 + $0x10] sm:$0xff] %v3354
          %3371 = vst [vmem:[%s934 + $0x18] sm:$0xff] %v3355
          %3372 = vst [vmem:[%s934 + $0x20] sm:$0xff] %v3356
          %3373 = vst [vmem:[%s934 + $0x28] sm:$0xff] %v3357
          %3374 = vst [vmem:[%s934 + $0x30] sm:$0xff] %v3358
          %3375 = vst [vmem:[%s934 + $0x38] sm:$0xff] %v3359
          %3376 = vst [vmem:[%s934 + $0x40] sm:$0xff] %v3360
          %3377 = vst [vmem:[%s934 + $0x48] sm:$0xff] %v3361
          %3378 = vst [vmem:[%s934 + $0x50] sm:$0xff] %v3362
          %3379 = vst [vmem:[%s934 + $0x58] sm:$0xff] %v3363
          %3380 = vst [vmem:[%s934 + $0x60] sm:$0xff] %v3364
          %3381 = vst [vmem:[%s934 + $0x68] sm:$0xff] %v3365
          %3382 = vst [vmem:[%s934 + $0x70] sm:$0xff] %v3366
          %3383 = vst [vmem:[%s934 + $0x78] sm:$0xff] %v3367
        $region144: #{tpu_custom_call.1} parent=87 // pred_fallthru
          _
        %s3384 = sand.u32 %s473, 1
        %s3385 = scalar_lea.sflag [#allocation5], %s3384
        %s3386 = sand.u32 %s473, 1
        %s3387 = smul.addr %s3386, 128
        %s3388 = scalar_lea.vmem [#allocation23], %s3387
        %s3389 = sand.u32 %s501, 1
        %s3390 = scalar_lea.sflag [#allocation25], %s3389
        %s3391 = sand.u32 %s501, 1
        %s3392 = smul.addr %s3391, 64
        %s3393 = scalar_lea.vmem [#allocation24], %s3392
        // Predicated region
        $region145: #{tpu_custom_call.1} parent=87 // pred_check
          %p3394 = pneg %p483
        $region146: #{tpu_custom_call.1} parent=87 // pred_check_branch
          %3396 = sbr.rel (%p3394) target = $region148
        $region147: #{tpu_custom_call.1} parent=87 // pred_region
          %s3398 = ssub.s32 2048, 2048
          %3399 = vsyncadd %s3385, %s3398
          %s3400 = smul.addr %s55, 16
          %s3401 = smul.addr %s3400, 128
          %s3402 = scalar_lea.hbm %s17, %s3401
          %s3403 = sshll.u32 %s3388, 4
          %s3404 = int_to_ptr.vmem [resolvable:$true] %s3403
          %3409 = dma.vmem_to_hbm [thread:$0]  %s3404, 2048, %s3402, %s3385, 128, 128, 8
        $region148: #{tpu_custom_call.1} parent=87 // pred_fallthru
          _
        // Predicated region
        $region149: #{tpu_custom_call.1} parent=87 // pred_check
          %p3410 = pneg %p511
        $region150: #{tpu_custom_call.1} parent=87 // pred_check_branch
          %3412 = sbr.rel (%p3410) target = $region152
        $region151: #{tpu_custom_call.1} parent=87 // pred_region
          %s3414 = ssub.s32 1024, 1024
          %3415 = vsyncadd %s3390, %s3414
          %s3416 = smul.addr %s56, 16
          %s3417 = smul.addr %s55, 64
          %s3418 = sadd.s32 %s3416, %s3417
          %s3419 = smul.addr %s3418, 64
          %s3420 = scalar_lea.hbm %s18, %s3419
          %s3421 = sshll.u32 %s3393, 4
          %s3422 = int_to_ptr.vmem [resolvable:$true] %s3421
          %3427 = dma.vmem_to_hbm [thread:$0]  %s3422, 1024, %s3420, %s3390, 64, 64, 4
        $region152: #{tpu_custom_call.1} parent=87 // pred_fallthru
          _
      $region88: #{tpu_custom_call.1} parent=5 // pred_fallthru
        _
      %p3428 = scmp.le.s32.totalorder 2, %s46
      // Predicated region
      $region153: #{tpu_custom_call.1} parent=5 // pred_check
        %p3429 = pneg %p3428
      $region154: #{tpu_custom_call.1} parent=5 // pred_check_branch
        %3431 = sbr.rel (%p3429) target = $region156
      $region155: #{tpu_custom_call.1} parent=5 // pred_region
        %s3432 = ssub.s32 %s46, 2
        // Predicated region
        $region157: #{tpu_custom_call.1} parent=155 // pred_check
          %p3433 = pneg %p489
        $region158: #{tpu_custom_call.1} parent=155 // pred_check_branch
          %3435 = sbr.rel (%p3433) target = $region160
        $region159: #{tpu_custom_call.1} parent=155 // pred_region
          %s3436 = sand.u32 %s474, 1
          %s3437 = scalar_lea.sflag [#allocation5], %s3436
          %s3438 = sand.u32 %s474, 1
          %s3439 = smul.addr %s3438, 128
          %s3440 = scalar_lea.vmem [#allocation23], %s3439
          %3441 = dma.done %s3437, 2048
        $region160: #{tpu_custom_call.1} parent=155 // pred_fallthru
          _
        // Predicated region
        $region161: #{tpu_custom_call.1} parent=155 // pred_check
          %p3442 = pneg %p517
        $region162: #{tpu_custom_call.1} parent=155 // pred_check_branch
          %3444 = sbr.rel (%p3442) target = $region164
        $region163: #{tpu_custom_call.1} parent=155 // pred_region
          %s3445 = sand.u32 %s502, 1
          %s3446 = scalar_lea.sflag [#allocation25], %s3445
          %s3447 = sand.u32 %s502, 1
          %s3448 = smul.addr %s3447, 64
          %s3449 = scalar_lea.vmem [#allocation24], %s3448
          %3450 = dma.done %s3446, 1024
        $region164: #{tpu_custom_call.1} parent=155 // pred_fallthru
          _
      $region156: #{tpu_custom_call.1} parent=5 // pred_fallthru
        _
    $region6: #{tpu_custom_call.1} parent=1 // loop_footer
      %s50 = sadd.s32 1, %s46
    $region7: #{tpu_custom_call.1} parent=1 // loop_footer_branch
      %45 = sbr.rel target = $region3
    $region8: #{tpu_custom_call.1} parent=1 // loop_exit
      _
    %3451 = vsyncpa [#allocation4], 1
    %s3452 = scalar_lea.sflag [#allocation4], 1
    %3453 = vsyncpa %s3452, 1
    %3454 = vsyncpa [#allocation9], 1
    %s3455 = scalar_lea.sflag [#allocation9], 1
    %3456 = vsyncpa %s3455, 1
    %3457 = vsyncpa [#allocation12], 1
    %s3458 = scalar_lea.sflag [#allocation12], 1
    %3459 = vsyncpa %s3458, 1
    %3460 = vsyncpa [#allocation15], 1
    %s3461 = scalar_lea.sflag [#allocation15], 1
    %3462 = vsyncpa %s3461, 1
    %3463 = vsyncpa [#allocation18], 1
    %3464 = vsyncpa [#allocation21], 1
    %3465 = vsyncpa [#allocation5], 1
    %s3466 = scalar_lea.sflag [#allocation5], 1
    %3467 = vsyncpa %s3466, 1
    %3468 = vsyncpa [#allocation25], 1
    %s3469 = scalar_lea.sflag [#allocation25], 1
    %3470 = vsyncpa %s3469, 1
    %3471 = vsyncpa [#allocation6], 1
    %s3472 = scalar_lea.sflag [#allocation6], 1
    %3473 = vsyncpa %s3472, 1

</llo_original>
